<compile_context>
chip_gen: v6e
topology: v6e:2x2x1
jax: 0.10.0
libtpu: 0.0.40
codegen_flags: <defaults>
</compile_context>

<pallas_src>
import functools

import jax
import jax.numpy as jnp
from jax.experimental import pallas as pl
from jax.experimental.pallas import tpu as pltpu


_PARALLEL = pltpu.CompilerParams(dimension_semantics=("parallel",))
_EPS = 1e-5


# ----------------------------------------------------------------------------
# In-kernel helpers
# ----------------------------------------------------------------------------

def _ln_f32(x, g, b):
    """LayerNorm over last dim in float32.  x:(S,D)  g,b:(1,D)."""
    mu = jnp.mean(x, axis=-1, keepdims=True)
    var = jnp.mean((x - mu) * (x - mu), axis=-1, keepdims=True)
    return (x - mu) * jax.lax.rsqrt(var + _EPS) * g + b


# ----------------------------------------------------------------------------
# Kernel 1: patch-embed matmul (conv1 with stride == kernel, no bias)
# ----------------------------------------------------------------------------

def _patch_embed_kernel(p_ref, w_ref, o_ref):
    o_ref[0] = jnp.dot(p_ref[0].astype(jnp.float32), w_ref[...],
                       preferred_element_type=jnp.float32).astype(o_ref.dtype)


def patch_embed(patches, w_pe):
    """patches:(B,N,C*p*p)  w_pe:(C*p*p,D) -> (B,N,D)."""
    B, N, Cpp = patches.shape
    D = w_pe.shape[1]
    return pl.pallas_call(
        _patch_embed_kernel,
        out_shape=jax.ShapeDtypeStruct((B, N, D), patches.dtype),
        grid=(B,),
        in_specs=[
            pl.BlockSpec((1, N, Cpp), lambda i: (i, 0, 0)),
            pl.BlockSpec((Cpp, D), lambda i: (0, 0)),
        ],
        out_specs=pl.BlockSpec((1, N, D), lambda i: (i, 0, 0)),
        compiler_params=_PARALLEL,
    )(patches, w_pe)


# ----------------------------------------------------------------------------
# Kernel 2: fused positional-embedding add + ln_pre     (and plain LN for ln_post)
# ----------------------------------------------------------------------------

def _pos_ln_kernel(x_ref, pos_ref, g_ref, b_ref, o_ref):
    xf = x_ref[0].astype(jnp.float32) + pos_ref[...].astype(jnp.float32)
    o_ref[0] = _ln_f32(xf, g_ref[...], b_ref[...]).astype(o_ref.dtype)


def pos_layernorm(x, pos, g, b):
    B, S, D = x.shape
    return pl.pallas_call(
        _pos_ln_kernel,
        out_shape=jax.ShapeDtypeStruct((B, S, D), x.dtype),
        grid=(B,),
        in_specs=[
            pl.BlockSpec((1, S, D), lambda i: (i, 0, 0)),
            pl.BlockSpec((S, D), lambda i: (0, 0)),
            pl.BlockSpec((1, D), lambda i: (0, 0)),
            pl.BlockSpec((1, D), lambda i: (0, 0)),
        ],
        out_specs=pl.BlockSpec((1, S, D), lambda i: (i, 0, 0)),
        compiler_params=_PARALLEL,
    )(x, pos, g, b)


def _ln_kernel(x_ref, g_ref, b_ref, o_ref):
    o_ref[0] = _ln_f32(x_ref[0].astype(jnp.float32),
                       g_ref[...], b_ref[...]).astype(o_ref.dtype)


def layernorm(x, g, b):
    B, S, D = x.shape
    return pl.pallas_call(
        _ln_kernel,
        out_shape=jax.ShapeDtypeStruct((B, S, D), x.dtype),
        grid=(B,),
        in_specs=[
            pl.BlockSpec((1, S, D), lambda i: (i, 0, 0)),
            pl.BlockSpec((1, D), lambda i: (0, 0)),
            pl.BlockSpec((1, D), lambda i: (0, 0)),
        ],
        out_specs=pl.BlockSpec((1, S, D), lambda i: (i, 0, 0)),
        compiler_params=_PARALLEL,
    )(x, g, b)


# ----------------------------------------------------------------------------
# Kernel 3: fused attention branch of a ResidualAttentionBlock
#   out = x + out_proj( MHA( ln_1(x) ) )
# Heads are handled inside the kernel with per-head weight stacks (ref[h] indexing),
# so there is no JAX-side (B,S,heads,hd) reshape/transpose traffic.
# ----------------------------------------------------------------------------

def _attn_block_kernel(heads, scale,
                       x_ref, g_ref, b_ref,
                       wq_ref, wk_ref, wv_ref,
                       bq_ref, bk_ref, bv_ref,
                       wo_ref, bo_ref, o_ref):
    x = x_ref[0].astype(jnp.float32)                    # (S, D)
    y = _ln_f32(x, g_ref[...], b_ref[...])              # (S, D)

    acc = jnp.zeros(x.shape, jnp.float32)               # (S, D)
    for h in range(heads):                               # static unroll over heads
        q = (jnp.dot(y, wq_ref[h], preferred_element_type=jnp.float32)
             + bq_ref[h]) * scale                        # (S, hd)
        k = jnp.dot(y, wk_ref[h], preferred_element_type=jnp.float32) + bk_ref[h]
        v = jnp.dot(y, wv_ref[h], preferred_element_type=jnp.float32) + bv_ref[h]
        # scores (S, S): contract head_dim without an explicit transpose
        s = jax.lax.dot_general(q, k, (((1,), (1,)), ((), ())),
                                preferred_element_type=jnp.float32)
        m = jnp.max(s, axis=-1, keepdims=True)
        p = jnp.exp(s - m)
        p = p * pl.reciprocal(jnp.sum(p, axis=-1, keepdims=True), approx=True)
        oh = jnp.dot(p, v, preferred_element_type=jnp.float32)          # (S, hd)
        # out_proj applied per head-slice and accumulated (== concat-heads @ Wo^T)
        acc = acc + jnp.dot(oh, wo_ref[h], preferred_element_type=jnp.float32)

    o_ref[0] = (x + acc + bo_ref[...].astype(jnp.float32)).astype(o_ref.dtype)


def attn_block(x, blk, heads):
    B, S, D = x.shape
    hd = D // heads
    scale = float(hd) ** (-0.5)
    kernel = functools.partial(_attn_block_kernel, heads, scale)
    return pl.pallas_call(
        kernel,
        out_shape=jax.ShapeDtypeStruct((B, S, D), x.dtype),
        grid=(B,),
        in_specs=[
            pl.BlockSpec((1, S, D), lambda i: (i, 0, 0)),        # x (residual)
            pl.BlockSpec((1, D), lambda i: (0, 0)),              # ln1 gamma
            pl.BlockSpec((1, D), lambda i: (0, 0)),              # ln1 beta
            pl.BlockSpec((heads, D, hd), lambda i: (0, 0, 0)),   # Wq per head
            pl.BlockSpec((heads, D, hd), lambda i: (0, 0, 0)),   # Wk per head
            pl.BlockSpec((heads, D, hd), lambda i: (0, 0, 0)),   # Wv per head
            pl.BlockSpec((heads, 1, hd), lambda i: (0, 0, 0)),   # bq per head
            pl.BlockSpec((heads, 1, hd), lambda i: (0, 0, 0)),   # bk per head
            pl.BlockSpec((heads, 1, hd), lambda i: (0, 0, 0)),   # bv per head
            pl.BlockSpec((heads, hd, D), lambda i: (0, 0, 0)),   # Wo per head
            pl.BlockSpec((1, D), lambda i: (0, 0)),              # bo
        ],
        out_specs=pl.BlockSpec((1, S, D), lambda i: (i, 0, 0)),
        compiler_params=_PARALLEL,
    )(x, blk["ln1_g"], blk["ln1_b"],
      blk["wq"], blk["wk"], blk["wv"],
      blk["bq"], blk["bk"], blk["bv"],
      blk["wo"], blk["bo"])


# ----------------------------------------------------------------------------
# Kernel 4: fused MLP branch of a ResidualAttentionBlock
#   out = x + c_proj( QuickGELU( c_fc( ln_2(x) ) ) )
# ----------------------------------------------------------------------------

def _mlp_block_kernel(x_ref, g_ref, b_ref, wfc_ref, bfc_ref, wpr_ref, bpr_ref, o_ref):
    x = x_ref[0].astype(jnp.float32)                    # (S, D)
    y = _ln_f32(x, g_ref[...], b_ref[...])
    h = jnp.dot(y, wfc_ref[...], preferred_element_type=jnp.float32) + bfc_ref[...]
    h = h * jax.nn.sigmoid(1.702 * h)                   # QuickGELU
    out = jnp.dot(h, wpr_ref[...], preferred_element_type=jnp.float32) + bpr_ref[...]
    o_ref[0] = (x + out).astype(o_ref.dtype)


def mlp_block(x, blk):
    B, S, D = x.shape
    Dh = blk["fc_w"].shape[1]
    return pl.pallas_call(
        _mlp_block_kernel,
        out_shape=jax.ShapeDtypeStruct((B, S, D), x.dtype),
        grid=(B,),
        in_specs=[
            pl.BlockSpec((1, S, D), lambda i: (i, 0, 0)),
            pl.BlockSpec((1, D), lambda i: (0, 0)),
            pl.BlockSpec((1, D), lambda i: (0, 0)),
            pl.BlockSpec((D, Dh), lambda i: (0, 0)),
            pl.BlockSpec((1, Dh), lambda i: (0, 0)),
            pl.BlockSpec((Dh, D), lambda i: (0, 0)),
            pl.BlockSpec((1, D), lambda i: (0, 0)),
        ],
        out_specs=pl.BlockSpec((1, S, D), lambda i: (i, 0, 0)),
        compiler_params=_PARALLEL,
    )(x, blk["ln2_g"], blk["ln2_b"],
      blk["fc_w"], blk["fc_b"], blk["proj_w"], blk["proj_b"])


# ----------------------------------------------------------------------------
# Parameter init — weights are stored ONCE in kernel-friendly layout
# (pre-transposed (K,N), per-head stacks), so the forward path does no
# transposes / reshapes of weights.
# ----------------------------------------------------------------------------

def init_params(key, width, layers, heads, patch_size, resolution_after):
    n_blocks = layers - 1          # Transformer builds (layers - 1) ResidualAttentionBlocks
    hd = width // heads
    n_patches = (resolution_after // patch_size) ** 2
    keys = iter(jax.random.split(key, 16 + 16 * max(n_blocks, 1)))
    scale = width ** (-0.5)

    def rnd(shape, s=0.02):
        return (s * jax.random.normal(next(keys), shape)).astype(jnp.float32)

    params = {
        # conv1 (width, 3, p, p) -> already reshaped+transposed to (C*p*p, width)
        "w_pe": rnd((width, 3, patch_size, patch_size)).reshape(
            width, 3 * patch_size * patch_size).T,
        "cls": rnd((1, width), scale),
        "pos": rnd((n_patches + 1, width), scale),
        "ln_pre_g": jnp.ones((1, width), jnp.float32),
        "ln_pre_b": jnp.zeros((1, width), jnp.float32),
        "ln_post_g": jnp.ones((1, width), jnp.float32),
        "ln_post_b": jnp.zeros((1, width), jnp.float32),
        "blocks": [],
    }

    for _ in range(n_blocks):
        # PyTorch layouts, converted once to the kernel layouts below.
        in_w = rnd((3 * width, width))                 # nn.MultiheadAttention in_proj_weight
        in_b = rnd((3 * width,))
        out_w = rnd((width, width))                    # out_proj.weight
        out_b = rnd((width,))
        fc_w = rnd((4 * width, width))                 # mlp.c_fc.weight
        fc_b = rnd((4 * width,))
        pr_w = rnd((width, 4 * width))                 # mlp.c_proj.weight
        pr_b = rnd((width,))

        def split_heads_w(w):        # (D, D) rows=out-features -> (heads, D, hd) transposed
            return w.reshape(heads, hd, width).transpose(0, 2, 1)

        def split_heads_b(b):        # (D,) -> (heads, 1, hd)
            return b.reshape(heads, hd)[:, None, :]

        blk = {
            "ln1_g": jnp.ones((1, width), jnp.float32),
            "ln1_b": jnp.zeros((1, width), jnp.float32),
            "wq": split_heads_w(in_w[:width]),
            "wk": split_heads_w(in_w[width:2 * width]),
            "wv": split_heads_w(in_w[2 * width:]),
            "bq": split_heads_b(in_b[:width]),
            "bk": split_heads_b(in_b[width:2 * width]),
            "bv": split_heads_b(in_b[2 * width:]),
            # out_proj: concat-heads @ Wo^T  ==  sum_h  oh @ Wo^T[h*hd:(h+1)*hd, :]
            "wo": out_w.T.reshape(heads, hd, width),
            "bo": out_b[None, :],
            "ln2_g": jnp.ones((1, width), jnp.float32),
            "ln2_b": jnp.zeros((1, width), jnp.float32),
            "fc_w": fc_w.T,                             # (D, 4D)
            "fc_b": fc_b[None, :],                      # (1, 4D)
            "proj_w": pr_w.T,                           # (4D, D)
            "proj_b": pr_b[None, :],                    # (1, D)
        }
        params["blocks"].append(blk)
    return params


# ----------------------------------------------------------------------------
# Forward
# ----------------------------------------------------------------------------

def visual_transformer_forward(x, params, patch_size, heads):
    """x: (B, 3, H, W) NCHW float32 -> (B, num_patches + 1, width)."""
    B, C, H, W = x.shape
    p = patch_size
    D = params["w_pe"].shape[1]
    nh, nw = H // p, W // p
    N = nh * nw

    # conv1 (stride == kernel, no bias) == patchify + matmul (Pallas kernel)
    patches = x.reshape(B, C, nh, p, nw, p).transpose(0, 2, 4, 1, 3, 5).reshape(B, N, C * p * p)
    emb = patch_embed(patches, params["w_pe"])                         # (B, N, D)

    # prepend class token (tiny concat kept in XLA glue)
    cls = jnp.broadcast_to(params["cls"][None, :, :], (B, 1, D)).astype(x.dtype)
    xs = jnp.concatenate([cls, emb], axis=1)                           # (B, S, D)

    # fused: + positional embedding, ln_pre
    xs = pos_layernorm(xs, params["pos"], params["ln_pre_g"], params["ln_pre_b"])

    # transformer ((layers - 1) blocks); PyTorch permutes to (S,B,D) and back —
    # math is identical in (B,S,D).  2 fused kernels per block.
    for blk in params["blocks"]:
        xs = attn_block(xs, blk, heads)
        xs = mlp_block(xs, blk)

    # ln_post
    xs = layernorm(xs, params["ln_post_g"], params["ln_post_b"])
    # TODO(synk): return_attention=True path (per-head attention maps) is not materialized.
    return xs


# ----------------------------------------------------------------------------
# Demo
# ----------------------------------------------------------------------------

if __name__ == "__main__":
    B = 2
    input_resolution = 16
    patch_size = 4
    width = 32
    layers = 3            # -> 2 residual attention blocks (Transformer uses layers - 1)
    heads = 4
    output_dim = 32       # unused in forward (module has no projection head)
    resolution_after = 16

    key = jax.random.PRNGKey(0)
    pkey, xkey = jax.random.split(key)
    params = init_params(pkey, width, layers, heads, patch_size, resolution_after)
    x = jax.random.normal(xkey, (B, 3, input_resolution, input_resolution), dtype=jnp.float32)

    fwd = jax.jit(functools.partial(visual_transformer_forward,
                                    patch_size=patch_size, heads=heads))
    out = jax.block_until_ready(fwd(x, params))

    expected_seq = (input_resolution // patch_size) ** 2 + 1
    assert out.shape == (B, expected_seq, width), out.shape
    assert jnp.all(jnp.isfinite(out))
    print("KERNEL_OK")
</pallas_src>

<mosaic_0001>
module attributes {stable_mosaic.version = 11 : i64} {
  func.func @_patch_embed_kernel(%arg0: i32, %arg1: memref<1x16x48xf32, #tpu.memory_space<vmem>>, %arg2: memref<48x32xf32, #tpu.memory_space<vmem>>, %arg3: memref<1x16x32xf32, #tpu.memory_space<vmem>>) attributes {dimension_semantics = [#tpu.dimension_semantics<parallel>], iteration_bounds = array<i64: 2>, scalar_prefetch = 0 : i64, scratch_operands = 0 : i64, tpu.core_type = #tpu.core_type<tc>, window_params = [{transform_indices = @transform_0, window_bounds = array<i64: 1, 16, 48>}, {pipeline_mode = #tpu.pipeline_mode<synchronous>, transform_indices = @transform_1, window_bounds = array<i64: 48, 32>}, {transform_indices = @transform_2, window_bounds = array<i64: 1, 16, 32>}]} {
    %c0 = arith.constant 0 : index
    %c0_0 = arith.constant 0 : index
    %c0_1 = arith.constant 0 : index
    %0 = vector.load %arg1[%c0, %c0_0, %c0_1] : memref<1x16x48xf32, #tpu.memory_space<vmem>>, vector<1x16x48xf32>
    %1 = vector.shape_cast %0 : vector<1x16x48xf32> to vector<16x48xf32>
    %c0_2 = arith.constant 0 : index
    %c0_3 = arith.constant 0 : index
    %2 = vector.load %arg2[%c0_2, %c0_3] : memref<48x32xf32, #tpu.memory_space<vmem>>, vector<48x32xf32>
    %cst = arith.constant dense<0.000000e+00> : vector<16x32xf32>
    %3 = tpu.matmul %1, %2, %cst {dimension_numbers = #tpu.dot_dimension_numbers<[1], [0], [0], [1], [0, 0, 1, 1], [], []>} : vector<16x48xf32>, vector<48x32xf32>, vector<16x32xf32> -> vector<16x32xf32>
    %c0_4 = arith.constant 0 : index
    %c0_5 = arith.constant 0 : index
    %c0_6 = arith.constant 0 : index
    %4 = vector.load %arg3[%c0_4, %c0_5, %c0_6] : memref<1x16x32xf32, #tpu.memory_space<vmem>>, vector<1x16x32xf32>
    %5 = vector.shape_cast %4 : vector<1x16x32xf32> to vector<16x32xf32>
    %6 = vector.shape_cast %3 : vector<16x32xf32> to vector<1x16x32xf32>
    tpu.vector_store %arg3[%c0_4, %c0_5, %c0_6], %6 {strides = array<i32>} : memref<1x16x32xf32, #tpu.memory_space<vmem>>, vector<1x16x32xf32>,
    return
  }
  func.func @transform_0(%arg0: i32) -> (i32, i32, i32) {
    %c0_i32 = arith.constant 0 : i32
    %c0_i32_0 = arith.constant 0 : i32
    %c0_i32_1 = arith.constant 0 : i32
    return %arg0, %c0_i32, %c0_i32_0 : i32, i32, i32
  }
  func.func @transform_1(%arg0: i32) -> (i32, i32) {
    %c0_i32 = arith.constant 0 : i32
    %c0_i32_0 = arith.constant 0 : i32
    %c0_i32_1 = arith.constant 0 : i32
    return %c0_i32, %c0_i32_0 : i32, i32
  }
  func.func @transform_2(%arg0: i32) -> (i32, i32, i32) {
    %c0_i32 = arith.constant 0 : i32
    %c0_i32_0 = arith.constant 0 : i32
    %c0_i32_1 = arith.constant 0 : i32
    return %arg0, %c0_i32, %c0_i32_0 : i32, i32, i32
  }
}

module attributes {stable_mosaic.version = 11 : i64} {
  func.func @_attn_block_kernel(%arg0: i32, %arg1: memref<1x17x32xf32, #tpu.memory_space<vmem>>, %arg2: memref<1x32xf32, #tpu.memory_space<vmem>>, %arg3: memref<1x32xf32, #tpu.memory_space<vmem>>, %arg4: memref<4x32x8xf32, #tpu.memory_space<vmem>>, %arg5: memref<4x32x8xf32, #tpu.memory_space<vmem>>, %arg6: memref<4x32x8xf32, #tpu.memory_space<vmem>>, %arg7: memref<4x1x8xf32, #tpu.memory_space<vmem>>, %arg8: memref<4x1x8xf32, #tpu.memory_space<vmem>>, %arg9: memref<4x1x8xf32, #tpu.memory_space<vmem>>, %arg10: memref<4x8x32xf32, #tpu.memory_space<vmem>>, %arg11: memref<1x32xf32, #tpu.memory_space<vmem>>, %arg12: memref<1x17x32xf32, #tpu.memory_space<vmem>>) attributes {dimension_semantics = [#tpu.dimension_semantics<parallel>], iteration_bounds = array<i64: 2>, scalar_prefetch = 0 : i64, scratch_operands = 0 : i64, tpu.core_type = #tpu.core_type<tc>, window_params = [{transform_indices = @transform_0, window_bounds = array<i64: 1, 17, 32>}, {pipeline_mode = #tpu.pipeline_mode<synchronous>, transform_indices = @transform_1, window_bounds = array<i64: 1, 32>}, {pipeline_mode = #tpu.pipeline_mode<synchronous>, transform_indices = @transform_2, window_bounds = array<i64: 1, 32>}, {pipeline_mode = #tpu.pipeline_mode<synchronous>, transform_indices = @transform_3, window_bounds = array<i64: 4, 32, 8>}, {pipeline_mode = #tpu.pipeline_mode<synchronous>, transform_indices = @transform_4, window_bounds = array<i64: 4, 32, 8>}, {pipeline_mode = #tpu.pipeline_mode<synchronous>, transform_indices = @transform_5, window_bounds = array<i64: 4, 32, 8>}, {pipeline_mode = #tpu.pipeline_mode<synchronous>, transform_indices = @transform_6, window_bounds = array<i64: 4, 1, 8>}, {pipeline_mode = #tpu.pipeline_mode<synchronous>, transform_indices = @transform_7, window_bounds = array<i64: 4, 1, 8>}, {pipeline_mode = #tpu.pipeline_mode<synchronous>, transform_indices = @transform_8, window_bounds = array<i64: 4, 1, 8>}, {pipeline_mode = #tpu.pipeline_mode<synchronous>, transform_indices = @transform_9, window_bounds = array<i64: 4, 8, 32>}, {pipeline_mode = #tpu.pipeline_mode<synchronous>, transform_indices = @transform_10, window_bounds = array<i64: 1, 32>}, {transform_indices = @transform_11, window_bounds = array<i64: 1, 17, 32>}]} {
    %c0 = arith.constant 0 : index
    %c0_0 = arith.constant 0 : index
    %c0_1 = arith.constant 0 : index
    %0 = vector.load %arg1[%c0, %c0_0, %c0_1] : memref<1x17x32xf32, #tpu.memory_space<vmem>>, vector<1x17x32xf32>
    %1 = vector.shape_cast %0 : vector<1x17x32xf32> to vector<17x32xf32>
    %c0_2 = arith.constant 0 : index
    %c0_3 = arith.constant 0 : index
    %2 = vector.load %arg2[%c0_2, %c0_3] : memref<1x32xf32, #tpu.memory_space<vmem>>, vector<1x32xf32>
    %c0_4 = arith.constant 0 : index
    %c0_5 = arith.constant 0 : index
    %3 = vector.load %arg3[%c0_4, %c0_5] : memref<1x32xf32, #tpu.memory_space<vmem>>, vector<1x32xf32>
    %cst = arith.constant dense<0.000000e+00> : vector<17xf32>
    %4 = vector.multi_reduction <add>, %1, %cst [1] : vector<17x32xf32> to vector<17xf32>
    %5 = vector.shape_cast %4 : vector<17xf32> to vector<17x1xf32>
    %cst_6 = arith.constant 3.200000e+01 : f32
    %6 = vector.broadcast %cst_6 : f32 to vector<17x1xf32>
    %7 = arith.divf %5, %6 : vector<17x1xf32>
    %8 = vector.broadcast %7 : vector<17x1xf32> to vector<17x32xf32>
    %9 = arith.subf %1, %8 : vector<17x32xf32>
    %10 = vector.broadcast %7 : vector<17x1xf32> to vector<17x32xf32>
    %11 = arith.subf %1, %10 : vector<17x32xf32>
    %12 = arith.mulf %9, %11 : vector<17x32xf32>
    %cst_7 = arith.constant dense<0.000000e+00> : vector<17xf32>
    %13 = vector.multi_reduction <add>, %12, %cst_7 [1] : vector<17x32xf32> to vector<17xf32>
    %14 = vector.shape_cast %13 : vector<17xf32> to vector<17x1xf32>
    %cst_8 = arith.constant 3.200000e+01 : f32
    %15 = vector.broadcast %cst_8 : f32 to vector<17x1xf32>
    %16 = arith.divf %14, %15 : vector<17x1xf32>
    %17 = vector.broadcast %7 : vector<17x1xf32> to vector<17x32xf32>
    %18 = arith.subf %1, %17 : vector<17x32xf32>
    %cst_9 = arith.constant 9.99999974E-6 : f32
    %19 = vector.broadcast %cst_9 : f32 to vector<17x1xf32>
    %20 = arith.addf %16, %19 : vector<17x1xf32>
    %21 = math.rsqrt %20 : vector<17x1xf32>
    %22 = vector.broadcast %21 : vector<17x1xf32> to vector<17x32xf32>
    %23 = arith.mulf %18, %22 : vector<17x32xf32>
    %24 = vector.broadcast %2 : vector<1x32xf32> to vector<17x32xf32>
    %25 = arith.mulf %23, %24 : vector<17x32xf32>
    %26 = vector.broadcast %3 : vector<1x32xf32> to vector<17x32xf32>
    %27 = arith.addf %25, %26 : vector<17x32xf32>
    %cst_10 = arith.constant 0.000000e+00 : f32
    %28 = vector.broadcast %cst_10 : f32 to vector<17x32xf32>
    %c0_11 = arith.constant 0 : index
    %c0_12 = arith.constant 0 : index
    %c0_13 = arith.constant 0 : index
    %29 = vector.load %arg4[%c0_11, %c0_12, %c0_13] : memref<4x32x8xf32, #tpu.memory_space<vmem>>, vector<1x32x8xf32>
    %30 = vector.shape_cast %29 : vector<1x32x8xf32> to vector<32x8xf32>
    %cst_14 = arith.constant dense<0.000000e+00> : vector<17x8xf32>
    %31 = tpu.matmul %27, %30, %cst_14 {dimension_numbers = #tpu.dot_dimension_numbers<[1], [0], [0], [1], [0, 0, 1, 1], [], []>} : vector<17x32xf32>, vector<32x8xf32>, vector<17x8xf32> -> vector<17x8xf32>
    %c0_15 = arith.constant 0 : index
    %c0_16 = arith.constant 0 : index
    %c0_17 = arith.constant 0 : index
    %32 = vector.load %arg7[%c0_15, %c0_16, %c0_17] : memref<4x1x8xf32, #tpu.memory_space<vmem>>, vector<1x1x8xf32>
    %33 = vector.shape_cast %32 : vector<1x1x8xf32> to vector<1x8xf32>
    %34 = vector.broadcast %33 : vector<1x8xf32> to vector<17x8xf32>
    %35 = arith.addf %31, %34 : vector<17x8xf32>
    %cst_18 = arith.constant 0.353553385 : f32
    %36 = vector.broadcast %cst_18 : f32 to vector<17x8xf32>
    %37 = arith.mulf %35, %36 : vector<17x8xf32>
    %c0_19 = arith.constant 0 : index
    %c0_20 = arith.constant 0 : index
    %c0_21 = arith.constant 0 : index
    %38 = vector.load %arg5[%c0_19, %c0_20, %c0_21] : memref<4x32x8xf32, #tpu.memory_space<vmem>>, vector<1x32x8xf32>
    %39 = vector.shape_cast %38 : vector<1x32x8xf32> to vector<32x8xf32>
    %cst_22 = arith.constant dense<0.000000e+00> : vector<17x8xf32>
    %40 = tpu.matmul %27, %39, %cst_22 {dimension_numbers = #tpu.dot_dimension_numbers<[1], [0], [0], [1], [0, 0, 1, 1], [], []>} : vector<17x32xf32>, vector<32x8xf32>, vector<17x8xf32> -> vector<17x8xf32>
    %c0_23 = arith.constant 0 : index
    %c0_24 = arith.constant 0 : index
    %c0_25 = arith.constant 0 : index
    %41 = vector.load %arg8[%c0_23, %c0_24, %c0_25] : memref<4x1x8xf32, #tpu.memory_space<vmem>>, vector<1x1x8xf32>
    %42 = vector.shape_cast %41 : vector<1x1x8xf32> to vector<1x8xf32>
    %43 = vector.broadcast %42 : vector<1x8xf32> to vector<17x8xf32>
    %44 = arith.addf %40, %43 : vector<17x8xf32>
    %c0_26 = arith.constant 0 : index
    %c0_27 = arith.constant 0 : index
    %c0_28 = arith.constant 0 : index
    %45 = vector.load %arg6[%c0_26, %c0_27, %c0_28] : memref<4x32x8xf32, #tpu.memory_space<vmem>>, vector<1x32x8xf32>
    %46 = vector.shape_cast %45 : vector<1x32x8xf32> to vector<32x8xf32>
    %cst_29 = arith.constant dense<0.000000e+00> : vector<17x8xf32>
    %47 = tpu.matmul %27, %46, %cst_29 {dimension_numbers = #tpu.dot_dimension_numbers<[1], [0], [0], [1], [0, 0, 1, 1], [], []>} : vector<17x32xf32>, vector<32x8xf32>, vector<17x8xf32> -> vector<17x8xf32>
    %c0_30 = arith.constant 0 : index
    %c0_31 = arith.constant 0 : index
    %c0_32 = arith.constant 0 : index
    %48 = vector.load %arg9[%c0_30, %c0_31, %c0_32] : memref<4x1x8xf32, #tpu.memory_space<vmem>>, vector<1x1x8xf32>
    %49 = vector.shape_cast %48 : vector<1x1x8xf32> to vector<1x8xf32>
    %50 = vector.broadcast %49 : vector<1x8xf32> to vector<17x8xf32>
    %51 = arith.addf %47, %50 : vector<17x8xf32>
    %cst_33 = arith.constant dense<0.000000e+00> : vector<17x17xf32>
    %52 = tpu.matmul %37, %44, %cst_33 {dimension_numbers = #tpu.dot_dimension_numbers<[1], [1], [0], [0], [0, 0, 1, 0], [], []>} : vector<17x8xf32>, vector<17x8xf32>, vector<17x17xf32> -> vector<17x17xf32>
    %cst_34 = arith.constant dense<0xFF800000> : vector<17xf32>
    %53 = vector.multi_reduction <maximumf>, %52, %cst_34 [1] : vector<17x17xf32> to vector<17xf32>
    %54 = vector.shape_cast %53 : vector<17xf32> to vector<17x1xf32>
    %55 = vector.broadcast %54 : vector<17x1xf32> to vector<17x17xf32>
    %56 = arith.subf %52, %55 : vector<17x17xf32>
    %57 = math.exp %56 : vector<17x17xf32>
    %cst_35 = arith.constant dense<0.000000e+00> : vector<17xf32>
    %58 = vector.multi_reduction <add>, %57, %cst_35 [1] : vector<17x17xf32> to vector<17xf32>
    %59 = vector.shape_cast %58 : vector<17xf32> to vector<17x1xf32>
    %60 = tpu.reciprocal %59 {approx = true} : vector<17x1xf32> -> vector<17x1xf32>
    %61 = vector.broadcast %60 : vector<17x1xf32> to vector<17x17xf32>
    %62 = arith.mulf %57, %61 : vector<17x17xf32>
    %cst_36 = arith.constant dense<0.000000e+00> : vector<17x8xf32>
    %63 = tpu.matmul %62, %51, %cst_36 {dimension_numbers = #tpu.dot_dimension_numbers<[1], [0], [0], [1], [0, 0, 1, 1], [], []>} : vector<17x17xf32>, vector<17x8xf32>, vector<17x8xf32> -> vector<17x8xf32>
    %c0_37 = arith.constant 0 : index
    %c0_38 = arith.constant 0 : index
    %c0_39 = arith.constant 0 : index
    %64 = vector.load %arg10[%c0_37, %c0_38, %c0_39] : memref<4x8x32xf32, #tpu.memory_space<vmem>>, vector<1x8x32xf32>
    %65 = vector.shape_cast %64 : vector<1x8x32xf32> to vector<8x32xf32>
    %cst_40 = arith.constant dense<0.000000e+00> : vector<17x32xf32>
    %66 = tpu.matmul %63, %65, %cst_40 {dimension_numbers = #tpu.dot_dimension_numbers<[1], [0], [0], [1], [0, 0, 1, 1], [], []>} : vector<17x8xf32>, vector<8x32xf32>, vector<17x32xf32> -> vector<17x32xf32>
    %67 = arith.addf %28, %66 : vector<17x32xf32>
    %c1 = arith.constant 1 : index
    %c0_41 = arith.constant 0 : index
    %c0_42 = arith.constant 0 : index
    %68 = vector.load %arg4[%c1, %c0_41, %c0_42] : memref<4x32x8xf32, #tpu.memory_space<vmem>>, vector<1x32x8xf32>
    %69 = vector.shape_cast %68 : vector<1x32x8xf32> to vector<32x8xf32>
    %cst_43 = arith.constant dense<0.000000e+00> : vector<17x8xf32>
    %70 = tpu.matmul %27, %69, %cst_43 {dimension_numbers = #tpu.dot_dimension_numbers<[1], [0], [0], [1], [0, 0, 1, 1], [], []>} : vector<17x32xf32>, vector<32x8xf32>, vector<17x8xf32> -> vector<17x8xf32>
    %c1_44 = arith.constant 1 : index
    %c0_45 = arith.constant 0 : index
    %c0_46 = arith.constant 0 : index
    %71 = vector.load %arg7[%c1_44, %c0_45, %c0_46] : memref<4x1x8xf32, #tpu.memory_space<vmem>>, vector<1x1x8xf32>
    %72 = vector.shape_cast %71 : vector<1x1x8xf32> to vector<1x8xf32>
    %73 = vector.broadcast %72 : vector<1x8xf32> to vector<17x8xf32>
    %74 = arith.addf %70, %73 : vector<17x8xf32>
    %cst_47 = arith.constant 0.353553385 : f32
    %75 = vector.broadcast %cst_47 : f32 to vector<17x8xf32>
    %76 = arith.mulf %74, %75 : vector<17x8xf32>
    %c1_48 = arith.constant 1 : index
    %c0_49 = arith.constant 0 : index
    %c0_50 = arith.constant 0 : index
    %77 = vector.load %arg5[%c1_48, %c0_49, %c0_50] : memref<4x32x8xf32, #tpu.memory_space<vmem>>, vector<1x32x8xf32>
    %78 = vector.shape_cast %77 : vector<1x32x8xf32> to vector<32x8xf32>
    %cst_51 = arith.constant dense<0.000000e+00> : vector<17x8xf32>
    %79 = tpu.matmul %27, %78, %cst_51 {dimension_numbers = #tpu.dot_dimension_numbers<[1], [0], [0], [1], [0, 0, 1, 1], [], []>} : vector<17x32xf32>, vector<32x8xf32>, vector<17x8xf32> -> vector<17x8xf32>
    %c1_52 = arith.constant 1 : index
    %c0_53 = arith.constant 0 : index
    %c0_54 = arith.constant 0 : index
    %80 = vector.load %arg8[%c1_52, %c0_53, %c0_54] : memref<4x1x8xf32, #tpu.memory_space<vmem>>, vector<1x1x8xf32>
    %81 = vector.shape_cast %80 : vector<1x1x8xf32> to vector<1x8xf32>
    %82 = vector.broadcast %81 : vector<1x8xf32> to vector<17x8xf32>
    %83 = arith.addf %79, %82 : vector<17x8xf32>
    %c1_55 = arith.constant 1 : index
    %c0_56 = arith.constant 0 : index
    %c0_57 = arith.constant 0 : index
    %84 = vector.load %arg6[%c1_55, %c0_56, %c0_57] : memref<4x32x8xf32, #tpu.memory_space<vmem>>, vector<1x32x8xf32>
    %85 = vector.shape_cast %84 : vector<1x32x8xf32> to vector<32x8xf32>
    %cst_58 = arith.constant dense<0.000000e+00> : vector<17x8xf32>
    %86 = tpu.matmul %27, %85, %cst_58 {dimension_numbers = #tpu.dot_dimension_numbers<[1], [0], [0], [1], [0, 0, 1, 1], [], []>} : vector<17x32xf32>, vector<32x8xf32>, vector<17x8xf32> -> vector<17x8xf32>
    %c1_59 = arith.constant 1 : index
    %c0_60 = arith.constant 0 : index
    %c0_61 = arith.constant 0 : index
    %87 = vector.load %arg9[%c1_59, %c0_60, %c0_61] : memref<4x1x8xf32, #tpu.memory_space<vmem>>, vector<1x1x8xf32>
    %88 = vector.shape_cast %87 : vector<1x1x8xf32> to vector<1x8xf32>
    %89 = vector.broadcast %88 : vector<1x8xf32> to vector<17x8xf32>
    %90 = arith.addf %86, %89 : vector<17x8xf32>
    %cst_62 = arith.constant dense<0.000000e+00> : vector<17x17xf32>
    %91 = tpu.matmul %76, %83, %cst_62 {dimension_numbers = #tpu.dot_dimension_numbers<[1], [1], [0], [0], [0, 0, 1, 0], [], []>} : vector<17x8xf32>, vector<17x8xf32>, vector<17x17xf32> -> vector<17x17xf32>
    %cst_63 = arith.constant dense<0xFF800000> : vector<17xf32>
    %92 = vector.multi_reduction <maximumf>, %91, %cst_63 [1] : vector<17x17xf32> to vector<17xf32>
    %93 = vector.shape_cast %92 : vector<17xf32> to vector<17x1xf32>
    %94 = vector.broadcast %93 : vector<17x1xf32> to vector<17x17xf32>
    %95 = arith.subf %91, %94 : vector<17x17xf32>
    %96 = math.exp %95 : vector<17x17xf32>
    %cst_64 = arith.constant dense<0.000000e+00> : vector<17xf32>
    %97 = vector.multi_reduction <add>, %96, %cst_64 [1] : vector<17x17xf32> to vector<17xf32>
    %98 = vector.shape_cast %97 : vector<17xf32> to vector<17x1xf32>
    %99 = tpu.reciprocal %98 {approx = true} : vector<17x1xf32> -> vector<17x1xf32>
    %100 = vector.broadcast %99 : vector<17x1xf32> to vector<17x17xf32>
    %101 = arith.mulf %96, %100 : vector<17x17xf32>
    %cst_65 = arith.constant dense<0.000000e+00> : vector<17x8xf32>
    %102 = tpu.matmul %101, %90, %cst_65 {dimension_numbers = #tpu.dot_dimension_numbers<[1], [0], [0], [1], [0, 0, 1, 1], [], []>} : vector<17x17xf32>, vector<17x8xf32>, vector<17x8xf32> -> vector<17x8xf32>
    %c1_66 = arith.constant 1 : index
    %c0_67 = arith.constant 0 : index
    %c0_68 = arith.constant 0 : index
    %103 = vector.load %arg10[%c1_66, %c0_67, %c0_68] : memref<4x8x32xf32, #tpu.memory_space<vmem>>, vector<1x8x32xf32>
    %104 = vector.shape_cast %103 : vector<1x8x32xf32> to vector<8x32xf32>
    %cst_69 = arith.constant dense<0.000000e+00> : vector<17x32xf32>
    %105 = tpu.matmul %102, %104, %cst_69 {dimension_numbers = #tpu.dot_dimension_numbers<[1], [0], [0], [1], [0, 0, 1, 1], [], []>} : vector<17x8xf32>, vector<8x32xf32>, vector<17x32xf32> -> vector<17x32xf32>
    %106 = arith.addf %67, %105 : vector<17x32xf32>
    %c2 = arith.constant 2 : index
    %c0_70 = arith.constant 0 : index
    %c0_71 = arith.constant 0 : index
    %107 = vector.load %arg4[%c2, %c0_70, %c0_71] : memref<4x32x8xf32, #tpu.memory_space<vmem>>, vector<1x32x8xf32>
    %108 = vector.shape_cast %107 : vector<1x32x8xf32> to vector<32x8xf32>
    %cst_72 = arith.constant dense<0.000000e+00> : vector<17x8xf32>
    %109 = tpu.matmul %27, %108, %cst_72 {dimension_numbers = #tpu.dot_dimension_numbers<[1], [0], [0], [1], [0, 0, 1, 1], [], []>} : vector<17x32xf32>, vector<32x8xf32>, vector<17x8xf32> -> vector<17x8xf32>
    %c2_73 = arith.constant 2 : index
    %c0_74 = arith.constant 0 : index
    %c0_75 = arith.constant 0 : index
    %110 = vector.load %arg7[%c2_73, %c0_74, %c0_75] : memref<4x1x8xf32, #tpu.memory_space<vmem>>, vector<1x1x8xf32>
    %111 = vector.shape_cast %110 : vector<1x1x8xf32> to vector<1x8xf32>
    %112 = vector.broadcast %111 : vector<1x8xf32> to vector<17x8xf32>
    %113 = arith.addf %109, %112 : vector<17x8xf32>
    %cst_76 = arith.constant 0.353553385 : f32
    %114 = vector.broadcast %cst_76 : f32 to vector<17x8xf32>
    %115 = arith.mulf %113, %114 : vector<17x8xf32>
    %c2_77 = arith.constant 2 : index
    %c0_78 = arith.constant 0 : index
    %c0_79 = arith.constant 0 : index
    %116 = vector.load %arg5[%c2_77, %c0_78, %c0_79] : memref<4x32x8xf32, #tpu.memory_space<vmem>>, vector<1x32x8xf32>
    %117 = vector.shape_cast %116 : vector<1x32x8xf32> to vector<32x8xf32>
    %cst_80 = arith.constant dense<0.000000e+00> : vector<17x8xf32>
    %118 = tpu.matmul %27, %117, %cst_80 {dimension_numbers = #tpu.dot_dimension_numbers<[1], [0], [0], [1], [0, 0, 1, 1], [], []>} : vector<17x32xf32>, vector<32x8xf32>, vector<17x8xf32> -> vector<17x8xf32>
    %c2_81 = arith.constant 2 : index
    %c0_82 = arith.constant 0 : index
    %c0_83 = arith.constant 0 : index
    %119 = vector.load %arg8[%c2_81, %c0_82, %c0_83] : memref<4x1x8xf32, #tpu.memory_space<vmem>>, vector<1x1x8xf32>
    %120 = vector.shape_cast %119 : vector<1x1x8xf32> to vector<1x8xf32>
    %121 = vector.broadcast %120 : vector<1x8xf32> to vector<17x8xf32>
    %122 = arith.addf %118, %121 : vector<17x8xf32>
    %c2_84 = arith.constant 2 : index
    %c0_85 = arith.constant 0 : index
    %c0_86 = arith.constant 0 : index
    %123 = vector.load %arg6[%c2_84, %c0_85, %c0_86] : memref<4x32x8xf32, #tpu.memory_space<vmem>>, vector<1x32x8xf32>
    %124 = vector.shape_cast %123 : vector<1x32x8xf32> to vector<32x8xf32>
    %cst_87 = arith.constant dense<0.000000e+00> : vector<17x8xf32>
    %125 = tpu.matmul %27, %124, %cst_87 {dimension_numbers = #tpu.dot_dimension_numbers<[1], [0], [0], [1], [0, 0, 1, 1], [], []>} : vector<17x32xf32>, vector<32x8xf32>, vector<17x8xf32> -> vector<17x8xf32>
    %c2_88 = arith.constant 2 : index
    %c0_89 = arith.constant 0 : index
    %c0_90 = arith.constant 0 : index
    %126 = vector.load %arg9[%c2_88, %c0_89, %c0_90] : memref<4x1x8xf32, #tpu.memory_space<vmem>>, vector<1x1x8xf32>
    %127 = vector.shape_cast %126 : vector<1x1x8xf32> to vector<1x8xf32>
    %128 = vector.broadcast %127 : vector<1x8xf32> to vector<17x8xf32>
    %129 = arith.addf %125, %128 : vector<17x8xf32>
    %cst_91 = arith.constant dense<0.000000e+00> : vector<17x17xf32>
    %130 = tpu.matmul %115, %122, %cst_91 {dimension_numbers = #tpu.dot_dimension_numbers<[1], [1], [0], [0], [0, 0, 1, 0], [], []>} : vector<17x8xf32>, vector<17x8xf32>, vector<17x17xf32> -> vector<17x17xf32>
    %cst_92 = arith.constant dense<0xFF800000> : vector<17xf32>
    %131 = vector.multi_reduction <maximumf>, %130, %cst_92 [1] : vector<17x17xf32> to vector<17xf32>
    %132 = vector.shape_cast %131 : vector<17xf32> to vector<17x1xf32>
    %133 = vector.broadcast %132 : vector<17x1xf32> to vector<17x17xf32>
    %134 = arith.subf %130, %133 : vector<17x17xf32>
    %135 = math.exp %134 : vector<17x17xf32>
    %cst_93 = arith.constant dense<0.000000e+00> : vector<17xf32>
    %136 = vector.multi_reduction <add>, %135, %cst_93 [1] : vector<17x17xf32> to vector<17xf32>
    %137 = vector.shape_cast %136 : vector<17xf32> to vector<17x1xf32>
    %138 = tpu.reciprocal %137 {approx = true} : vector<17x1xf32> -> vector<17x1xf32>
    %139 = vector.broadcast %138 : vector<17x1xf32> to vector<17x17xf32>
    %140 = arith.mulf %135, %139 : vector<17x17xf32>
    %cst_94 = arith.constant dense<0.000000e+00> : vector<17x8xf32>
    %141 = tpu.matmul %140, %129, %cst_94 {dimension_numbers = #tpu.dot_dimension_numbers<[1], [0], [0], [1], [0, 0, 1, 1], [], []>} : vector<17x17xf32>, vector<17x8xf32>, vector<17x8xf32> -> vector<17x8xf32>
    %c2_95 = arith.constant 2 : index
    %c0_96 = arith.constant 0 : index
    %c0_97 = arith.constant 0 : index
    %142 = vector.load %arg10[%c2_95, %c0_96, %c0_97] : memref<4x8x32xf32, #tpu.memory_space<vmem>>, vector<1x8x32xf32>
    %143 = vector.shape_cast %142 : vector<1x8x32xf32> to vector<8x32xf32>
    %cst_98 = arith.constant dense<0.000000e+00> : vector<17x32xf32>
    %144 = tpu.matmul %141, %143, %cst_98 {dimension_numbers = #tpu.dot_dimension_numbers<[1], [0], [0], [1], [0, 0, 1, 1], [], []>} : vector<17x8xf32>, vector<8x32xf32>, vector<17x32xf32> -> vector<17x32xf32>
    %145 = arith.addf %106, %144 : vector<17x32xf32>
    %c3 = arith.constant 3 : index
    %c0_99 = arith.constant 0 : index
    %c0_100 = arith.constant 0 : index
    %146 = vector.load %arg4[%c3, %c0_99, %c0_100] : memref<4x32x8xf32, #tpu.memory_space<vmem>>, vector<1x32x8xf32>
    %147 = vector.shape_cast %146 : vector<1x32x8xf32> to vector<32x8xf32>
    %cst_101 = arith.constant dense<0.000000e+00> : vector<17x8xf32>
    %148 = tpu.matmul %27, %147, %cst_101 {dimension_numbers = #tpu.dot_dimension_numbers<[1], [0], [0], [1], [0, 0, 1, 1], [], []>} : vector<17x32xf32>, vector<32x8xf32>, vector<17x8xf32> -> vector<17x8xf32>
    %c3_102 = arith.constant 3 : index
    %c0_103 = arith.constant 0 : index
    %c0_104 = arith.constant 0 : index
    %149 = vector.load %arg7[%c3_102, %c0_103, %c0_104] : memref<4x1x8xf32, #tpu.memory_space<vmem>>, vector<1x1x8xf32>
    %150 = vector.shape_cast %149 : vector<1x1x8xf32> to vector<1x8xf32>
    %151 = vector.broadcast %150 : vector<1x8xf32> to vector<17x8xf32>
    %152 = arith.addf %148, %151 : vector<17x8xf32>
    %cst_105 = arith.constant 0.353553385 : f32
    %153 = vector.broadcast %cst_105 : f32 to vector<17x8xf32>
    %154 = arith.mulf %152, %153 : vector<17x8xf32>
    %c3_106 = arith.constant 3 : index
    %c0_107 = arith.constant 0 : index
    %c0_108 = arith.constant 0 : index
    %155 = vector.load %arg5[%c3_106, %c0_107, %c0_108] : memref<4x32x8xf32, #tpu.memory_space<vmem>>, vector<1x32x8xf32>
    %156 = vector.shape_cast %155 : vector<1x32x8xf32> to vector<32x8xf32>
    %cst_109 = arith.constant dense<0.000000e+00> : vector<17x8xf32>
    %157 = tpu.matmul %27, %156, %cst_109 {dimension_numbers = #tpu.dot_dimension_numbers<[1], [0], [0], [1], [0, 0, 1, 1], [], []>} : vector<17x32xf32>, vector<32x8xf32>, vector<17x8xf32> -> vector<17x8xf32>
    %c3_110 = arith.constant 3 : index
    %c0_111 = arith.constant 0 : index
    %c0_112 = arith.constant 0 : index
    %158 = vector.load %arg8[%c3_110, %c0_111, %c0_112] : memref<4x1x8xf32, #tpu.memory_space<vmem>>, vector<1x1x8xf32>
    %159 = vector.shape_cast %158 : vector<1x1x8xf32> to vector<1x8xf32>
    %160 = vector.broadcast %159 : vector<1x8xf32> to vector<17x8xf32>
    %161 = arith.addf %157, %160 : vector<17x8xf32>
    %c3_113 = arith.constant 3 : index
    %c0_114 = arith.constant 0 : index
    %c0_115 = arith.constant 0 : index
    %162 = vector.load %arg6[%c3_113, %c0_114, %c0_115] : memref<4x32x8xf32, #tpu.memory_space<vmem>>, vector<1x32x8xf32>
    %163 = vector.shape_cast %162 : vector<1x32x8xf32> to vector<32x8xf32>
    %cst_116 = arith.constant dense<0.000000e+00> : vector<17x8xf32>
    %164 = tpu.matmul %27, %163, %cst_116 {dimension_numbers = #tpu.dot_dimension_numbers<[1], [0], [0], [1], [0, 0, 1, 1], [], []>} : vector<17x32xf32>, vector<32x8xf32>, vector<17x8xf32> -> vector<17x8xf32>
    %c3_117 = arith.constant 3 : index
    %c0_118 = arith.constant 0 : index
    %c0_119 = arith.constant 0 : index
    %165 = vector.load %arg9[%c3_117, %c0_118, %c0_119] : memref<4x1x8xf32, #tpu.memory_space<vmem>>, vector<1x1x8xf32>
    %166 = vector.shape_cast %165 : vector<1x1x8xf32> to vector<1x8xf32>
    %167 = vector.broadcast %166 : vector<1x8xf32> to vector<17x8xf32>
    %168 = arith.addf %164, %167 : vector<17x8xf32>
    %cst_120 = arith.constant dense<0.000000e+00> : vector<17x17xf32>
    %169 = tpu.matmul %154, %161, %cst_120 {dimension_numbers = #tpu.dot_dimension_numbers<[1], [1], [0], [0], [0, 0, 1, 0], [], []>} : vector<17x8xf32>, vector<17x8xf32>, vector<17x17xf32> -> vector<17x17xf32>
    %cst_121 = arith.constant dense<0xFF800000> : vector<17xf32>
    %170 = vector.multi_reduction <maximumf>, %169, %cst_121 [1] : vector<17x17xf32> to vector<17xf32>
    %171 = vector.shape_cast %170 : vector<17xf32> to vector<17x1xf32>
    %172 = vector.broadcast %171 : vector<17x1xf32> to vector<17x17xf32>
    %173 = arith.subf %169, %172 : vector<17x17xf32>
    %174 = math.exp %173 : vector<17x17xf32>
    %cst_122 = arith.constant dense<0.000000e+00> : vector<17xf32>
    %175 = vector.multi_reduction <add>, %174, %cst_122 [1] : vector<17x17xf32> to vector<17xf32>
    %176 = vector.shape_cast %175 : vector<17xf32> to vector<17x1xf32>
    %177 = tpu.reciprocal %176 {approx = true} : vector<17x1xf32> -> vector<17x1xf32>
    %178 = vector.broadcast %177 : vector<17x1xf32> to vector<17x17xf32>
    %179 = arith.mulf %174, %178 : vector<17x17xf32>
    %cst_123 = arith.constant dense<0.000000e+00> : vector<17x8xf32>
    %180 = tpu.matmul %179, %168, %cst_123 {dimension_numbers = #tpu.dot_dimension_numbers<[1], [0], [0], [1], [0, 0, 1, 1], [], []>} : vector<17x17xf32>, vector<17x8xf32>, vector<17x8xf32> -> vector<17x8xf32>
    %c3_124 = arith.constant 3 : index
    %c0_125 = arith.constant 0 : index
    %c0_126 = arith.constant 0 : index
    %181 = vector.load %arg10[%c3_124, %c0_125, %c0_126] : memref<4x8x32xf32, #tpu.memory_space<vmem>>, vector<1x8x32xf32>
    %182 = vector.shape_cast %181 : vector<1x8x32xf32> to vector<8x32xf32>
    %cst_127 = arith.constant dense<0.000000e+00> : vector<17x32xf32>
    %183 = tpu.matmul %180, %182, %cst_127 {dimension_numbers = #tpu.dot_dimension_numbers<[1], [0], [0], [1], [0, 0, 1, 1], [], []>} : vector<17x8xf32>, vector<8x32xf32>, vector<17x32xf32> -> vector<17x32xf32>
    %184 = arith.addf %145, %183 : vector<17x32xf32>
    %185 = arith.addf %1, %184 : vector<17x32xf32>
    %c0_128 = arith.constant 0 : index
    %c0_129 = arith.constant 0 : index
    %186 = vector.load %arg11[%c0_128, %c0_129] : memref<1x32xf32, #tpu.memory_space<vmem>>, vector<1x32xf32>
    %187 = vector.broadcast %186 : vector<1x32xf32> to vector<17x32xf32>
    %188 = arith.addf %185, %187 : vector<17x32xf32>
    %c0_130 = arith.constant 0 : index
    %c0_131 = arith.constant 0 : index
    %c0_132 = arith.constant 0 : index
    %189 = vector.load %arg12[%c0_130, %c0_131, %c0_132] : memref<1x17x32xf32, #tpu.memory_space<vmem>>, vector<1x17x32xf32>
    %190 = vector.shape_cast %189 : vector<1x17x32xf32> to vector<17x32xf32>
    %191 = vector.shape_cast %188 : vector<17x32xf32> to vector<1x17x32xf32>
    tpu.vector_store %arg12[%c0_130, %c0_131, %c0_132], %191 {strides = array<i32>} : memref<1x17x32xf32, #tpu.memory_space<vmem>>, vector<1x17x32xf32>,
    return
  }
  func.func @transform_0(%arg0: i32) -> (i32, i32, i32) {
    %c0_i32 = arith.constant 0 : i32
    %c0_i32_0 = arith.constant 0 : i32
    %c0_i32_1 = arith.constant 0 : i32
    return %arg0, %c0_i32, %c0_i32_0 : i32, i32, i32
  }
  func.func @transform_1(%arg0: i32) -> (i32, i32) {
    %c0_i32 = arith.constant 0 : i32
    %c0_i32_0 = arith.constant 0 : i32
    %c0_i32_1 = arith.constant 0 : i32
    return %c0_i32, %c0_i32_0 : i32, i32
  }
  func.func @transform_2(%arg0: i32) -> (i32, i32) {
    %c0_i32 = arith.constant 0 : i32
    %c0_i32_0 = arith.constant 0 : i32
    %c0_i32_1 = arith.constant 0 : i32
    return %c0_i32, %c0_i32_0 : i32, i32
  }
  func.func @transform_3(%arg0: i32) -> (i32, i32, i32) {
    %c0_i32 = arith.constant 0 : i32
    %c0_i32_0 = arith.constant 0 : i32
    %c0_i32_1 = arith.constant 0 : i32
    %c0_i32_2 = arith.constant 0 : i32
    return %c0_i32, %c0_i32_0, %c0_i32_1 : i32, i32, i32
  }
  func.func @transform_4(%arg0: i32) -> (i32, i32, i32) {
    %c0_i32 = arith.constant 0 : i32
    %c0_i32_0 = arith.constant 0 : i32
    %c0_i32_1 = arith.constant 0 : i32
    %c0_i32_2 = arith.constant 0 : i32
    return %c0_i32, %c0_i32_0, %c0_i32_1 : i32, i32, i32
  }
  func.func @transform_5(%arg0: i32) -> (i32, i32, i32) {
    %c0_i32 = arith.constant 0 : i32
    %c0_i32_0 = arith.constant 0 : i32
    %c0_i32_1 = arith.constant 0 : i32
    %c0_i32_2 = arith.constant 0 : i32
    return %c0_i32, %c0_i32_0, %c0_i32_1 : i32, i32, i32
  }
  func.func @transform_6(%arg0: i32) -> (i32, i32, i32) {
    %c0_i32 = arith.constant 0 : i32
    %c0_i32_0 = arith.constant 0 : i32
    %c0_i32_1 = arith.constant 0 : i32
    %c0_i32_2 = arith.constant 0 : i32
    return %c0_i32, %c0_i32_0, %c0_i32_1 : i32, i32, i32
  }
  func.func @transform_7(%arg0: i32) -> (i32, i32, i32) {
    %c0_i32 = arith.constant 0 : i32
    %c0_i32_0 = arith.constant 0 : i32
    %c0_i32_1 = arith.constant 0 : i32
    %c0_i32_2 = arith.constant 0 : i32
    return %c0_i32, %c0_i32_0, %c0_i32_1 : i32, i32, i32
  }
  func.func @transform_8(%arg0: i32) -> (i32, i32, i32) {
    %c0_i32 = arith.constant 0 : i32
    %c0_i32_0 = arith.constant 0 : i32
    %c0_i32_1 = arith.constant 0 : i32
    %c0_i32_2 = arith.constant 0 : i32
    return %c0_i32, %c0_i32_0, %c0_i32_1 : i32, i32, i32
  }
  func.func @transform_9(%arg0: i32) -> (i32, i32, i32) {
    %c0_i32 = arith.constant 0 : i32
    %c0_i32_0 = arith.constant 0 : i32
    %c0_i32_1 = arith.constant 0 : i32
    %c0_i32_2 = arith.constant 0 : i32
    return %c0_i32, %c0_i32_0, %c0_i32_1 : i32, i32, i32
  }
  func.func @transform_10(%arg0: i32) -> (i32, i32) {
    %c0_i32 = arith.constant 0 : i32
    %c0_i32_0 = arith.constant 0 : i32
    %c0_i32_1 = arith.constant 0 : i32
    return %c0_i32, %c0_i32_0 : i32, i32
  }
  func.func @transform_11(%arg0: i32) -> (i32, i32, i32) {
    %c0_i32 = arith.constant 0 : i32
    %c0_i32_0 = arith.constant 0 : i32
    %c0_i32_1 = arith.constant 0 : i32
    return %arg0, %c0_i32, %c0_i32_0 : i32, i32, i32
  }
}

module attributes {stable_mosaic.version = 11 : i64} {
  func.func @_mlp_block_kernel(%arg0: i32, %arg1: memref<1x17x32xf32, #tpu.memory_space<vmem>>, %arg2: memref<1x32xf32, #tpu.memory_space<vmem>>, %arg3: memref<1x32xf32, #tpu.memory_space<vmem>>, %arg4: memref<32x128xf32, #tpu.memory_space<vmem>>, %arg5: memref<1x128xf32, #tpu.memory_space<vmem>>, %arg6: memref<128x32xf32, #tpu.memory_space<vmem>>, %arg7: memref<1x32xf32, #tpu.memory_space<vmem>>, %arg8: memref<1x17x32xf32, #tpu.memory_space<vmem>>) attributes {dimension_semantics = [#tpu.dimension_semantics<parallel>], iteration_bounds = array<i64: 2>, scalar_prefetch = 0 : i64, scratch_operands = 0 : i64, tpu.core_type = #tpu.core_type<tc>, window_params = [{transform_indices = @transform_0, window_bounds = array<i64: 1, 17, 32>}, {pipeline_mode = #tpu.pipeline_mode<synchronous>, transform_indices = @transform_1, window_bounds = array<i64: 1, 32>}, {pipeline_mode = #tpu.pipeline_mode<synchronous>, transform_indices = @transform_2, window_bounds = array<i64: 1, 32>}, {pipeline_mode = #tpu.pipeline_mode<synchronous>, transform_indices = @transform_3, window_bounds = array<i64: 32, 128>}, {pipeline_mode = #tpu.pipeline_mode<synchronous>, transform_indices = @transform_4, window_bounds = array<i64: 1, 128>}, {pipeline_mode = #tpu.pipeline_mode<synchronous>, transform_indices = @transform_5, window_bounds = array<i64: 128, 32>}, {pipeline_mode = #tpu.pipeline_mode<synchronous>, transform_indices = @transform_6, window_bounds = array<i64: 1, 32>}, {transform_indices = @transform_7, window_bounds = array<i64: 1, 17, 32>}]} {
    %c0 = arith.constant 0 : index
    %c0_0 = arith.constant 0 : index
    %c0_1 = arith.constant 0 : index
    %0 = vector.load %arg1[%c0, %c0_0, %c0_1] : memref<1x17x32xf32, #tpu.memory_space<vmem>>, vector<1x17x32xf32>
    %1 = vector.shape_cast %0 : vector<1x17x32xf32> to vector<17x32xf32>
    %c0_2 = arith.constant 0 : index
    %c0_3 = arith.constant 0 : index
    %2 = vector.load %arg2[%c0_2, %c0_3] : memref<1x32xf32, #tpu.memory_space<vmem>>, vector<1x32xf32>
    %c0_4 = arith.constant 0 : index
    %c0_5 = arith.constant 0 : index
    %3 = vector.load %arg3[%c0_4, %c0_5] : memref<1x32xf32, #tpu.memory_space<vmem>>, vector<1x32xf32>
    %cst = arith.constant dense<0.000000e+00> : vector<17xf32>
    %4 = vector.multi_reduction <add>, %1, %cst [1] : vector<17x32xf32> to vector<17xf32>
    %5 = vector.shape_cast %4 : vector<17xf32> to vector<17x1xf32>
    %cst_6 = arith.constant 3.200000e+01 : f32
    %6 = vector.broadcast %cst_6 : f32 to vector<17x1xf32>
    %7 = arith.divf %5, %6 : vector<17x1xf32>
    %8 = vector.broadcast %7 : vector<17x1xf32> to vector<17x32xf32>
    %9 = arith.subf %1, %8 : vector<17x32xf32>
    %10 = vector.broadcast %7 : vector<17x1xf32> to vector<17x32xf32>
    %11 = arith.subf %1, %10 : vector<17x32xf32>
    %12 = arith.mulf %9, %11 : vector<17x32xf32>
    %cst_7 = arith.constant dense<0.000000e+00> : vector<17xf32>
    %13 = vector.multi_reduction <add>, %12, %cst_7 [1] : vector<17x32xf32> to vector<17xf32>
    %14 = vector.shape_cast %13 : vector<17xf32> to vector<17x1xf32>
    %cst_8 = arith.constant 3.200000e+01 : f32
    %15 = vector.broadcast %cst_8 : f32 to vector<17x1xf32>
    %16 = arith.divf %14, %15 : vector<17x1xf32>
    %17 = vector.broadcast %7 : vector<17x1xf32> to vector<17x32xf32>
    %18 = arith.subf %1, %17 : vector<17x32xf32>
    %cst_9 = arith.constant 9.99999974E-6 : f32
    %19 = vector.broadcast %cst_9 : f32 to vector<17x1xf32>
    %20 = arith.addf %16, %19 : vector<17x1xf32>
    %21 = math.rsqrt %20 : vector<17x1xf32>
    %22 = vector.broadcast %21 : vector<17x1xf32> to vector<17x32xf32>
    %23 = arith.mulf %18, %22 : vector<17x32xf32>
    %24 = vector.broadcast %2 : vector<1x32xf32> to vector<17x32xf32>
    %25 = arith.mulf %23, %24 : vector<17x32xf32>
    %26 = vector.broadcast %3 : vector<1x32xf32> to vector<17x32xf32>
    %27 = arith.addf %25, %26 : vector<17x32xf32>
    %c0_10 = arith.constant 0 : index
    %c0_11 = arith.constant 0 : index
    %28 = vector.load %arg4[%c0_10, %c0_11] : memref<32x128xf32, #tpu.memory_space<vmem>>, vector<32x128xf32>
    %cst_12 = arith.constant dense<0.000000e+00> : vector<17x128xf32>
    %29 = tpu.matmul %27, %28, %cst_12 {dimension_numbers = #tpu.dot_dimension_numbers<[1], [0], [0], [1], [0, 0, 1, 1], [], []>} : vector<17x32xf32>, vector<32x128xf32>, vector<17x128xf32> -> vector<17x128xf32>
    %c0_13 = arith.constant 0 : index
    %c0_14 = arith.constant 0 : index
    %30 = vector.load %arg5[%c0_13, %c0_14] : memref<1x128xf32, #tpu.memory_space<vmem>>, vector<1x128xf32>
    %31 = vector.broadcast %30 : vector<1x128xf32> to vector<17x128xf32>
    %32 = arith.addf %29, %31 : vector<17x128xf32>
    %cst_15 = arith.constant 1.702000e+00 : f32
    %33 = vector.broadcast %cst_15 : f32 to vector<17x128xf32>
    %34 = arith.mulf %33, %32 : vector<17x128xf32>
    %35 = arith.negf %34 : vector<17x128xf32>
    %36 = math.exp %35 : vector<17x128xf32>
    %cst_16 = arith.constant 1.000000e+00 : f32
    %37 = vector.broadcast %cst_16 : f32 to vector<17x128xf32>
    %38 = arith.addf %37, %36 : vector<17x128xf32>
    %39 = arith.divf %37, %38 : vector<17x128xf32>
    %40 = arith.mulf %32, %39 : vector<17x128xf32>
    %c0_17 = arith.constant 0 : index
    %c0_18 = arith.constant 0 : index
    %41 = vector.load %arg6[%c0_17, %c0_18] : memref<128x32xf32, #tpu.memory_space<vmem>>, vector<128x32xf32>
    %cst_19 = arith.constant dense<0.000000e+00> : vector<17x32xf32>
    %42 = tpu.matmul %40, %41, %cst_19 {dimension_numbers = #tpu.dot_dimension_numbers<[1], [0], [0], [1], [0, 0, 1, 1], [], []>} : vector<17x128xf32>, vector<128x32xf32>, vector<17x32xf32> -> vector<17x32xf32>
    %c0_20 = arith.constant 0 : index
    %c0_21 = arith.constant 0 : index
    %43 = vector.load %arg7[%c0_20, %c0_21] : memref<1x32xf32, #tpu.memory_space<vmem>>, vector<1x32xf32>
    %44 = vector.broadcast %43 : vector<1x32xf32> to vector<17x32xf32>
    %45 = arith.addf %42, %44 : vector<17x32xf32>
    %46 = arith.addf %1, %45 : vector<17x32xf32>
    %c0_22 = arith.constant 0 : index
    %c0_23 = arith.constant 0 : index
    %c0_24 = arith.constant 0 : index
    %47 = vector.load %arg8[%c0_22, %c0_23, %c0_24] : memref<1x17x32xf32, #tpu.memory_space<vmem>>, vector<1x17x32xf32>
    %48 = vector.shape_cast %47 : vector<1x17x32xf32> to vector<17x32xf32>
    %49 = vector.shape_cast %46 : vector<17x32xf32> to vector<1x17x32xf32>
    tpu.vector_store %arg8[%c0_22, %c0_23, %c0_24], %49 {strides = array<i32>} : memref<1x17x32xf32, #tpu.memory_space<vmem>>, vector<1x17x32xf32>,
    return
  }
  func.func @transform_0(%arg0: i32) -> (i32, i32, i32) {
    %c0_i32 = arith.constant 0 : i32
    %c0_i32_0 = arith.constant 0 : i32
    %c0_i32_1 = arith.constant 0 : i32
    return %arg0, %c0_i32, %c0_i32_0 : i32, i32, i32
  }
  func.func @transform_1(%arg0: i32) -> (i32, i32) {
    %c0_i32 = arith.constant 0 : i32
    %c0_i32_0 = arith.constant 0 : i32
    %c0_i32_1 = arith.constant 0 : i32
    return %c0_i32, %c0_i32_0 : i32, i32
  }
  func.func @transform_2(%arg0: i32) -> (i32, i32) {
    %c0_i32 = arith.constant 0 : i32
    %c0_i32_0 = arith.constant 0 : i32
    %c0_i32_1 = arith.constant 0 : i32
    return %c0_i32, %c0_i32_0 : i32, i32
  }
  func.func @transform_3(%arg0: i32) -> (i32, i32) {
    %c0_i32 = arith.constant 0 : i32
    %c0_i32_0 = arith.constant 0 : i32
    %c0_i32_1 = arith.constant 0 : i32
    return %c0_i32, %c0_i32_0 : i32, i32
  }
  func.func @transform_4(%arg0: i32) -> (i32, i32) {
    %c0_i32 = arith.constant 0 : i32
    %c0_i32_0 = arith.constant 0 : i32
    %c0_i32_1 = arith.constant 0 : i32
    return %c0_i32, %c0_i32_0 : i32, i32
  }
  func.func @transform_5(%arg0: i32) -> (i32, i32) {
    %c0_i32 = arith.constant 0 : i32
    %c0_i32_0 = arith.constant 0 : i32
    %c0_i32_1 = arith.constant 0 : i32
    return %c0_i32, %c0_i32_0 : i32, i32
  }
  func.func @transform_6(%arg0: i32) -> (i32, i32) {
    %c0_i32 = arith.constant 0 : i32
    %c0_i32_0 = arith.constant 0 : i32
    %c0_i32_1 = arith.constant 0 : i32
    return %c0_i32, %c0_i32_0 : i32, i32
  }
  func.func @transform_7(%arg0: i32) -> (i32, i32, i32) {
    %c0_i32 = arith.constant 0 : i32
    %c0_i32_0 = arith.constant 0 : i32
    %c0_i32_1 = arith.constant 0 : i32
    return %arg0, %c0_i32, %c0_i32_0 : i32, i32, i32
  }
}

module attributes {stable_mosaic.version = 11 : i64} {
  func.func @_pos_ln_kernel(%arg0: i32, %arg1: memref<1x17x32xf32, #tpu.memory_space<vmem>>, %arg2: memref<17x32xf32, #tpu.memory_space<vmem>>, %arg3: memref<1x32xf32, #tpu.memory_space<vmem>>, %arg4: memref<1x32xf32, #tpu.memory_space<vmem>>, %arg5: memref<1x17x32xf32, #tpu.memory_space<vmem>>) attributes {dimension_semantics = [#tpu.dimension_semantics<parallel>], iteration_bounds = array<i64: 2>, scalar_prefetch = 0 : i64, scratch_operands = 0 : i64, tpu.core_type = #tpu.core_type<tc>, window_params = [{transform_indices = @transform_0, window_bounds = array<i64: 1, 17, 32>}, {pipeline_mode = #tpu.pipeline_mode<synchronous>, transform_indices = @transform_1, window_bounds = array<i64: 17, 32>}, {pipeline_mode = #tpu.pipeline_mode<synchronous>, transform_indices = @transform_2, window_bounds = array<i64: 1, 32>}, {pipeline_mode = #tpu.pipeline_mode<synchronous>, transform_indices = @transform_3, window_bounds = array<i64: 1, 32>}, {transform_indices = @transform_4, window_bounds = array<i64: 1, 17, 32>}]} {
    %c0 = arith.constant 0 : index
    %c0_0 = arith.constant 0 : index
    %c0_1 = arith.constant 0 : index
    %0 = vector.load %arg1[%c0, %c0_0, %c0_1] : memref<1x17x32xf32, #tpu.memory_space<vmem>>, vector<1x17x32xf32>
    %1 = vector.shape_cast %0 : vector<1x17x32xf32> to vector<17x32xf32>
    %c0_2 = arith.constant 0 : index
    %c0_3 = arith.constant 0 : index
    %2 = vector.load %arg2[%c0_2, %c0_3] : memref<17x32xf32, #tpu.memory_space<vmem>>, vector<17x32xf32>
    %3 = arith.addf %1, %2 : vector<17x32xf32>
    %c0_4 = arith.constant 0 : index
    %c0_5 = arith.constant 0 : index
    %4 = vector.load %arg3[%c0_4, %c0_5] : memref<1x32xf32, #tpu.memory_space<vmem>>, vector<1x32xf32>
    %c0_6 = arith.constant 0 : index
    %c0_7 = arith.constant 0 : index
    %5 = vector.load %arg4[%c0_6, %c0_7] : memref<1x32xf32, #tpu.memory_space<vmem>>, vector<1x32xf32>
    %cst = arith.constant dense<0.000000e+00> : vector<17xf32>
    %6 = vector.multi_reduction <add>, %3, %cst [1] : vector<17x32xf32> to vector<17xf32>
    %7 = vector.shape_cast %6 : vector<17xf32> to vector<17x1xf32>
    %cst_8 = arith.constant 3.200000e+01 : f32
    %8 = vector.broadcast %cst_8 : f32 to vector<17x1xf32>
    %9 = arith.divf %7, %8 : vector<17x1xf32>
    %10 = vector.broadcast %9 : vector<17x1xf32> to vector<17x32xf32>
    %11 = arith.subf %3, %10 : vector<17x32xf32>
    %12 = vector.broadcast %9 : vector<17x1xf32> to vector<17x32xf32>
    %13 = arith.subf %3, %12 : vector<17x32xf32>
    %14 = arith.mulf %11, %13 : vector<17x32xf32>
    %cst_9 = arith.constant dense<0.000000e+00> : vector<17xf32>
    %15 = vector.multi_reduction <add>, %14, %cst_9 [1] : vector<17x32xf32> to vector<17xf32>
    %16 = vector.shape_cast %15 : vector<17xf32> to vector<17x1xf32>
    %cst_10 = arith.constant 3.200000e+01 : f32
    %17 = vector.broadcast %cst_10 : f32 to vector<17x1xf32>
    %18 = arith.divf %16, %17 : vector<17x1xf32>
    %19 = vector.broadcast %9 : vector<17x1xf32> to vector<17x32xf32>
    %20 = arith.subf %3, %19 : vector<17x32xf32>
    %cst_11 = arith.constant 9.99999974E-6 : f32
    %21 = vector.broadcast %cst_11 : f32 to vector<17x1xf32>
    %22 = arith.addf %18, %21 : vector<17x1xf32>
    %23 = math.rsqrt %22 : vector<17x1xf32>
    %24 = vector.broadcast %23 : vector<17x1xf32> to vector<17x32xf32>
    %25 = arith.mulf %20, %24 : vector<17x32xf32>
    %26 = vector.broadcast %4 : vector<1x32xf32> to vector<17x32xf32>
    %27 = arith.mulf %25, %26 : vector<17x32xf32>
    %28 = vector.broadcast %5 : vector<1x32xf32> to vector<17x32xf32>
    %29 = arith.addf %27, %28 : vector<17x32xf32>
    %c0_12 = arith.constant 0 : index
    %c0_13 = arith.constant 0 : index
    %c0_14 = arith.constant 0 : index
    %30 = vector.load %arg5[%c0_12, %c0_13, %c0_14] : memref<1x17x32xf32, #tpu.memory_space<vmem>>, vector<1x17x32xf32>
    %31 = vector.shape_cast %30 : vector<1x17x32xf32> to vector<17x32xf32>
    %32 = vector.shape_cast %29 : vector<17x32xf32> to vector<1x17x32xf32>
    tpu.vector_store %arg5[%c0_12, %c0_13, %c0_14], %32 {strides = array<i32>} : memref<1x17x32xf32, #tpu.memory_space<vmem>>, vector<1x17x32xf32>,
    return
  }
  func.func @transform_0(%arg0: i32) -> (i32, i32, i32) {
    %c0_i32 = arith.constant 0 : i32
    %c0_i32_0 = arith.constant 0 : i32
    %c0_i32_1 = arith.constant 0 : i32
    return %arg0, %c0_i32, %c0_i32_0 : i32, i32, i32
  }
  func.func @transform_1(%arg0: i32) -> (i32, i32) {
    %c0_i32 = arith.constant 0 : i32
    %c0_i32_0 = arith.constant 0 : i32
    %c0_i32_1 = arith.constant 0 : i32
    return %c0_i32, %c0_i32_0 : i32, i32
  }
  func.func @transform_2(%arg0: i32) -> (i32, i32) {
    %c0_i32 = arith.constant 0 : i32
    %c0_i32_0 = arith.constant 0 : i32
    %c0_i32_1 = arith.constant 0 : i32
    return %c0_i32, %c0_i32_0 : i32, i32
  }
  func.func @transform_3(%arg0: i32) -> (i32, i32) {
    %c0_i32 = arith.constant 0 : i32
    %c0_i32_0 = arith.constant 0 : i32
    %c0_i32_1 = arith.constant 0 : i32
    return %c0_i32, %c0_i32_0 : i32, i32
  }
  func.func @transform_4(%arg0: i32) -> (i32, i32, i32) {
    %c0_i32 = arith.constant 0 : i32
    %c0_i32_0 = arith.constant 0 : i32
    %c0_i32_1 = arith.constant 0 : i32
    return %arg0, %c0_i32, %c0_i32_0 : i32, i32, i32
  }
}

module attributes {stable_mosaic.version = 11 : i64} {
  func.func @_ln_kernel(%arg0: i32, %arg1: memref<1x17x32xf32, #tpu.memory_space<vmem>>, %arg2: memref<1x32xf32, #tpu.memory_space<vmem>>, %arg3: memref<1x32xf32, #tpu.memory_space<vmem>>, %arg4: memref<1x17x32xf32, #tpu.memory_space<vmem>>) attributes {dimension_semantics = [#tpu.dimension_semantics<parallel>], iteration_bounds = array<i64: 2>, scalar_prefetch = 0 : i64, scratch_operands = 0 : i64, tpu.core_type = #tpu.core_type<tc>, window_params = [{transform_indices = @transform_0, window_bounds = array<i64: 1, 17, 32>}, {pipeline_mode = #tpu.pipeline_mode<synchronous>, transform_indices = @transform_1, window_bounds = array<i64: 1, 32>}, {pipeline_mode = #tpu.pipeline_mode<synchronous>, transform_indices = @transform_2, window_bounds = array<i64: 1, 32>}, {transform_indices = @transform_3, window_bounds = array<i64: 1, 17, 32>}]} {
    %c0 = arith.constant 0 : index
    %c0_0 = arith.constant 0 : index
    %c0_1 = arith.constant 0 : index
    %0 = vector.load %arg1[%c0, %c0_0, %c0_1] : memref<1x17x32xf32, #tpu.memory_space<vmem>>, vector<1x17x32xf32>
    %1 = vector.shape_cast %0 : vector<1x17x32xf32> to vector<17x32xf32>
    %c0_2 = arith.constant 0 : index
    %c0_3 = arith.constant 0 : index
    %2 = vector.load %arg2[%c0_2, %c0_3] : memref<1x32xf32, #tpu.memory_space<vmem>>, vector<1x32xf32>
    %c0_4 = arith.constant 0 : index
    %c0_5 = arith.constant 0 : index
    %3 = vector.load %arg3[%c0_4, %c0_5] : memref<1x32xf32, #tpu.memory_space<vmem>>, vector<1x32xf32>
    %cst = arith.constant dense<0.000000e+00> : vector<17xf32>
    %4 = vector.multi_reduction <add>, %1, %cst [1] : vector<17x32xf32> to vector<17xf32>
    %5 = vector.shape_cast %4 : vector<17xf32> to vector<17x1xf32>
    %cst_6 = arith.constant 3.200000e+01 : f32
    %6 = vector.broadcast %cst_6 : f32 to vector<17x1xf32>
    %7 = arith.divf %5, %6 : vector<17x1xf32>
    %8 = vector.broadcast %7 : vector<17x1xf32> to vector<17x32xf32>
    %9 = arith.subf %1, %8 : vector<17x32xf32>
    %10 = vector.broadcast %7 : vector<17x1xf32> to vector<17x32xf32>
    %11 = arith.subf %1, %10 : vector<17x32xf32>
    %12 = arith.mulf %9, %11 : vector<17x32xf32>
    %cst_7 = arith.constant dense<0.000000e+00> : vector<17xf32>
    %13 = vector.multi_reduction <add>, %12, %cst_7 [1] : vector<17x32xf32> to vector<17xf32>
    %14 = vector.shape_cast %13 : vector<17xf32> to vector<17x1xf32>
    %cst_8 = arith.constant 3.200000e+01 : f32
    %15 = vector.broadcast %cst_8 : f32 to vector<17x1xf32>
    %16 = arith.divf %14, %15 : vector<17x1xf32>
    %17 = vector.broadcast %7 : vector<17x1xf32> to vector<17x32xf32>
    %18 = arith.subf %1, %17 : vector<17x32xf32>
    %cst_9 = arith.constant 9.99999974E-6 : f32
    %19 = vector.broadcast %cst_9 : f32 to vector<17x1xf32>
    %20 = arith.addf %16, %19 : vector<17x1xf32>
    %21 = math.rsqrt %20 : vector<17x1xf32>
    %22 = vector.broadcast %21 : vector<17x1xf32> to vector<17x32xf32>
    %23 = arith.mulf %18, %22 : vector<17x32xf32>
    %24 = vector.broadcast %2 : vector<1x32xf32> to vector<17x32xf32>
    %25 = arith.mulf %23, %24 : vector<17x32xf32>
    %26 = vector.broadcast %3 : vector<1x32xf32> to vector<17x32xf32>
    %27 = arith.addf %25, %26 : vector<17x32xf32>
    %c0_10 = arith.constant 0 : index
    %c0_11 = arith.constant 0 : index
    %c0_12 = arith.constant 0 : index
    %28 = vector.load %arg4[%c0_10, %c0_11, %c0_12] : memref<1x17x32xf32, #tpu.memory_space<vmem>>, vector<1x17x32xf32>
    %29 = vector.shape_cast %28 : vector<1x17x32xf32> to vector<17x32xf32>
    %30 = vector.shape_cast %27 : vector<17x32xf32> to vector<1x17x32xf32>
    tpu.vector_store %arg4[%c0_10, %c0_11, %c0_12], %30 {strides = array<i32>} : memref<1x17x32xf32, #tpu.memory_space<vmem>>, vector<1x17x32xf32>,
    return
  }
  func.func @transform_0(%arg0: i32) -> (i32, i32, i32) {
    %c0_i32 = arith.constant 0 : i32
    %c0_i32_0 = arith.constant 0 : i32
    %c0_i32_1 = arith.constant 0 : i32
    return %arg0, %c0_i32, %c0_i32_0 : i32, i32, i32
  }
  func.func @transform_1(%arg0: i32) -> (i32, i32) {
    %c0_i32 = arith.constant 0 : i32
    %c0_i32_0 = arith.constant 0 : i32
    %c0_i32_1 = arith.constant 0 : i32
    return %c0_i32, %c0_i32_0 : i32, i32
  }
  func.func @transform_2(%arg0: i32) -> (i32, i32) {
    %c0_i32 = arith.constant 0 : i32
    %c0_i32_0 = arith.constant 0 : i32
    %c0_i32_1 = arith.constant 0 : i32
    return %c0_i32, %c0_i32_0 : i32, i32
  }
  func.func @transform_3(%arg0: i32) -> (i32, i32, i32) {
    %c0_i32 = arith.constant 0 : i32
    %c0_i32_0 = arith.constant 0 : i32
    %c0_i32_1 = arith.constant 0 : i32
    return %arg0, %c0_i32, %c0_i32_0 : i32, i32, i32
  }
}

</mosaic_0001>

<llo_original>
// kernel: visual_transformer_forward.7
$region0: #{visual_transformer_forward.7}
  #allocation0 [shape = 'u32[]', space=smem, size = 0x4, offset = 0x4, fixed_abs, tag = 'smem constant byte address 0x4 - core index']
  #allocation1 [shape = 'u32[144,128]{1,0:T(1,128)}', space=vmem, size = 0x12000, scoped, tag = 'internal scratch']
  %s0 = inlined_call_operand.vmem [shape: f32[2,16,48], index: 0, kind: input, shape index: {}]
  %s1 = inlined_call_operand.vmem [shape: f32[48,32], index: 1, kind: input, shape index: {}]
  %s2 = inlined_call_operand.vmem [shape: f32[2,16,32], index: 2, kind: output, shape index: {}]
  %s3 = sld [smem:[#allocation0]]
  $region41: #{visual_transformer_forward.7} parent=0
    _
  %s5 = ssub.s32 1, %s3
  %s6 = scalar_select 0, %s5, %s3
  loop: start=0, step=1, limit=4
  $region2: #{visual_transformer_forward.7} parent=0 // loop_pre_header
    _
  $region3: #{visual_transformer_forward.7} parent=0 // loop_header
    %s8 = sphi 0, %s12
    %p9 = scmp.ge.s32.totalorder %s8, 4
    %s18 = sphi 0, %s20
    %s21 = sphi 0, %s18
    %s22 = sphi 0, %s21
    %s38 = sphi 0, %s22
    %s42 = sphi 0, %s42
    %s44 = sphi 0, %s42
    %s45 = sphi 0, %s44
    %s59 = sphi 0, %s45
    %s65 = sphi 0, %s67
    %s68 = sphi 0, %s65
    %s69 = sphi 0, %s68
    %s85 = sphi 0, %s69
  $region4: #{visual_transformer_forward.7} parent=0 // loop_header_branch
    %11 = sbr.rel (%p9) target = $region8
  $region5: #{visual_transformer_forward.7} parent=0 // loop_body
    %s13 = ssub.s32 %s8, 1
    %s14 = ssub.s32 %s8, 2
    %s15 = sadd.s32 %s8, 1
    %s16 = ssub.s32 %s8, %s15
    %p17 = scmp.eq.s32.totalorder %s16, 0
    %s19 = sadd.s32 %s18, 1
    %s20 = scalar_select %p17, %s18, %s19
    %p23 = pneg %p17
    %p24 = scmp.eq.s32.totalorder %s8, 1
    %p25 = por %p23, %p24
    %p26 = scmp.ne.s32.totalorder %s18, %s21
    %p27 = scmp.eq.s32.totalorder %s8, 0
    %p28 = por %p26, %p27
    %p29 = scmp.ne.s32.totalorder %s18, %s21
    %p30 = scmp.eq.s32.totalorder %s13, 1
    %p31 = por %p29, %p30
    %p32 = scmp.ne.s32.totalorder %s21, %s22
    %p33 = scmp.eq.s32.totalorder %s13, 0
    %p34 = por %p32, %p33
    %p35 = scmp.ne.s32.totalorder %s21, %s22
    %p36 = scmp.eq.s32.totalorder %s14, 1
    %p37 = por %p35, %p36
    %p39 = scmp.ne.s32.totalorder %s22, %s38
    %p40 = scmp.eq.s32.totalorder %s14, 0
    %p41 = por %p39, %p40
    %s43 = sadd.s32 %s42, 1
    %p46 = scmp.eq.s32.totalorder %s8, 1
    %p47 = scmp.ne.s32.totalorder %s42, %s44
    %p48 = scmp.eq.s32.totalorder %s8, 0
    %p49 = por %p47, %p48
    %p50 = scmp.ne.s32.totalorder %s42, %s44
    %p51 = scmp.eq.s32.totalorder %s13, 1
    %p52 = por %p50, %p51
    %p53 = scmp.ne.s32.totalorder %s44, %s45
    %p54 = scmp.eq.s32.totalorder %s13, 0
    %p55 = por %p53, %p54
    %p56 = scmp.ne.s32.totalorder %s44, %s45
    %p57 = scmp.eq.s32.totalorder %s14, 1
    %p58 = por %p56, %p57
    %p60 = scmp.ne.s32.totalorder %s45, %s59
    %p61 = scmp.eq.s32.totalorder %s14, 0
    %p62 = por %p60, %p61
    %s63 = ssub.s32 %s8, %s15
    %p64 = scmp.eq.s32.totalorder %s63, 0
    %s66 = sadd.s32 %s65, 1
    %s67 = scalar_select %p64, %s65, %s66
    %p70 = pneg %p64
    %p71 = scmp.eq.s32.totalorder %s8, 1
    %p72 = por %p70, %p71
    %p73 = scmp.ne.s32.totalorder %s65, %s68
    %p74 = scmp.eq.s32.totalorder %s8, 0
    %p75 = por %p73, %p74
    %p76 = scmp.ne.s32.totalorder %s65, %s68
    %p77 = scmp.eq.s32.totalorder %s13, 1
    %p78 = por %p76, %p77
    %p79 = scmp.ne.s32.totalorder %s68, %s69
    %p80 = scmp.eq.s32.totalorder %s13, 0
    %p81 = por %p79, %p80
    %p82 = scmp.ne.s32.totalorder %s68, %s69
    %p83 = scmp.eq.s32.totalorder %s14, 1
    %p84 = por %p82, %p83
    %p86 = scmp.ne.s32.totalorder %s69, %s85
    %p87 = scmp.eq.s32.totalorder %s14, 0
    %p88 = por %p86, %p87
    %p89 = scmp.le.s32.totalorder 1, %s8
    %p90 = scmp.lt.s32.totalorder %s8, 3
    %p91 = pnand %p89, %p90
    %p92 = pneg %p91
    // Predicated region
    $region9: #{visual_transformer_forward.7} parent=5 // pred_check
      _
    $region10: #{visual_transformer_forward.7} parent=5 // pred_check_branch
      %94 = sbr.rel (%p91) target = $region12
    $region11: #{visual_transformer_forward.7} parent=5 // pred_region
      %s95 = ssub.s32 %s8, 1
      // Predicated region
      $region13: #{visual_transformer_forward.7} parent=11 // pred_check
        %p96 = pneg %p55
      $region14: #{visual_transformer_forward.7} parent=11 // pred_check_branch
        %98 = sbr.rel (%p96) target = $region16
      $region15: #{visual_transformer_forward.7} parent=11 // pred_region
        _
      $region16: #{visual_transformer_forward.7} parent=11 // pred_fallthru
        _
    $region12: #{visual_transformer_forward.7} parent=5 // pred_fallthru
      _
    %p99 = scmp.lt.s32.totalorder %s8, 2
    // Predicated region
    $region17: #{visual_transformer_forward.7} parent=5 // pred_check
      %p100 = pneg %p99
    $region18: #{visual_transformer_forward.7} parent=5 // pred_check_branch
      %102 = sbr.rel (%p100) target = $region20
    $region19: #{visual_transformer_forward.7} parent=5 // pred_region
      // Predicated region
      $region21: #{visual_transformer_forward.7} parent=19 // pred_check
        %p103 = pneg %p28
      $region22: #{visual_transformer_forward.7} parent=19 // pred_check_branch
        %105 = sbr.rel (%p103) target = $region24
      $region23: #{visual_transformer_forward.7} parent=19 // pred_region
        %p106 = scmp.lt.s32.totalorder %s8, 1
        %s107 = scalar_select %p106, %s8, 1
        %s108 = smul.addr %s107, 2
        %s109 = smul.addr %s108, 8
        %s110 = scalar_lea.vmem %s0, %s109
      $region24: #{visual_transformer_forward.7} parent=19 // pred_fallthru
        _
    $region20: #{visual_transformer_forward.7} parent=5 // pred_fallthru
      _
    %p111 = scmp.le.s32.totalorder 1, %s8
    %p112 = scmp.lt.s32.totalorder %s8, 3
    %p113 = pnand %p111, %p112
    %p114 = pneg %p113
    // Predicated region
    $region25: #{visual_transformer_forward.7} parent=5 // pred_check
      _
    $region26: #{visual_transformer_forward.7} parent=5 // pred_check_branch
      %116 = sbr.rel (%p113) target = $region28
    $region27: #{visual_transformer_forward.7} parent=5 // pred_region
      %s117 = ssub.s32 %s8, 1
      %p118 = scmp.lt.s32.totalorder %s13, 1
      %s119 = scalar_select %p118, %s13, 1
      %s120 = smul.addr %s119, 2
      %s121 = smul.addr %s120, 8
      %s122 = scalar_lea.vmem %s0, %s121
      %p123 = pneg %p34
      %p124 = pneg %p31
      %p125 = pneg %p55
      %p126 = pneg %p52
      %p127 = pneg %p81
      %p128 = pneg %p78
      %p129 = scmp.lt.s32.totalorder %s13, 1
      %s130 = scalar_select %p129, %s13, 1
      %s131 = smul.addr %s130, 2
      %s132 = smul.addr %s131, 8
      %s133 = scalar_lea.vmem %s2, %s132
      %p134 = scmp.lt.s32.totalorder %s13, 1
      %s135 = scalar_select %p134, %s13, 1
      %s136 = smul.addr %s135, 2
      %s137 = smul.addr %s136, 8
      %s138 = scalar_lea.vmem %s0, %s137
      %p139 = scmp.lt.s32.totalorder %s13, 1
      %s140 = scalar_select %p139, %s13, 1
      %s141 = smul.addr %s140, 2
      %s142 = smul.addr %s141, 8
      %s143 = scalar_lea.vmem %s2, %s142
      %v144 = vld [vmem:[%s138] sm:$0xff]
      %v145 = vld [vmem:[%s138 + $0x8] sm:$0xff]
      %v146 = vld [vmem:[%s1] sm:$0xff]
      %v147 = vld [vmem:[%s1 + $0x8] sm:$0xff]
      %v148 = vld [vmem:[%s1 + $0x10] sm:$0xff]
      %v149 = vld [vmem:[%s1 + $0x18] sm:$0xff]
      %v150 = vld [vmem:[%s1 + $0x20] sm:$0xff]
      %v151 = vld [vmem:[%s1 + $0x28] sm:$0xff]
      %vm152 = vcmask 392192
      %v154 = vsel %vm152, %v144, 0
      %v157 = vsel %vm152, %v145, 0
      %159 = vmatprep.subr.mxu0 0.0
      %160 = vmatpush1.msra.mxu0 0.0
      %161 = vmatprep.subr.mxu0 0.0
      %162 = vmatpush1.msra.mxu0 0.0
      %163 = vmatprep.subr.mxu0 0.0
      %164 = vmatpush1.msra.mxu0 0.0
      %165 = vmatprep.subr.mxu0 0.0
      %166 = vmatpush1.msra.mxu0 0.0
      %167 = vmatprep.subr.mxu0 0.0
      %168 = vmatpush1.msra.mxu0 0.0
      %169 = vmatprep.subr.mxu0 0.0
      %170 = vmatpush1.msra.mxu0 0.0
      %171 = vmatprep.subr.mxu0 0.0
      %172 = vmatpush1.msra.mxu0 0.0
      %173 = vmatprep.subr.mxu0 0.0
      %174 = vmatpush1.msra.mxu0 0.0
      %175 = vmatprep.subr.mxu0 0.0
      %176 = vmatpush1.msra.mxu0 0.0
      %177 = vmatprep.subr.mxu0 0.0
      %178 = vmatpush1.msra.mxu0 0.0
      %179 = vmatprep.subr.mxu0 0.0
      %180 = vmatpush1.msra.mxu0 %v151
      %181 = vmatprep.subr.mxu0 0.0
      %182 = vmatpush1.msra.mxu0 %v150
      %183 = vmatprep.subr.mxu0 0.0
      %184 = vmatpush1.msra.mxu0 %v149
      %185 = vmatprep.subr.mxu0 0.0
      %186 = vmatpush1.msra.mxu0 %v148
      %187 = vmatprep.subr.mxu0 0.0
      %188 = vmatpush1.msra.mxu0 %v147
      %189 = vmatprep.subr.mxu0 0.0
      %190 = vmatpush1.msra.mxu0 %v146
      %191 = vmatprep.subr.mxu0 0.0
      %192 = vmatpush2.msra.mxu0 0.0
      %193 = vmatprep.subr.mxu0 0.0
      %194 = vmatpush2.msra.mxu0 0.0
      %195 = vmatprep.subr.mxu0 0.0
      %196 = vmatpush2.msra.mxu0 0.0
      %197 = vmatprep.subr.mxu0 0.0
      %198 = vmatpush2.msra.mxu0 0.0
      %199 = vmatprep.subr.mxu0 0.0
      %200 = vmatpush2.msra.mxu0 0.0
      %201 = vmatprep.subr.mxu0 0.0
      %202 = vmatpush2.msra.mxu0 0.0
      %203 = vmatprep.subr.mxu0 0.0
      %204 = vmatpush2.msra.mxu0 0.0
      %205 = vmatprep.subr.mxu0 0.0
      %206 = vmatpush2.msra.mxu0 0.0
      %207 = vmatprep.subr.mxu0 0.0
      %208 = vmatpush2.msra.mxu0 0.0
      %209 = vmatprep.subr.mxu0 0.0
      %210 = vmatpush2.msra.mxu0 0.0
      %211 = vmatprep.subr.mxu0 0.0
      %212 = vmatpush2.msra.mxu0 0.0
      %213 = vmatprep.subr.mxu0 0.0
      %214 = vmatpush2.msra.mxu0 0.0
      %215 = vmatprep.subr.mxu0 0.0
      %216 = vmatpush2.msra.mxu0 0.0
      %217 = vmatprep.subr.mxu0 0.0
      %218 = vmatpush2.msra.mxu0 0.0
      %219 = vmatprep.subr.mxu0 0.0
      %220 = vmatpush2.msra.mxu0 0.0
      %221 = vmatprep.subr.mxu0 0.0
      %222 = vmatpush2.msra.mxu0 0.0
      %223 = vmatprep.mubr.f32.mxu0 0.0
      %224 = vmatmul.mubr.f32.gmra.mxu0 %v154
      %v225 = vpop.f32.mrf.mxu0
      %v226 = vadd.f32 0.0, %v225
      %v227 = vpop.f32.mrf.mxu0
      %228 = vmatprep.mubr.f32.mxu0 0.0
      %229 = vmatmul.mubr.f32.gmra.mxu0 %v157
      %v230 = vpop.f32.mrf.mxu0
      %v231 = vadd.f32 0.0, %v230
      %v232 = vpop.f32.mrf.mxu0
      %233 = vdwg.mxu0
      %vm234 = vcmask 261120
      %235 = vst.msk [vmem:[%s143] sm:$0xff] %vm234, %v226
      %236 = vst.msk [vmem:[%s143 + $0x8] sm:$0xff] %vm234, %v231
      %p237 = scmp.lt.s32.totalorder %s13, 1
      %s238 = scalar_select %p237, %s13, 1
      %s239 = smul.addr %s238, 2
      %s240 = smul.addr %s239, 8
      %s241 = scalar_lea.vmem %s2, %s240
      // Predicated region
      $region29: #{visual_transformer_forward.7} parent=27 // pred_check
        %p242 = pneg %p78
      $region30: #{visual_transformer_forward.7} parent=27 // pred_check_branch
        %244 = sbr.rel (%p242) target = $region32
      $region31: #{visual_transformer_forward.7} parent=27 // pred_region
        _
      $region32: #{visual_transformer_forward.7} parent=27 // pred_fallthru
        _
    $region28: #{visual_transformer_forward.7} parent=5 // pred_fallthru
      _
    %p245 = scmp.le.s32.totalorder 2, %s8
    // Predicated region
    $region33: #{visual_transformer_forward.7} parent=5 // pred_check
      %p246 = pneg %p245
    $region34: #{visual_transformer_forward.7} parent=5 // pred_check_branch
      %248 = sbr.rel (%p246) target = $region36
    $region35: #{visual_transformer_forward.7} parent=5 // pred_region
      %s249 = ssub.s32 %s8, 2
      // Predicated region
      $region37: #{visual_transformer_forward.7} parent=35 // pred_check
        %p250 = pneg %p84
      $region38: #{visual_transformer_forward.7} parent=35 // pred_check_branch
        %252 = sbr.rel (%p250) target = $region40
      $region39: #{visual_transformer_forward.7} parent=35 // pred_region
        %p253 = scmp.lt.s32.totalorder %s14, 1
        %s254 = scalar_select %p253, %s14, 1
        %s255 = smul.addr %s254, 2
        %s256 = smul.addr %s255, 8
        %s257 = scalar_lea.vmem %s2, %s256
      $region40: #{visual_transformer_forward.7} parent=35 // pred_fallthru
        _
    $region36: #{visual_transformer_forward.7} parent=5 // pred_fallthru
      _
  $region6: #{visual_transformer_forward.7} parent=0 // loop_footer
    %s12 = sadd.s32 1, %s8
  $region7: #{visual_transformer_forward.7} parent=0 // loop_footer_branch
    %7 = sbr.rel target = $region3
  $region8: #{visual_transformer_forward.7} parent=0 // loop_exit
    _

// kernel: visual_transformer_forward.10
$region0: #{visual_transformer_forward.10}
  #allocation0 [shape = 'u32[]', space=smem, size = 0x4, offset = 0x4, fixed_abs, tag = 'smem constant byte address 0x4 - core index']
  #allocation1 [shape = 'u32[144,128]{1,0:T(1,128)}', space=vmem, size = 0x12000, scoped, tag = 'internal scratch']
  %s0 = inlined_call_operand.vmem [shape: f32[2,17,32], index: 0, kind: input, shape index: {}]
  %s1 = inlined_call_operand.vmem [shape: f32[1,32], index: 1, kind: input, shape index: {}]
  %s2 = inlined_call_operand.vmem [shape: f32[1,32], index: 2, kind: input, shape index: {}]
  %s3 = inlined_call_operand.vmem [shape: f32[32,128], index: 3, kind: input, shape index: {}]
  %s4 = inlined_call_operand.vmem [shape: f32[1,128], index: 4, kind: input, shape index: {}]
  %s5 = inlined_call_operand.vmem [shape: f32[128,32], index: 5, kind: input, shape index: {}]
  %s6 = inlined_call_operand.vmem [shape: f32[1,32], index: 6, kind: input, shape index: {}]
  %s7 = inlined_call_operand.vmem [shape: f32[2,17,32], index: 7, kind: output, shape index: {}]
  %s8 = sld [smem:[#allocation0]]
  $region61: #{visual_transformer_forward.10} parent=0
    _
  %s10 = ssub.s32 1, %s8
  %s11 = scalar_select 0, %s10, %s8
  loop: start=0, step=1, limit=4
  $region2: #{visual_transformer_forward.10} parent=0 // loop_pre_header
    _
  $region3: #{visual_transformer_forward.10} parent=0 // loop_header
    %s13 = sphi 0, %s17
    %p14 = scmp.ge.s32.totalorder %s13, 4
    %s23 = sphi 0, %s25
    %s26 = sphi 0, %s23
    %s27 = sphi 0, %s26
    %s43 = sphi 0, %s27
    %s47 = sphi 0, %s47
    %s49 = sphi 0, %s47
    %s50 = sphi 0, %s49
    %s64 = sphi 0, %s50
    %s68 = sphi 0, %s68
    %s70 = sphi 0, %s68
    %s71 = sphi 0, %s70
    %s85 = sphi 0, %s71
    %s89 = sphi 0, %s89
    %s91 = sphi 0, %s89
    %s92 = sphi 0, %s91
    %s106 = sphi 0, %s92
    %s110 = sphi 0, %s110
    %s112 = sphi 0, %s110
    %s113 = sphi 0, %s112
    %s127 = sphi 0, %s113
    %s131 = sphi 0, %s131
    %s133 = sphi 0, %s131
    %s134 = sphi 0, %s133
    %s148 = sphi 0, %s134
    %s152 = sphi 0, %s152
    %s154 = sphi 0, %s152
    %s155 = sphi 0, %s154
    %s169 = sphi 0, %s155
    %s175 = sphi 0, %s177
    %s178 = sphi 0, %s175
    %s179 = sphi 0, %s178
    %s195 = sphi 0, %s179
  $region4: #{visual_transformer_forward.10} parent=0 // loop_header_branch
    %16 = sbr.rel (%p14) target = $region8
  $region5: #{visual_transformer_forward.10} parent=0 // loop_body
    %s18 = ssub.s32 %s13, 1
    %s19 = ssub.s32 %s13, 2
    %s20 = sadd.s32 %s13, 1
    %s21 = ssub.s32 %s13, %s20
    %p22 = scmp.eq.s32.totalorder %s21, 0
    %s24 = sadd.s32 %s23, 1
    %s25 = scalar_select %p22, %s23, %s24
    %p28 = pneg %p22
    %p29 = scmp.eq.s32.totalorder %s13, 1
    %p30 = por %p28, %p29
    %p31 = scmp.ne.s32.totalorder %s23, %s26
    %p32 = scmp.eq.s32.totalorder %s13, 0
    %p33 = por %p31, %p32
    %p34 = scmp.ne.s32.totalorder %s23, %s26
    %p35 = scmp.eq.s32.totalorder %s18, 1
    %p36 = por %p34, %p35
    %p37 = scmp.ne.s32.totalorder %s26, %s27
    %p38 = scmp.eq.s32.totalorder %s18, 0
    %p39 = por %p37, %p38
    %p40 = scmp.ne.s32.totalorder %s26, %s27
    %p41 = scmp.eq.s32.totalorder %s19, 1
    %p42 = por %p40, %p41
    %p44 = scmp.ne.s32.totalorder %s27, %s43
    %p45 = scmp.eq.s32.totalorder %s19, 0
    %p46 = por %p44, %p45
    %s48 = sadd.s32 %s47, 1
    %p51 = scmp.eq.s32.totalorder %s13, 1
    %p52 = scmp.ne.s32.totalorder %s47, %s49
    %p53 = scmp.eq.s32.totalorder %s13, 0
    %p54 = por %p52, %p53
    %p55 = scmp.ne.s32.totalorder %s47, %s49
    %p56 = scmp.eq.s32.totalorder %s18, 1
    %p57 = por %p55, %p56
    %p58 = scmp.ne.s32.totalorder %s49, %s50
    %p59 = scmp.eq.s32.totalorder %s18, 0
    %p60 = por %p58, %p59
    %p61 = scmp.ne.s32.totalorder %s49, %s50
    %p62 = scmp.eq.s32.totalorder %s19, 1
    %p63 = por %p61, %p62
    %p65 = scmp.ne.s32.totalorder %s50, %s64
    %p66 = scmp.eq.s32.totalorder %s19, 0
    %p67 = por %p65, %p66
    %s69 = sadd.s32 %s68, 1
    %p72 = scmp.eq.s32.totalorder %s13, 1
    %p73 = scmp.ne.s32.totalorder %s68, %s70
    %p74 = scmp.eq.s32.totalorder %s13, 0
    %p75 = por %p73, %p74
    %p76 = scmp.ne.s32.totalorder %s68, %s70
    %p77 = scmp.eq.s32.totalorder %s18, 1
    %p78 = por %p76, %p77
    %p79 = scmp.ne.s32.totalorder %s70, %s71
    %p80 = scmp.eq.s32.totalorder %s18, 0
    %p81 = por %p79, %p80
    %p82 = scmp.ne.s32.totalorder %s70, %s71
    %p83 = scmp.eq.s32.totalorder %s19, 1
    %p84 = por %p82, %p83
    %p86 = scmp.ne.s32.totalorder %s71, %s85
    %p87 = scmp.eq.s32.totalorder %s19, 0
    %p88 = por %p86, %p87
    %s90 = sadd.s32 %s89, 1
    %p93 = scmp.eq.s32.totalorder %s13, 1
    %p94 = scmp.ne.s32.totalorder %s89, %s91
    %p95 = scmp.eq.s32.totalorder %s13, 0
    %p96 = por %p94, %p95
    %p97 = scmp.ne.s32.totalorder %s89, %s91
    %p98 = scmp.eq.s32.totalorder %s18, 1
    %p99 = por %p97, %p98
    %p100 = scmp.ne.s32.totalorder %s91, %s92
    %p101 = scmp.eq.s32.totalorder %s18, 0
    %p102 = por %p100, %p101
    %p103 = scmp.ne.s32.totalorder %s91, %s92
    %p104 = scmp.eq.s32.totalorder %s19, 1
    %p105 = por %p103, %p104
    %p107 = scmp.ne.s32.totalorder %s92, %s106
    %p108 = scmp.eq.s32.totalorder %s19, 0
    %p109 = por %p107, %p108
    %s111 = sadd.s32 %s110, 1
    %p114 = scmp.eq.s32.totalorder %s13, 1
    %p115 = scmp.ne.s32.totalorder %s110, %s112
    %p116 = scmp.eq.s32.totalorder %s13, 0
    %p117 = por %p115, %p116
    %p118 = scmp.ne.s32.totalorder %s110, %s112
    %p119 = scmp.eq.s32.totalorder %s18, 1
    %p120 = por %p118, %p119
    %p121 = scmp.ne.s32.totalorder %s112, %s113
    %p122 = scmp.eq.s32.totalorder %s18, 0
    %p123 = por %p121, %p122
    %p124 = scmp.ne.s32.totalorder %s112, %s113
    %p125 = scmp.eq.s32.totalorder %s19, 1
    %p126 = por %p124, %p125
    %p128 = scmp.ne.s32.totalorder %s113, %s127
    %p129 = scmp.eq.s32.totalorder %s19, 0
    %p130 = por %p128, %p129
    %s132 = sadd.s32 %s131, 1
    %p135 = scmp.eq.s32.totalorder %s13, 1
    %p136 = scmp.ne.s32.totalorder %s131, %s133
    %p137 = scmp.eq.s32.totalorder %s13, 0
    %p138 = por %p136, %p137
    %p139 = scmp.ne.s32.totalorder %s131, %s133
    %p140 = scmp.eq.s32.totalorder %s18, 1
    %p141 = por %p139, %p140
    %p142 = scmp.ne.s32.totalorder %s133, %s134
    %p143 = scmp.eq.s32.totalorder %s18, 0
    %p144 = por %p142, %p143
    %p145 = scmp.ne.s32.totalorder %s133, %s134
    %p146 = scmp.eq.s32.totalorder %s19, 1
    %p147 = por %p145, %p146
    %p149 = scmp.ne.s32.totalorder %s134, %s148
    %p150 = scmp.eq.s32.totalorder %s19, 0
    %p151 = por %p149, %p150
    %s153 = sadd.s32 %s152, 1
    %p156 = scmp.eq.s32.totalorder %s13, 1
    %p157 = scmp.ne.s32.totalorder %s152, %s154
    %p158 = scmp.eq.s32.totalorder %s13, 0
    %p159 = por %p157, %p158
    %p160 = scmp.ne.s32.totalorder %s152, %s154
    %p161 = scmp.eq.s32.totalorder %s18, 1
    %p162 = por %p160, %p161
    %p163 = scmp.ne.s32.totalorder %s154, %s155
    %p164 = scmp.eq.s32.totalorder %s18, 0
    %p165 = por %p163, %p164
    %p166 = scmp.ne.s32.totalorder %s154, %s155
    %p167 = scmp.eq.s32.totalorder %s19, 1
    %p168 = por %p166, %p167
    %p170 = scmp.ne.s32.totalorder %s155, %s169
    %p171 = scmp.eq.s32.totalorder %s19, 0
    %p172 = por %p170, %p171
    %s173 = ssub.s32 %s13, %s20
    %p174 = scmp.eq.s32.totalorder %s173, 0
    %s176 = sadd.s32 %s175, 1
    %s177 = scalar_select %p174, %s175, %s176
    %p180 = pneg %p174
    %p181 = scmp.eq.s32.totalorder %s13, 1
    %p182 = por %p180, %p181
    %p183 = scmp.ne.s32.totalorder %s175, %s178
    %p184 = scmp.eq.s32.totalorder %s13, 0
    %p185 = por %p183, %p184
    %p186 = scmp.ne.s32.totalorder %s175, %s178
    %p187 = scmp.eq.s32.totalorder %s18, 1
    %p188 = por %p186, %p187
    %p189 = scmp.ne.s32.totalorder %s178, %s179
    %p190 = scmp.eq.s32.totalorder %s18, 0
    %p191 = por %p189, %p190
    %p192 = scmp.ne.s32.totalorder %s178, %s179
    %p193 = scmp.eq.s32.totalorder %s19, 1
    %p194 = por %p192, %p193
    %p196 = scmp.ne.s32.totalorder %s179, %s195
    %p197 = scmp.eq.s32.totalorder %s19, 0
    %p198 = por %p196, %p197
    %p199 = scmp.le.s32.totalorder 1, %s13
    %p200 = scmp.lt.s32.totalorder %s13, 3
    %p201 = pnand %p199, %p200
    %p202 = pneg %p201
    // Predicated region
    $region9: #{visual_transformer_forward.10} parent=5 // pred_check
      _
    $region10: #{visual_transformer_forward.10} parent=5 // pred_check_branch
      %204 = sbr.rel (%p201) target = $region12
    $region11: #{visual_transformer_forward.10} parent=5 // pred_region
      %s205 = ssub.s32 %s13, 1
      // Predicated region
      $region13: #{visual_transformer_forward.10} parent=11 // pred_check
        %p206 = pneg %p60
      $region14: #{visual_transformer_forward.10} parent=11 // pred_check_branch
        %208 = sbr.rel (%p206) target = $region16
      $region15: #{visual_transformer_forward.10} parent=11 // pred_region
        _
      $region16: #{visual_transformer_forward.10} parent=11 // pred_fallthru
        _
      // Predicated region
      $region17: #{visual_transformer_forward.10} parent=11 // pred_check
        %p209 = pneg %p81
      $region18: #{visual_transformer_forward.10} parent=11 // pred_check_branch
        %211 = sbr.rel (%p209) target = $region20
      $region19: #{visual_transformer_forward.10} parent=11 // pred_region
        _
      $region20: #{visual_transformer_forward.10} parent=11 // pred_fallthru
        _
      // Predicated region
      $region21: #{visual_transformer_forward.10} parent=11 // pred_check
        %p212 = pneg %p102
      $region22: #{visual_transformer_forward.10} parent=11 // pred_check_branch
        %214 = sbr.rel (%p212) target = $region24
      $region23: #{visual_transformer_forward.10} parent=11 // pred_region
        _
      $region24: #{visual_transformer_forward.10} parent=11 // pred_fallthru
        _
      // Predicated region
      $region25: #{visual_transformer_forward.10} parent=11 // pred_check
        %p215 = pneg %p123
      $region26: #{visual_transformer_forward.10} parent=11 // pred_check_branch
        %217 = sbr.rel (%p215) target = $region28
      $region27: #{visual_transformer_forward.10} parent=11 // pred_region
        _
      $region28: #{visual_transformer_forward.10} parent=11 // pred_fallthru
        _
      // Predicated region
      $region29: #{visual_transformer_forward.10} parent=11 // pred_check
        %p218 = pneg %p144
      $region30: #{visual_transformer_forward.10} parent=11 // pred_check_branch
        %220 = sbr.rel (%p218) target = $region32
      $region31: #{visual_transformer_forward.10} parent=11 // pred_region
        _
      $region32: #{visual_transformer_forward.10} parent=11 // pred_fallthru
        _
      // Predicated region
      $region33: #{visual_transformer_forward.10} parent=11 // pred_check
        %p221 = pneg %p165
      $region34: #{visual_transformer_forward.10} parent=11 // pred_check_branch
        %223 = sbr.rel (%p221) target = $region36
      $region35: #{visual_transformer_forward.10} parent=11 // pred_region
        _
      $region36: #{visual_transformer_forward.10} parent=11 // pred_fallthru
        _
    $region12: #{visual_transformer_forward.10} parent=5 // pred_fallthru
      _
    %p224 = scmp.lt.s32.totalorder %s13, 2
    // Predicated region
    $region37: #{visual_transformer_forward.10} parent=5 // pred_check
      %p225 = pneg %p224
    $region38: #{visual_transformer_forward.10} parent=5 // pred_check_branch
      %227 = sbr.rel (%p225) target = $region40
    $region39: #{visual_transformer_forward.10} parent=5 // pred_region
      // Predicated region
      $region41: #{visual_transformer_forward.10} parent=39 // pred_check
        %p228 = pneg %p33
      $region42: #{visual_transformer_forward.10} parent=39 // pred_check_branch
        %230 = sbr.rel (%p228) target = $region44
      $region43: #{visual_transformer_forward.10} parent=39 // pred_region
        %p231 = scmp.lt.s32.totalorder %s13, 1
        %s232 = scalar_select %p231, %s13, 1
        %s233 = smul.addr %s232, 3
        %s234 = smul.addr %s233, 8
        %s235 = scalar_lea.vmem %s0, %s234
      $region44: #{visual_transformer_forward.10} parent=39 // pred_fallthru
        _
    $region40: #{visual_transformer_forward.10} parent=5 // pred_fallthru
      _
    %p236 = scmp.le.s32.totalorder 1, %s13
    %p237 = scmp.lt.s32.totalorder %s13, 3
    %p238 = pnand %p236, %p237
    %p239 = pneg %p238
    // Predicated region
    $region45: #{visual_transformer_forward.10} parent=5 // pred_check
      _
    $region46: #{visual_transformer_forward.10} parent=5 // pred_check_branch
      %241 = sbr.rel (%p238) target = $region48
    $region47: #{visual_transformer_forward.10} parent=5 // pred_region
      %s242 = ssub.s32 %s13, 1
      %p243 = scmp.lt.s32.totalorder %s18, 1
      %s244 = scalar_select %p243, %s18, 1
      %s245 = smul.addr %s244, 3
      %s246 = smul.addr %s245, 8
      %s247 = scalar_lea.vmem %s0, %s246
      %p248 = pneg %p39
      %p249 = pneg %p36
      %p250 = pneg %p60
      %p251 = pneg %p57
      %p252 = pneg %p81
      %p253 = pneg %p78
      %p254 = pneg %p102
      %p255 = pneg %p99
      %p256 = pneg %p123
      %p257 = pneg %p120
      %p258 = pneg %p144
      %p259 = pneg %p141
      %p260 = pneg %p165
      %p261 = pneg %p162
      %p262 = pneg %p191
      %p263 = pneg %p188
      %p264 = scmp.lt.s32.totalorder %s18, 1
      %s265 = scalar_select %p264, %s18, 1
      %s266 = smul.addr %s265, 3
      %s267 = smul.addr %s266, 8
      %s268 = scalar_lea.vmem %s7, %s267
      %p269 = scmp.lt.s32.totalorder %s18, 1
      %s270 = scalar_select %p269, %s18, 1
      %s271 = smul.addr %s270, 3
      %s272 = smul.addr %s271, 8
      %s273 = scalar_lea.vmem %s0, %s272
      %p274 = scmp.lt.s32.totalorder %s18, 1
      %s275 = scalar_select %p274, %s18, 1
      %s276 = smul.addr %s275, 3
      %s277 = smul.addr %s276, 8
      %s278 = scalar_lea.vmem %s7, %s277
      %v279 = vld [vmem:[%s273] sm:$0xff]
      %v280 = vld [vmem:[%s273 + $0x8] sm:$0xff]
      %v281 = vld [vmem:[%s273 + $0x10] sm:$0x1]
      %v282 = vld [vmem:[%s1] sm:$0x1]
      %v283 = vld [vmem:[%s2] sm:$0x1]
      %vm284 = vcmask 261120
      %v285 = vsel %vm284, %v279, 0.0
      %286 = vadd.xlane.f32.xlu0 %v285
      %v287 = vpop.xlane.xlu0 %286
      %v288 = vsel %vm284, %v280, 0.0
      %289 = vadd.xlane.f32.xlu0 %v288
      %v290 = vpop.xlane.xlu0 %289
      %vm291 = vcmask 253952
      %v292 = vsel %vm291, %v281, 0.0
      %293 = vadd.xlane.f32.xlu0 %v292
      %v294 = vpop.xlane.xlu0 %293
      %v295 = vrcp.pop 32.0
      %v296 = vmul.f32 %v287, %v295
      %v297 = vmul.f32 %v290, %v295
      %v298 = vmul.f32 %v294, %v295
      %v299 = vsub.f32 %v279, %v296
      %v300 = vsub.f32 %v280, %v297
      %v301 = vsub.f32 %v281, %v298
      %v302 = vmul.f32 %v299, %v299
      %v303 = vmul.f32 %v300, %v300
      %v304 = vmul.f32 %v301, %v301
      %v305 = vsel %vm284, %v302, 0.0
      %306 = vadd.xlane.f32.xlu0 %v305
      %v307 = vpop.xlane.xlu0 %306
      %v308 = vsel %vm284, %v303, 0.0
      %309 = vadd.xlane.f32.xlu0 %v308
      %v310 = vpop.xlane.xlu0 %309
      %v311 = vsel %vm291, %v304, 0.0
      %312 = vadd.xlane.f32.xlu0 %v311
      %v313 = vpop.xlane.xlu0 %312
      %v314 = vmul.f32 %v307, %v295
      %v315 = vmul.f32 %v310, %v295
      %v316 = vmul.f32 %v313, %v295
      %v317 = vadd.f32 %v314, 1e-05
      %v318 = vadd.f32 %v315, 1e-05
      %v319 = vadd.f32 %v316, 1e-05
      %v320 = vrsqrt.pop %v317
      %v321 = vrsqrt.pop %v318
      %v322 = vrsqrt.pop %v319
      %v323 = vmul.f32 %v299, %v320
      %v324 = vmul.f32 %v300, %v321
      %v325 = vmul.f32 %v301, %v322
      %v327 = vlaneseq
      %v328 = vshrl.u32 %v327, 7
      %v329 = vsub.s32 0, %v328
      %v330 = vrot.slane %v282, %v329
      %v332 = vmul.f32 %v323, %v330
      %v333 = vmul.f32 %v324, %v330
      %v334 = vmul.f32 %v325, %v330
      %v336 = vlaneseq
      %v337 = vshrl.u32 %v336, 7
      %v338 = vsub.s32 0, %v337
      %v339 = vrot.slane %v283, %v338
      %v341 = vadd.f32 %v332, %v339
      %v342 = vadd.f32 %v333, %v339
      %v343 = vadd.f32 %v334, %v339
      %v344 = vld [vmem:[%s3] sm:$0xff]
      %v345 = vld [vmem:[%s3 + $0x8] sm:$0xff]
      %v346 = vld [vmem:[%s3 + $0x10] sm:$0xff]
      %v347 = vld [vmem:[%s3 + $0x18] sm:$0xff]
      %v348 = vld [vmem:[%s4] sm:$0x1]
      %v350 = vlaneseq
      %v351 = vshrl.u32 %v350, 7
      %v352 = vsub.s32 0, %v351
      %v353 = vrot.slane %v348, %v352
      %v356 = vsel %vm284, %v341, 0
      %v359 = vsel %vm284, %v342, 0
      %v362 = vsel %vm284, %v343, 0
      %364 = vmatprep.subr.mxu0 0.0
      %365 = vmatpush1.msra.mxu0 0.0
      %366 = vmatprep.subr.mxu0 0.0
      %367 = vmatpush1.msra.mxu0 0.0
      %368 = vmatprep.subr.mxu0 0.0
      %369 = vmatpush1.msra.mxu0 0.0
      %370 = vmatprep.subr.mxu0 0.0
      %371 = vmatpush1.msra.mxu0 0.0
      %372 = vmatprep.subr.mxu0 0.0
      %373 = vmatpush1.msra.mxu0 0.0
      %374 = vmatprep.subr.mxu0 0.0
      %375 = vmatpush1.msra.mxu0 0.0
      %376 = vmatprep.subr.mxu0 0.0
      %377 = vmatpush1.msra.mxu0 0.0
      %378 = vmatprep.subr.mxu0 0.0
      %379 = vmatpush1.msra.mxu0 0.0
      %380 = vmatprep.subr.mxu0 0.0
      %381 = vmatpush1.msra.mxu0 0.0
      %382 = vmatprep.subr.mxu0 0.0
      %383 = vmatpush1.msra.mxu0 0.0
      %384 = vmatprep.subr.mxu0 0.0
      %385 = vmatpush1.msra.mxu0 0.0
      %386 = vmatprep.subr.mxu0 0.0
      %387 = vmatpush1.msra.mxu0 0.0
      %388 = vmatprep.subr.mxu0 0.0
      %389 = vmatpush1.msra.mxu0 %v347
      %390 = vmatprep.subr.mxu0 0.0
      %391 = vmatpush1.msra.mxu0 %v346
      %392 = vmatprep.subr.mxu0 0.0
      %393 = vmatpush1.msra.mxu0 %v345
      %394 = vmatprep.subr.mxu0 0.0
      %395 = vmatpush1.msra.mxu0 %v344
      %396 = vmatprep.subr.mxu0 0.0
      %397 = vmatpush2.msra.mxu0 0.0
      %398 = vmatprep.subr.mxu0 0.0
      %399 = vmatpush2.msra.mxu0 0.0
      %400 = vmatprep.subr.mxu0 0.0
      %401 = vmatpush2.msra.mxu0 0.0
      %402 = vmatprep.subr.mxu0 0.0
      %403 = vmatpush2.msra.mxu0 0.0
      %404 = vmatprep.subr.mxu0 0.0
      %405 = vmatpush2.msra.mxu0 0.0
      %406 = vmatprep.subr.mxu0 0.0
      %407 = vmatpush2.msra.mxu0 0.0
      %408 = vmatprep.subr.mxu0 0.0
      %409 = vmatpush2.msra.mxu0 0.0
      %410 = vmatprep.subr.mxu0 0.0
      %411 = vmatpush2.msra.mxu0 0.0
      %412 = vmatprep.subr.mxu0 0.0
      %413 = vmatpush2.msra.mxu0 0.0
      %414 = vmatprep.subr.mxu0 0.0
      %415 = vmatpush2.msra.mxu0 0.0
      %416 = vmatprep.subr.mxu0 0.0
      %417 = vmatpush2.msra.mxu0 0.0
      %418 = vmatprep.subr.mxu0 0.0
      %419 = vmatpush2.msra.mxu0 0.0
      %420 = vmatprep.subr.mxu0 0.0
      %421 = vmatpush2.msra.mxu0 0.0
      %422 = vmatprep.subr.mxu0 0.0
      %423 = vmatpush2.msra.mxu0 0.0
      %424 = vmatprep.subr.mxu0 0.0
      %425 = vmatpush2.msra.mxu0 0.0
      %426 = vmatprep.subr.mxu0 0.0
      %427 = vmatpush2.msra.mxu0 0.0
      %428 = vmatprep.mubr.f32.mxu0 0.0
      %429 = vmatmul.mubr.f32.gmra.mxu0 %v356
      %v430 = vpop.f32.mrf.mxu0
      %v431 = vadd.f32 %v353, %v430
      %v432 = vpop.f32.mrf.mxu0
      %433 = vmatprep.mubr.f32.mxu0 0.0
      %434 = vmatmul.mubr.f32.gmra.mxu0 %v359
      %v435 = vpop.f32.mrf.mxu0
      %v436 = vadd.f32 %v353, %v435
      %v437 = vpop.f32.mrf.mxu0
      %438 = vmatprep.mubr.f32.mxu0 0.0
      %439 = vmatmul.mubr.f32.gmra.mxu0 %v362
      %v440 = vpop.f32.mrf.mxu0
      %v441 = vadd.f32 %v353, %v440
      %v442 = vpop.f32.mrf.mxu0
      %443 = vdwg.mxu0
      %v444 = vmul.f32 %v431, 1.702
      %v445 = vmul.f32 %v436, 1.702
      %v446 = vmul.f32 %v441, 1.702
      %v447 = vxor.u32 %v444, 2147483648
      %v448 = vxor.u32 %v445, 2147483648
      %v449 = vxor.u32 %v446, 2147483648
      %v450 = vmul.f32 %v447, 1.442695
      %v451 = vpow.pop %v450
      %v452 = vmul.f32 %v448, 1.442695
      %v453 = vpow.pop %v452
      %v454 = vmul.f32 %v449, 1.442695
      %v455 = vpow.pop %v454
      %v456 = vadd.f32 %v451, 1.0
      %v457 = vadd.f32 %v453, 1.0
      %v458 = vadd.f32 %v455, 1.0
      %v459 = vrcp.pop %v456
      %v460 = vmul.f32 1.0, %v459
      %v461 = vrcp.pop %v457
      %v462 = vmul.f32 1.0, %v461
      %v463 = vrcp.pop %v458
      %v464 = vmul.f32 1.0, %v463
      %v465 = vmul.f32 %v431, %v460
      %v466 = vmul.f32 %v436, %v462
      %v467 = vmul.f32 %v441, %v464
      %v468 = vld [vmem:[%s5] sm:$0xff]
      %v469 = vld [vmem:[%s5 + $0x8] sm:$0xff]
      %v470 = vld [vmem:[%s5 + $0x10] sm:$0xff]
      %v471 = vld [vmem:[%s5 + $0x18] sm:$0xff]
      %v472 = vld [vmem:[%s5 + $0x20] sm:$0xff]
      %v473 = vld [vmem:[%s5 + $0x28] sm:$0xff]
      %v474 = vld [vmem:[%s5 + $0x30] sm:$0xff]
      %v475 = vld [vmem:[%s5 + $0x38] sm:$0xff]
      %v476 = vld [vmem:[%s5 + $0x40] sm:$0xff]
      %v477 = vld [vmem:[%s5 + $0x48] sm:$0xff]
      %v478 = vld [vmem:[%s5 + $0x50] sm:$0xff]
      %v479 = vld [vmem:[%s5 + $0x58] sm:$0xff]
      %v480 = vld [vmem:[%s5 + $0x60] sm:$0xff]
      %v481 = vld [vmem:[%s5 + $0x68] sm:$0xff]
      %v482 = vld [vmem:[%s5 + $0x70] sm:$0xff]
      %v483 = vld [vmem:[%s5 + $0x78] sm:$0xff]
      %v484 = vld [vmem:[%s6] sm:$0x1]
      %v486 = vlaneseq
      %v487 = vshrl.u32 %v486, 7
      %v488 = vsub.s32 0, %v487
      %v489 = vrot.slane %v484, %v488
      %491 = vmatprep.subr.mxu0 0.0
      %492 = vmatpush1.msra.mxu0 %v483
      %493 = vmatprep.subr.mxu0 0.0
      %494 = vmatpush1.msra.mxu0 %v482
      %495 = vmatprep.subr.mxu0 0.0
      %496 = vmatpush1.msra.mxu0 %v481
      %497 = vmatprep.subr.mxu0 0.0
      %498 = vmatpush1.msra.mxu0 %v480
      %499 = vmatprep.subr.mxu0 0.0
      %500 = vmatpush1.msra.mxu0 %v479
      %501 = vmatprep.subr.mxu0 0.0
      %502 = vmatpush1.msra.mxu0 %v478
      %503 = vmatprep.subr.mxu0 0.0
      %504 = vmatpush1.msra.mxu0 %v477
      %505 = vmatprep.subr.mxu0 0.0
      %506 = vmatpush1.msra.mxu0 %v476
      %507 = vmatprep.subr.mxu0 0.0
      %508 = vmatpush1.msra.mxu0 %v475
      %509 = vmatprep.subr.mxu0 0.0
      %510 = vmatpush1.msra.mxu0 %v474
      %511 = vmatprep.subr.mxu0 0.0
      %512 = vmatpush1.msra.mxu0 %v473
      %513 = vmatprep.subr.mxu0 0.0
      %514 = vmatpush1.msra.mxu0 %v472
      %515 = vmatprep.subr.mxu0 0.0
      %516 = vmatpush1.msra.mxu0 %v471
      %517 = vmatprep.subr.mxu0 0.0
      %518 = vmatpush1.msra.mxu0 %v470
      %519 = vmatprep.subr.mxu0 0.0
      %520 = vmatpush1.msra.mxu0 %v469
      %521 = vmatprep.subr.mxu0 0.0
      %522 = vmatpush1.msra.mxu0 %v468
      %523 = vmatprep.subr.mxu0 0.0
      %524 = vmatpush2.msra.mxu0 0.0
      %525 = vmatprep.subr.mxu0 0.0
      %526 = vmatpush2.msra.mxu0 0.0
      %527 = vmatprep.subr.mxu0 0.0
      %528 = vmatpush2.msra.mxu0 0.0
      %529 = vmatprep.subr.mxu0 0.0
      %530 = vmatpush2.msra.mxu0 0.0
      %531 = vmatprep.subr.mxu0 0.0
      %532 = vmatpush2.msra.mxu0 0.0
      %533 = vmatprep.subr.mxu0 0.0
      %534 = vmatpush2.msra.mxu0 0.0
      %535 = vmatprep.subr.mxu0 0.0
      %536 = vmatpush2.msra.mxu0 0.0
      %537 = vmatprep.subr.mxu0 0.0
      %538 = vmatpush2.msra.mxu0 0.0
      %539 = vmatprep.subr.mxu0 0.0
      %540 = vmatpush2.msra.mxu0 0.0
      %541 = vmatprep.subr.mxu0 0.0
      %542 = vmatpush2.msra.mxu0 0.0
      %543 = vmatprep.subr.mxu0 0.0
      %544 = vmatpush2.msra.mxu0 0.0
      %545 = vmatprep.subr.mxu0 0.0
      %546 = vmatpush2.msra.mxu0 0.0
      %547 = vmatprep.subr.mxu0 0.0
      %548 = vmatpush2.msra.mxu0 0.0
      %549 = vmatprep.subr.mxu0 0.0
      %550 = vmatpush2.msra.mxu0 0.0
      %551 = vmatprep.subr.mxu0 0.0
      %552 = vmatpush2.msra.mxu0 0.0
      %553 = vmatprep.subr.mxu0 0.0
      %554 = vmatpush2.msra.mxu0 0.0
      %555 = vmatprep.mubr.f32.mxu0 0.0
      %556 = vmatmul.mubr.f32.gmra.mxu0 %v465
      %v557 = vpop.f32.mrf.mxu0
      %v558 = vadd.f32 %v489, %v557
      %v559 = vpop.f32.mrf.mxu0
      %560 = vmatprep.mubr.f32.mxu0 0.0
      %561 = vmatmul.mubr.f32.gmra.mxu0 %v466
      %v562 = vpop.f32.mrf.mxu0
      %v563 = vadd.f32 %v489, %v562
      %v564 = vpop.f32.mrf.mxu0
      %565 = vmatprep.mubr.f32.mxu0 0.0
      %566 = vmatmul.mubr.f32.gmra.mxu0 %v467
      %v567 = vpop.f32.mrf.mxu0
      %v568 = vadd.f32 %v489, %v567
      %v569 = vpop.f32.mrf.mxu0
      %570 = vdwg.mxu0
      %v571 = vadd.f32 %v279, %v558
      %v572 = vadd.f32 %v280, %v563
      %v573 = vadd.f32 %v281, %v568
      %574 = vst.msk [vmem:[%s278] sm:$0xff] %vm284, %v571
      %575 = vst.msk [vmem:[%s278 + $0x8] sm:$0xff] %vm284, %v572
      %576 = vst.msk [vmem:[%s278 + $0x10] sm:$0x1] %vm291, %v573
      %p577 = scmp.lt.s32.totalorder %s18, 1
      %s578 = scalar_select %p577, %s18, 1
      %s579 = smul.addr %s578, 3
      %s580 = smul.addr %s579, 8
      %s581 = scalar_lea.vmem %s7, %s580
      // Predicated region
      $region49: #{visual_transformer_forward.10} parent=47 // pred_check
        %p582 = pneg %p188
      $region50: #{visual_transformer_forward.10} parent=47 // pred_check_branch
        %584 = sbr.rel (%p582) target = $region52
      $region51: #{visual_transformer_forward.10} parent=47 // pred_region
        _
      $region52: #{visual_transformer_forward.10} parent=47 // pred_fallthru
        _
    $region48: #{visual_transformer_forward.10} parent=5 // pred_fallthru
      _
    %p585 = scmp.le.s32.totalorder 2, %s13
    // Predicated region
    $region53: #{visual_transformer_forward.10} parent=5 // pred_check
      %p586 = pneg %p585
    $region54: #{visual_transformer_forward.10} parent=5 // pred_check_branch
      %588 = sbr.rel (%p586) target = $region56
    $region55: #{visual_transformer_forward.10} parent=5 // pred_region
      %s589 = ssub.s32 %s13, 2
      // Predicated region
      $region57: #{visual_transformer_forward.10} parent=55 // pred_check
        %p590 = pneg %p194
      $region58: #{visual_transformer_forward.10} parent=55 // pred_check_branch
        %592 = sbr.rel (%p590) target = $region60
      $region59: #{visual_transformer_forward.10} parent=55 // pred_region
        %p593 = scmp.lt.s32.totalorder %s19, 1
        %s594 = scalar_select %p593, %s19, 1
        %s595 = smul.addr %s594, 3
        %s596 = smul.addr %s595, 8
        %s597 = scalar_lea.vmem %s7, %s596
      $region60: #{visual_transformer_forward.10} parent=55 // pred_fallthru
        _
    $region56: #{visual_transformer_forward.10} parent=5 // pred_fallthru
      _
  $region6: #{visual_transformer_forward.10} parent=0 // loop_footer
    %s17 = sadd.s32 1, %s13
  $region7: #{visual_transformer_forward.10} parent=0 // loop_footer_branch
    %12 = sbr.rel target = $region3
  $region8: #{visual_transformer_forward.10} parent=0 // loop_exit
    _

// kernel: visual_transformer_forward.8
$region0: #{visual_transformer_forward.8}
  #allocation0 [shape = 'u32[]', space=smem, size = 0x4, offset = 0x4, fixed_abs, tag = 'smem constant byte address 0x4 - core index']
  #allocation1 [shape = 'u32[144,128]{1,0:T(1,128)}', space=vmem, size = 0x12000, scoped, tag = 'internal scratch']
  %s0 = inlined_call_operand.vmem [shape: f32[2,17,32], index: 0, kind: input, shape index: {}]
  %s1 = inlined_call_operand.vmem [shape: f32[17,32], index: 1, kind: input, shape index: {}]
  %s2 = inlined_call_operand.vmem [shape: f32[1,32], index: 2, kind: input, shape index: {}]
  %s3 = inlined_call_operand.vmem [shape: f32[1,32], index: 3, kind: input, shape index: {}]
  %s4 = inlined_call_operand.vmem [shape: f32[2,17,32], index: 4, kind: output, shape index: {}]
  %s5 = sld [smem:[#allocation0]]
  $region49: #{visual_transformer_forward.8} parent=0
    _
  %s7 = ssub.s32 1, %s5
  %s8 = scalar_select 0, %s7, %s5
  loop: start=0, step=1, limit=4
  $region2: #{visual_transformer_forward.8} parent=0 // loop_pre_header
    _
  $region3: #{visual_transformer_forward.8} parent=0 // loop_header
    %s10 = sphi 0, %s14
    %p11 = scmp.ge.s32.totalorder %s10, 4
    %s20 = sphi 0, %s22
    %s23 = sphi 0, %s20
    %s24 = sphi 0, %s23
    %s40 = sphi 0, %s24
    %s44 = sphi 0, %s44
    %s46 = sphi 0, %s44
    %s47 = sphi 0, %s46
    %s61 = sphi 0, %s47
    %s65 = sphi 0, %s65
    %s67 = sphi 0, %s65
    %s68 = sphi 0, %s67
    %s82 = sphi 0, %s68
    %s86 = sphi 0, %s86
    %s88 = sphi 0, %s86
    %s89 = sphi 0, %s88
    %s103 = sphi 0, %s89
    %s109 = sphi 0, %s111
    %s112 = sphi 0, %s109
    %s113 = sphi 0, %s112
    %s129 = sphi 0, %s113
  $region4: #{visual_transformer_forward.8} parent=0 // loop_header_branch
    %13 = sbr.rel (%p11) target = $region8
  $region5: #{visual_transformer_forward.8} parent=0 // loop_body
    %s15 = ssub.s32 %s10, 1
    %s16 = ssub.s32 %s10, 2
    %s17 = sadd.s32 %s10, 1
    %s18 = ssub.s32 %s10, %s17
    %p19 = scmp.eq.s32.totalorder %s18, 0
    %s21 = sadd.s32 %s20, 1
    %s22 = scalar_select %p19, %s20, %s21
    %p25 = pneg %p19
    %p26 = scmp.eq.s32.totalorder %s10, 1
    %p27 = por %p25, %p26
    %p28 = scmp.ne.s32.totalorder %s20, %s23
    %p29 = scmp.eq.s32.totalorder %s10, 0
    %p30 = por %p28, %p29
    %p31 = scmp.ne.s32.totalorder %s20, %s23
    %p32 = scmp.eq.s32.totalorder %s15, 1
    %p33 = por %p31, %p32
    %p34 = scmp.ne.s32.totalorder %s23, %s24
    %p35 = scmp.eq.s32.totalorder %s15, 0
    %p36 = por %p34, %p35
    %p37 = scmp.ne.s32.totalorder %s23, %s24
    %p38 = scmp.eq.s32.totalorder %s16, 1
    %p39 = por %p37, %p38
    %p41 = scmp.ne.s32.totalorder %s24, %s40
    %p42 = scmp.eq.s32.totalorder %s16, 0
    %p43 = por %p41, %p42
    %s45 = sadd.s32 %s44, 1
    %p48 = scmp.eq.s32.totalorder %s10, 1
    %p49 = scmp.ne.s32.totalorder %s44, %s46
    %p50 = scmp.eq.s32.totalorder %s10, 0
    %p51 = por %p49, %p50
    %p52 = scmp.ne.s32.totalorder %s44, %s46
    %p53 = scmp.eq.s32.totalorder %s15, 1
    %p54 = por %p52, %p53
    %p55 = scmp.ne.s32.totalorder %s46, %s47
    %p56 = scmp.eq.s32.totalorder %s15, 0
    %p57 = por %p55, %p56
    %p58 = scmp.ne.s32.totalorder %s46, %s47
    %p59 = scmp.eq.s32.totalorder %s16, 1
    %p60 = por %p58, %p59
    %p62 = scmp.ne.s32.totalorder %s47, %s61
    %p63 = scmp.eq.s32.totalorder %s16, 0
    %p64 = por %p62, %p63
    %s66 = sadd.s32 %s65, 1
    %p69 = scmp.eq.s32.totalorder %s10, 1
    %p70 = scmp.ne.s32.totalorder %s65, %s67
    %p71 = scmp.eq.s32.totalorder %s10, 0
    %p72 = por %p70, %p71
    %p73 = scmp.ne.s32.totalorder %s65, %s67
    %p74 = scmp.eq.s32.totalorder %s15, 1
    %p75 = por %p73, %p74
    %p76 = scmp.ne.s32.totalorder %s67, %s68
    %p77 = scmp.eq.s32.totalorder %s15, 0
    %p78 = por %p76, %p77
    %p79 = scmp.ne.s32.totalorder %s67, %s68
    %p80 = scmp.eq.s32.totalorder %s16, 1
    %p81 = por %p79, %p80
    %p83 = scmp.ne.s32.totalorder %s68, %s82
    %p84 = scmp.eq.s32.totalorder %s16, 0
    %p85 = por %p83, %p84
    %s87 = sadd.s32 %s86, 1
    %p90 = scmp.eq.s32.totalorder %s10, 1
    %p91 = scmp.ne.s32.totalorder %s86, %s88
    %p92 = scmp.eq.s32.totalorder %s10, 0
    %p93 = por %p91, %p92
    %p94 = scmp.ne.s32.totalorder %s86, %s88
    %p95 = scmp.eq.s32.totalorder %s15, 1
    %p96 = por %p94, %p95
    %p97 = scmp.ne.s32.totalorder %s88, %s89
    %p98 = scmp.eq.s32.totalorder %s15, 0
    %p99 = por %p97, %p98
    %p100 = scmp.ne.s32.totalorder %s88, %s89
    %p101 = scmp.eq.s32.totalorder %s16, 1
    %p102 = por %p100, %p101
    %p104 = scmp.ne.s32.totalorder %s89, %s103
    %p105 = scmp.eq.s32.totalorder %s16, 0
    %p106 = por %p104, %p105
    %s107 = ssub.s32 %s10, %s17
    %p108 = scmp.eq.s32.totalorder %s107, 0
    %s110 = sadd.s32 %s109, 1
    %s111 = scalar_select %p108, %s109, %s110
    %p114 = pneg %p108
    %p115 = scmp.eq.s32.totalorder %s10, 1
    %p116 = por %p114, %p115
    %p117 = scmp.ne.s32.totalorder %s109, %s112
    %p118 = scmp.eq.s32.totalorder %s10, 0
    %p119 = por %p117, %p118
    %p120 = scmp.ne.s32.totalorder %s109, %s112
    %p121 = scmp.eq.s32.totalorder %s15, 1
    %p122 = por %p120, %p121
    %p123 = scmp.ne.s32.totalorder %s112, %s113
    %p124 = scmp.eq.s32.totalorder %s15, 0
    %p125 = por %p123, %p124
    %p126 = scmp.ne.s32.totalorder %s112, %s113
    %p127 = scmp.eq.s32.totalorder %s16, 1
    %p128 = por %p126, %p127
    %p130 = scmp.ne.s32.totalorder %s113, %s129
    %p131 = scmp.eq.s32.totalorder %s16, 0
    %p132 = por %p130, %p131
    %p133 = scmp.le.s32.totalorder 1, %s10
    %p134 = scmp.lt.s32.totalorder %s10, 3
    %p135 = pnand %p133, %p134
    %p136 = pneg %p135
    // Predicated region
    $region9: #{visual_transformer_forward.8} parent=5 // pred_check
      _
    $region10: #{visual_transformer_forward.8} parent=5 // pred_check_branch
      %138 = sbr.rel (%p135) target = $region12
    $region11: #{visual_transformer_forward.8} parent=5 // pred_region
      %s139 = ssub.s32 %s10, 1
      // Predicated region
      $region13: #{visual_transformer_forward.8} parent=11 // pred_check
        %p140 = pneg %p57
      $region14: #{visual_transformer_forward.8} parent=11 // pred_check_branch
        %142 = sbr.rel (%p140) target = $region16
      $region15: #{visual_transformer_forward.8} parent=11 // pred_region
        _
      $region16: #{visual_transformer_forward.8} parent=11 // pred_fallthru
        _
      // Predicated region
      $region17: #{visual_transformer_forward.8} parent=11 // pred_check
        %p143 = pneg %p78
      $region18: #{visual_transformer_forward.8} parent=11 // pred_check_branch
        %145 = sbr.rel (%p143) target = $region20
      $region19: #{visual_transformer_forward.8} parent=11 // pred_region
        _
      $region20: #{visual_transformer_forward.8} parent=11 // pred_fallthru
        _
      // Predicated region
      $region21: #{visual_transformer_forward.8} parent=11 // pred_check
        %p146 = pneg %p99
      $region22: #{visual_transformer_forward.8} parent=11 // pred_check_branch
        %148 = sbr.rel (%p146) target = $region24
      $region23: #{visual_transformer_forward.8} parent=11 // pred_region
        _
      $region24: #{visual_transformer_forward.8} parent=11 // pred_fallthru
        _
    $region12: #{visual_transformer_forward.8} parent=5 // pred_fallthru
      _
    %p149 = scmp.lt.s32.totalorder %s10, 2
    // Predicated region
    $region25: #{visual_transformer_forward.8} parent=5 // pred_check
      %p150 = pneg %p149
    $region26: #{visual_transformer_forward.8} parent=5 // pred_check_branch
      %152 = sbr.rel (%p150) target = $region28
    $region27: #{visual_transformer_forward.8} parent=5 // pred_region
      // Predicated region
      $region29: #{visual_transformer_forward.8} parent=27 // pred_check
        %p153 = pneg %p30
      $region30: #{visual_transformer_forward.8} parent=27 // pred_check_branch
        %155 = sbr.rel (%p153) target = $region32
      $region31: #{visual_transformer_forward.8} parent=27 // pred_region
        %p156 = scmp.lt.s32.totalorder %s10, 1
        %s157 = scalar_select %p156, %s10, 1
        %s158 = smul.addr %s157, 3
        %s159 = smul.addr %s158, 8
        %s160 = scalar_lea.vmem %s0, %s159
      $region32: #{visual_transformer_forward.8} parent=27 // pred_fallthru
        _
    $region28: #{visual_transformer_forward.8} parent=5 // pred_fallthru
      _
    %p161 = scmp.le.s32.totalorder 1, %s10
    %p162 = scmp.lt.s32.totalorder %s10, 3
    %p163 = pnand %p161, %p162
    %p164 = pneg %p163
    // Predicated region
    $region33: #{visual_transformer_forward.8} parent=5 // pred_check
      _
    $region34: #{visual_transformer_forward.8} parent=5 // pred_check_branch
      %166 = sbr.rel (%p163) target = $region36
    $region35: #{visual_transformer_forward.8} parent=5 // pred_region
      %s167 = ssub.s32 %s10, 1
      %p168 = scmp.lt.s32.totalorder %s15, 1
      %s169 = scalar_select %p168, %s15, 1
      %s170 = smul.addr %s169, 3
      %s171 = smul.addr %s170, 8
      %s172 = scalar_lea.vmem %s0, %s171
      %p173 = pneg %p36
      %p174 = pneg %p33
      %p175 = pneg %p57
      %p176 = pneg %p54
      %p177 = pneg %p78
      %p178 = pneg %p75
      %p179 = pneg %p99
      %p180 = pneg %p96
      %p181 = pneg %p125
      %p182 = pneg %p122
      %p183 = scmp.lt.s32.totalorder %s15, 1
      %s184 = scalar_select %p183, %s15, 1
      %s185 = smul.addr %s184, 3
      %s186 = smul.addr %s185, 8
      %s187 = scalar_lea.vmem %s4, %s186
      %p188 = scmp.lt.s32.totalorder %s15, 1
      %s189 = scalar_select %p188, %s15, 1
      %s190 = smul.addr %s189, 3
      %s191 = smul.addr %s190, 8
      %s192 = scalar_lea.vmem %s0, %s191
      %p193 = scmp.lt.s32.totalorder %s15, 1
      %s194 = scalar_select %p193, %s15, 1
      %s195 = smul.addr %s194, 3
      %s196 = smul.addr %s195, 8
      %s197 = scalar_lea.vmem %s4, %s196
      %v198 = vld [vmem:[%s192] sm:$0xff]
      %v199 = vld [vmem:[%s192 + $0x8] sm:$0xff]
      %v200 = vld [vmem:[%s192 + $0x10] sm:$0x1]
      %v201 = vld [vmem:[%s1] sm:$0xff]
      %v202 = vld [vmem:[%s1 + $0x8] sm:$0xff]
      %v203 = vld [vmem:[%s1 + $0x10] sm:$0x1]
      %v204 = vadd.f32 %v198, %v201
      %v205 = vadd.f32 %v199, %v202
      %v206 = vadd.f32 %v200, %v203
      %v207 = vld [vmem:[%s2] sm:$0x1]
      %v208 = vld [vmem:[%s3] sm:$0x1]
      %vm209 = vcmask 261120
      %v210 = vsel %vm209, %v204, 0.0
      %211 = vadd.xlane.f32.xlu0 %v210
      %v212 = vpop.xlane.xlu0 %211
      %v213 = vsel %vm209, %v205, 0.0
      %214 = vadd.xlane.f32.xlu0 %v213
      %v215 = vpop.xlane.xlu0 %214
      %vm216 = vcmask 253952
      %v217 = vsel %vm216, %v206, 0.0
      %218 = vadd.xlane.f32.xlu0 %v217
      %v219 = vpop.xlane.xlu0 %218
      %v220 = vrcp.pop 32.0
      %v221 = vmul.f32 %v212, %v220
      %v222 = vmul.f32 %v215, %v220
      %v223 = vmul.f32 %v219, %v220
      %v224 = vsub.f32 %v204, %v221
      %v225 = vsub.f32 %v205, %v222
      %v226 = vsub.f32 %v206, %v223
      %v227 = vmul.f32 %v224, %v224
      %v228 = vmul.f32 %v225, %v225
      %v229 = vmul.f32 %v226, %v226
      %v230 = vsel %vm209, %v227, 0.0
      %231 = vadd.xlane.f32.xlu0 %v230
      %v232 = vpop.xlane.xlu0 %231
      %v233 = vsel %vm209, %v228, 0.0
      %234 = vadd.xlane.f32.xlu0 %v233
      %v235 = vpop.xlane.xlu0 %234
      %v236 = vsel %vm216, %v229, 0.0
      %237 = vadd.xlane.f32.xlu0 %v236
      %v238 = vpop.xlane.xlu0 %237
      %v239 = vmul.f32 %v232, %v220
      %v240 = vmul.f32 %v235, %v220
      %v241 = vmul.f32 %v238, %v220
      %v242 = vadd.f32 %v239, 1e-05
      %v243 = vadd.f32 %v240, 1e-05
      %v244 = vadd.f32 %v241, 1e-05
      %v245 = vrsqrt.pop %v242
      %v246 = vrsqrt.pop %v243
      %v247 = vrsqrt.pop %v244
      %v248 = vmul.f32 %v224, %v245
      %v249 = vmul.f32 %v225, %v246
      %v250 = vmul.f32 %v226, %v247
      %v252 = vlaneseq
      %v253 = vshrl.u32 %v252, 7
      %v254 = vsub.s32 0, %v253
      %v255 = vrot.slane %v207, %v254
      %v257 = vmul.f32 %v248, %v255
      %v258 = vmul.f32 %v249, %v255
      %v259 = vmul.f32 %v250, %v255
      %v261 = vlaneseq
      %v262 = vshrl.u32 %v261, 7
      %v263 = vsub.s32 0, %v262
      %v264 = vrot.slane %v208, %v263
      %v266 = vadd.f32 %v257, %v264
      %v267 = vadd.f32 %v258, %v264
      %v268 = vadd.f32 %v259, %v264
      %269 = vst.msk [vmem:[%s197] sm:$0xff] %vm209, %v266
      %270 = vst.msk [vmem:[%s197 + $0x8] sm:$0xff] %vm209, %v267
      %271 = vst.msk [vmem:[%s197 + $0x10] sm:$0x1] %vm216, %v268
      %p272 = scmp.lt.s32.totalorder %s15, 1
      %s273 = scalar_select %p272, %s15, 1
      %s274 = smul.addr %s273, 3
      %s275 = smul.addr %s274, 8
      %s276 = scalar_lea.vmem %s4, %s275
      // Predicated region
      $region37: #{visual_transformer_forward.8} parent=35 // pred_check
        %p277 = pneg %p122
      $region38: #{visual_transformer_forward.8} parent=35 // pred_check_branch
        %279 = sbr.rel (%p277) target = $region40
      $region39: #{visual_transformer_forward.8} parent=35 // pred_region
        _
      $region40: #{visual_transformer_forward.8} parent=35 // pred_fallthru
        _
    $region36: #{visual_transformer_forward.8} parent=5 // pred_fallthru
      _
    %p280 = scmp.le.s32.totalorder 2, %s10
    // Predicated region
    $region41: #{visual_transformer_forward.8} parent=5 // pred_check
      %p281 = pneg %p280
    $region42: #{visual_transformer_forward.8} parent=5 // pred_check_branch
      %283 = sbr.rel (%p281) target = $region44
    $region43: #{visual_transformer_forward.8} parent=5 // pred_region
      %s284 = ssub.s32 %s10, 2
      // Predicated region
      $region45: #{visual_transformer_forward.8} parent=43 // pred_check
        %p285 = pneg %p128
      $region46: #{visual_transformer_forward.8} parent=43 // pred_check_branch
        %287 = sbr.rel (%p285) target = $region48
      $region47: #{visual_transformer_forward.8} parent=43 // pred_region
        %p288 = scmp.lt.s32.totalorder %s16, 1
        %s289 = scalar_select %p288, %s16, 1
        %s290 = smul.addr %s289, 3
        %s291 = smul.addr %s290, 8
        %s292 = scalar_lea.vmem %s4, %s291
      $region48: #{visual_transformer_forward.8} parent=43 // pred_fallthru
        _
    $region44: #{visual_transformer_forward.8} parent=5 // pred_fallthru
      _
  $region6: #{visual_transformer_forward.8} parent=0 // loop_footer
    %s14 = sadd.s32 1, %s10
  $region7: #{visual_transformer_forward.8} parent=0 // loop_footer_branch
    %9 = sbr.rel target = $region3
  $region8: #{visual_transformer_forward.8} parent=0 // loop_exit
    _

// kernel: visual_transformer_forward.13
$region0: #{visual_transformer_forward.13}
  #allocation0 [shape = 'u32[]', space=smem, size = 0x4, offset = 0x4, fixed_abs, tag = 'smem constant byte address 0x4 - core index']
  #allocation1 [shape = 'u32[144,128]{1,0:T(1,128)}', space=vmem, size = 0x12000, scoped, tag = 'internal scratch']
  %s0 = inlined_call_operand.vmem [shape: f32[2,17,32], index: 0, kind: input, shape index: {}]
  %s1 = inlined_call_operand.vmem [shape: f32[1,32], index: 1, kind: input, shape index: {}]
  %s2 = inlined_call_operand.vmem [shape: f32[1,32], index: 2, kind: input, shape index: {}]
  %s3 = inlined_call_operand.vmem [shape: f32[2,17,32], index: 3, kind: output, shape index: {}]
  %s4 = sld [smem:[#allocation0]]
  $region45: #{visual_transformer_forward.13} parent=0
    _
  %s6 = ssub.s32 1, %s4
  %s7 = scalar_select 0, %s6, %s4
  loop: start=0, step=1, limit=4
  $region2: #{visual_transformer_forward.13} parent=0 // loop_pre_header
    _
  $region3: #{visual_transformer_forward.13} parent=0 // loop_header
    %s9 = sphi 0, %s13
    %p10 = scmp.ge.s32.totalorder %s9, 4
    %s19 = sphi 0, %s21
    %s22 = sphi 0, %s19
    %s23 = sphi 0, %s22
    %s39 = sphi 0, %s23
    %s43 = sphi 0, %s43
    %s45 = sphi 0, %s43
    %s46 = sphi 0, %s45
    %s60 = sphi 0, %s46
    %s64 = sphi 0, %s64
    %s66 = sphi 0, %s64
    %s67 = sphi 0, %s66
    %s81 = sphi 0, %s67
    %s87 = sphi 0, %s89
    %s90 = sphi 0, %s87
    %s91 = sphi 0, %s90
    %s107 = sphi 0, %s91
  $region4: #{visual_transformer_forward.13} parent=0 // loop_header_branch
    %12 = sbr.rel (%p10) target = $region8
  $region5: #{visual_transformer_forward.13} parent=0 // loop_body
    %s14 = ssub.s32 %s9, 1
    %s15 = ssub.s32 %s9, 2
    %s16 = sadd.s32 %s9, 1
    %s17 = ssub.s32 %s9, %s16
    %p18 = scmp.eq.s32.totalorder %s17, 0
    %s20 = sadd.s32 %s19, 1
    %s21 = scalar_select %p18, %s19, %s20
    %p24 = pneg %p18
    %p25 = scmp.eq.s32.totalorder %s9, 1
    %p26 = por %p24, %p25
    %p27 = scmp.ne.s32.totalorder %s19, %s22
    %p28 = scmp.eq.s32.totalorder %s9, 0
    %p29 = por %p27, %p28
    %p30 = scmp.ne.s32.totalorder %s19, %s22
    %p31 = scmp.eq.s32.totalorder %s14, 1
    %p32 = por %p30, %p31
    %p33 = scmp.ne.s32.totalorder %s22, %s23
    %p34 = scmp.eq.s32.totalorder %s14, 0
    %p35 = por %p33, %p34
    %p36 = scmp.ne.s32.totalorder %s22, %s23
    %p37 = scmp.eq.s32.totalorder %s15, 1
    %p38 = por %p36, %p37
    %p40 = scmp.ne.s32.totalorder %s23, %s39
    %p41 = scmp.eq.s32.totalorder %s15, 0
    %p42 = por %p40, %p41
    %s44 = sadd.s32 %s43, 1
    %p47 = scmp.eq.s32.totalorder %s9, 1
    %p48 = scmp.ne.s32.totalorder %s43, %s45
    %p49 = scmp.eq.s32.totalorder %s9, 0
    %p50 = por %p48, %p49
    %p51 = scmp.ne.s32.totalorder %s43, %s45
    %p52 = scmp.eq.s32.totalorder %s14, 1
    %p53 = por %p51, %p52
    %p54 = scmp.ne.s32.totalorder %s45, %s46
    %p55 = scmp.eq.s32.totalorder %s14, 0
    %p56 = por %p54, %p55
    %p57 = scmp.ne.s32.totalorder %s45, %s46
    %p58 = scmp.eq.s32.totalorder %s15, 1
    %p59 = por %p57, %p58
    %p61 = scmp.ne.s32.totalorder %s46, %s60
    %p62 = scmp.eq.s32.totalorder %s15, 0
    %p63 = por %p61, %p62
    %s65 = sadd.s32 %s64, 1
    %p68 = scmp.eq.s32.totalorder %s9, 1
    %p69 = scmp.ne.s32.totalorder %s64, %s66
    %p70 = scmp.eq.s32.totalorder %s9, 0
    %p71 = por %p69, %p70
    %p72 = scmp.ne.s32.totalorder %s64, %s66
    %p73 = scmp.eq.s32.totalorder %s14, 1
    %p74 = por %p72, %p73
    %p75 = scmp.ne.s32.totalorder %s66, %s67
    %p76 = scmp.eq.s32.totalorder %s14, 0
    %p77 = por %p75, %p76
    %p78 = scmp.ne.s32.totalorder %s66, %s67
    %p79 = scmp.eq.s32.totalorder %s15, 1
    %p80 = por %p78, %p79
    %p82 = scmp.ne.s32.totalorder %s67, %s81
    %p83 = scmp.eq.s32.totalorder %s15, 0
    %p84 = por %p82, %p83
    %s85 = ssub.s32 %s9, %s16
    %p86 = scmp.eq.s32.totalorder %s85, 0
    %s88 = sadd.s32 %s87, 1
    %s89 = scalar_select %p86, %s87, %s88
    %p92 = pneg %p86
    %p93 = scmp.eq.s32.totalorder %s9, 1
    %p94 = por %p92, %p93
    %p95 = scmp.ne.s32.totalorder %s87, %s90
    %p96 = scmp.eq.s32.totalorder %s9, 0
    %p97 = por %p95, %p96
    %p98 = scmp.ne.s32.totalorder %s87, %s90
    %p99 = scmp.eq.s32.totalorder %s14, 1
    %p100 = por %p98, %p99
    %p101 = scmp.ne.s32.totalorder %s90, %s91
    %p102 = scmp.eq.s32.totalorder %s14, 0
    %p103 = por %p101, %p102
    %p104 = scmp.ne.s32.totalorder %s90, %s91
    %p105 = scmp.eq.s32.totalorder %s15, 1
    %p106 = por %p104, %p105
    %p108 = scmp.ne.s32.totalorder %s91, %s107
    %p109 = scmp.eq.s32.totalorder %s15, 0
    %p110 = por %p108, %p109
    %p111 = scmp.le.s32.totalorder 1, %s9
    %p112 = scmp.lt.s32.totalorder %s9, 3
    %p113 = pnand %p111, %p112
    %p114 = pneg %p113
    // Predicated region
    $region9: #{visual_transformer_forward.13} parent=5 // pred_check
      _
    $region10: #{visual_transformer_forward.13} parent=5 // pred_check_branch
      %116 = sbr.rel (%p113) target = $region12
    $region11: #{visual_transformer_forward.13} parent=5 // pred_region
      %s117 = ssub.s32 %s9, 1
      // Predicated region
      $region13: #{visual_transformer_forward.13} parent=11 // pred_check
        %p118 = pneg %p56
      $region14: #{visual_transformer_forward.13} parent=11 // pred_check_branch
        %120 = sbr.rel (%p118) target = $region16
      $region15: #{visual_transformer_forward.13} parent=11 // pred_region
        _
      $region16: #{visual_transformer_forward.13} parent=11 // pred_fallthru
        _
      // Predicated region
      $region17: #{visual_transformer_forward.13} parent=11 // pred_check
        %p121 = pneg %p77
      $region18: #{visual_transformer_forward.13} parent=11 // pred_check_branch
        %123 = sbr.rel (%p121) target = $region20
      $region19: #{visual_transformer_forward.13} parent=11 // pred_region
        _
      $region20: #{visual_transformer_forward.13} parent=11 // pred_fallthru
        _
    $region12: #{visual_transformer_forward.13} parent=5 // pred_fallthru
      _
    %p124 = scmp.lt.s32.totalorder %s9, 2
    // Predicated region
    $region21: #{visual_transformer_forward.13} parent=5 // pred_check
      %p125 = pneg %p124
    $region22: #{visual_transformer_forward.13} parent=5 // pred_check_branch
      %127 = sbr.rel (%p125) target = $region24
    $region23: #{visual_transformer_forward.13} parent=5 // pred_region
      // Predicated region
      $region25: #{visual_transformer_forward.13} parent=23 // pred_check
        %p128 = pneg %p29
      $region26: #{visual_transformer_forward.13} parent=23 // pred_check_branch
        %130 = sbr.rel (%p128) target = $region28
      $region27: #{visual_transformer_forward.13} parent=23 // pred_region
        %p131 = scmp.lt.s32.totalorder %s9, 1
        %s132 = scalar_select %p131, %s9, 1
        %s133 = smul.addr %s132, 3
        %s134 = smul.addr %s133, 8
        %s135 = scalar_lea.vmem %s0, %s134
      $region28: #{visual_transformer_forward.13} parent=23 // pred_fallthru
        _
    $region24: #{visual_transformer_forward.13} parent=5 // pred_fallthru
      _
    %p136 = scmp.le.s32.totalorder 1, %s9
    %p137 = scmp.lt.s32.totalorder %s9, 3
    %p138 = pnand %p136, %p137
    %p139 = pneg %p138
    // Predicated region
    $region29: #{visual_transformer_forward.13} parent=5 // pred_check
      _
    $region30: #{visual_transformer_forward.13} parent=5 // pred_check_branch
      %141 = sbr.rel (%p138) target = $region32
    $region31: #{visual_transformer_forward.13} parent=5 // pred_region
      %s142 = ssub.s32 %s9, 1
      %p143 = scmp.lt.s32.totalorder %s14, 1
      %s144 = scalar_select %p143, %s14, 1
      %s145 = smul.addr %s144, 3
      %s146 = smul.addr %s145, 8
      %s147 = scalar_lea.vmem %s0, %s146
      %p148 = pneg %p35
      %p149 = pneg %p32
      %p150 = pneg %p56
      %p151 = pneg %p53
      %p152 = pneg %p77
      %p153 = pneg %p74
      %p154 = pneg %p103
      %p155 = pneg %p100
      %p156 = scmp.lt.s32.totalorder %s14, 1
      %s157 = scalar_select %p156, %s14, 1
      %s158 = smul.addr %s157, 3
      %s159 = smul.addr %s158, 8
      %s160 = scalar_lea.vmem %s3, %s159
      %p161 = scmp.lt.s32.totalorder %s14, 1
      %s162 = scalar_select %p161, %s14, 1
      %s163 = smul.addr %s162, 3
      %s164 = smul.addr %s163, 8
      %s165 = scalar_lea.vmem %s0, %s164
      %p166 = scmp.lt.s32.totalorder %s14, 1
      %s167 = scalar_select %p166, %s14, 1
      %s168 = smul.addr %s167, 3
      %s169 = smul.addr %s168, 8
      %s170 = scalar_lea.vmem %s3, %s169
      %v171 = vld [vmem:[%s165] sm:$0xff]
      %v172 = vld [vmem:[%s165 + $0x8] sm:$0xff]
      %v173 = vld [vmem:[%s165 + $0x10] sm:$0x1]
      %v174 = vld [vmem:[%s1] sm:$0x1]
      %v175 = vld [vmem:[%s2] sm:$0x1]
      %vm176 = vcmask 261120
      %v177 = vsel %vm176, %v171, 0.0
      %178 = vadd.xlane.f32.xlu0 %v177
      %v179 = vpop.xlane.xlu0 %178
      %v180 = vsel %vm176, %v172, 0.0
      %181 = vadd.xlane.f32.xlu0 %v180
      %v182 = vpop.xlane.xlu0 %181
      %vm183 = vcmask 253952
      %v184 = vsel %vm183, %v173, 0.0
      %185 = vadd.xlane.f32.xlu0 %v184
      %v186 = vpop.xlane.xlu0 %185
      %v187 = vrcp.pop 32.0
      %v188 = vmul.f32 %v179, %v187
      %v189 = vmul.f32 %v182, %v187
      %v190 = vmul.f32 %v186, %v187
      %v191 = vsub.f32 %v171, %v188
      %v192 = vsub.f32 %v172, %v189
      %v193 = vsub.f32 %v173, %v190
      %v194 = vmul.f32 %v191, %v191
      %v195 = vmul.f32 %v192, %v192
      %v196 = vmul.f32 %v193, %v193
      %v197 = vsel %vm176, %v194, 0.0
      %198 = vadd.xlane.f32.xlu0 %v197
      %v199 = vpop.xlane.xlu0 %198
      %v200 = vsel %vm176, %v195, 0.0
      %201 = vadd.xlane.f32.xlu0 %v200
      %v202 = vpop.xlane.xlu0 %201
      %v203 = vsel %vm183, %v196, 0.0
      %204 = vadd.xlane.f32.xlu0 %v203
      %v205 = vpop.xlane.xlu0 %204
      %v206 = vmul.f32 %v199, %v187
      %v207 = vmul.f32 %v202, %v187
      %v208 = vmul.f32 %v205, %v187
      %v209 = vadd.f32 %v206, 1e-05
      %v210 = vadd.f32 %v207, 1e-05
      %v211 = vadd.f32 %v208, 1e-05
      %v212 = vrsqrt.pop %v209
      %v213 = vrsqrt.pop %v210
      %v214 = vrsqrt.pop %v211
      %v215 = vmul.f32 %v191, %v212
      %v216 = vmul.f32 %v192, %v213
      %v217 = vmul.f32 %v193, %v214
      %v219 = vlaneseq
      %v220 = vshrl.u32 %v219, 7
      %v221 = vsub.s32 0, %v220
      %v222 = vrot.slane %v174, %v221
      %v224 = vmul.f32 %v215, %v222
      %v225 = vmul.f32 %v216, %v222
      %v226 = vmul.f32 %v217, %v222
      %v228 = vlaneseq
      %v229 = vshrl.u32 %v228, 7
      %v230 = vsub.s32 0, %v229
      %v231 = vrot.slane %v175, %v230
      %v233 = vadd.f32 %v224, %v231
      %v234 = vadd.f32 %v225, %v231
      %v235 = vadd.f32 %v226, %v231
      %236 = vst.msk [vmem:[%s170] sm:$0xff] %vm176, %v233
      %237 = vst.msk [vmem:[%s170 + $0x8] sm:$0xff] %vm176, %v234
      %238 = vst.msk [vmem:[%s170 + $0x10] sm:$0x1] %vm183, %v235
      %p239 = scmp.lt.s32.totalorder %s14, 1
      %s240 = scalar_select %p239, %s14, 1
      %s241 = smul.addr %s240, 3
      %s242 = smul.addr %s241, 8
      %s243 = scalar_lea.vmem %s3, %s242
      // Predicated region
      $region33: #{visual_transformer_forward.13} parent=31 // pred_check
        %p244 = pneg %p100
      $region34: #{visual_transformer_forward.13} parent=31 // pred_check_branch
        %246 = sbr.rel (%p244) target = $region36
      $region35: #{visual_transformer_forward.13} parent=31 // pred_region
        _
      $region36: #{visual_transformer_forward.13} parent=31 // pred_fallthru
        _
    $region32: #{visual_transformer_forward.13} parent=5 // pred_fallthru
      _
    %p247 = scmp.le.s32.totalorder 2, %s9
    // Predicated region
    $region37: #{visual_transformer_forward.13} parent=5 // pred_check
      %p248 = pneg %p247
    $region38: #{visual_transformer_forward.13} parent=5 // pred_check_branch
      %250 = sbr.rel (%p248) target = $region40
    $region39: #{visual_transformer_forward.13} parent=5 // pred_region
      %s251 = ssub.s32 %s9, 2
      // Predicated region
      $region41: #{visual_transformer_forward.13} parent=39 // pred_check
        %p252 = pneg %p106
      $region42: #{visual_transformer_forward.13} parent=39 // pred_check_branch
        %254 = sbr.rel (%p252) target = $region44
      $region43: #{visual_transformer_forward.13} parent=39 // pred_region
        %p255 = scmp.lt.s32.totalorder %s15, 1
        %s256 = scalar_select %p255, %s15, 1
        %s257 = smul.addr %s256, 3
        %s258 = smul.addr %s257, 8
        %s259 = scalar_lea.vmem %s3, %s258
      $region44: #{visual_transformer_forward.13} parent=39 // pred_fallthru
        _
    $region40: #{visual_transformer_forward.13} parent=5 // pred_fallthru
      _
  $region6: #{visual_transformer_forward.13} parent=0 // loop_footer
    %s13 = sadd.s32 1, %s9
  $region7: #{visual_transformer_forward.13} parent=0 // loop_footer_branch
    %8 = sbr.rel target = $region3
  $region8: #{visual_transformer_forward.13} parent=0 // loop_exit
    _

// kernel: visual_transformer_forward.9
$region0: #{visual_transformer_forward.9}
  #allocation0 [shape = 'u32[]', space=smem, size = 0x4, offset = 0x4, fixed_abs, tag = 'smem constant byte address 0x4 - core index']
  #allocation1 [shape = 'u32[144,128]{1,0:T(1,128)}', space=vmem, size = 0x12000, scoped, tag = 'internal scratch']
  %s0 = inlined_call_operand.vmem [shape: f32[2,17,32], index: 0, kind: input, shape index: {}]
  %s1 = inlined_call_operand.vmem [shape: f32[1,32], index: 1, kind: input, shape index: {}]
  %s2 = inlined_call_operand.vmem [shape: f32[1,32], index: 2, kind: input, shape index: {}]
  %s3 = inlined_call_operand.vmem [shape: f32[4,32,8], index: 3, kind: input, shape index: {}]
  %s4 = inlined_call_operand.vmem [shape: f32[4,32,8], index: 4, kind: input, shape index: {}]
  %s5 = inlined_call_operand.vmem [shape: f32[4,32,8], index: 5, kind: input, shape index: {}]
  %s6 = inlined_call_operand.vmem [shape: f32[4,1,8], index: 6, kind: input, shape index: {}]
  %s7 = inlined_call_operand.vmem [shape: f32[4,1,8], index: 7, kind: input, shape index: {}]
  %s8 = inlined_call_operand.vmem [shape: f32[4,1,8], index: 8, kind: input, shape index: {}]
  %s9 = inlined_call_operand.vmem [shape: f32[4,8,32], index: 9, kind: input, shape index: {}]
  %s10 = inlined_call_operand.vmem [shape: f32[1,32], index: 10, kind: input, shape index: {}]
  %s11 = inlined_call_operand.vmem [shape: f32[2,17,32], index: 11, kind: output, shape index: {}]
  %s12 = sld [smem:[#allocation0]]
  $region77: #{visual_transformer_forward.9} parent=0
    _
  %s14 = ssub.s32 1, %s12
  %s15 = scalar_select 0, %s14, %s12
  loop: start=0, step=1, limit=4
  $region2: #{visual_transformer_forward.9} parent=0 // loop_pre_header
    _
  $region3: #{visual_transformer_forward.9} parent=0 // loop_header
    %s17 = sphi 0, %s21
    %p18 = scmp.ge.s32.totalorder %s17, 4
    %s27 = sphi 0, %s29
    %s30 = sphi 0, %s27
    %s31 = sphi 0, %s30
    %s47 = sphi 0, %s31
    %s51 = sphi 0, %s51
    %s53 = sphi 0, %s51
    %s54 = sphi 0, %s53
    %s68 = sphi 0, %s54
    %s72 = sphi 0, %s72
    %s74 = sphi 0, %s72
    %s75 = sphi 0, %s74
    %s89 = sphi 0, %s75
    %s93 = sphi 0, %s93
    %s95 = sphi 0, %s93
    %s96 = sphi 0, %s95
    %s110 = sphi 0, %s96
    %s114 = sphi 0, %s114
    %s116 = sphi 0, %s114
    %s117 = sphi 0, %s116
    %s131 = sphi 0, %s117
    %s135 = sphi 0, %s135
    %s137 = sphi 0, %s135
    %s138 = sphi 0, %s137
    %s152 = sphi 0, %s138
    %s156 = sphi 0, %s156
    %s158 = sphi 0, %s156
    %s159 = sphi 0, %s158
    %s173 = sphi 0, %s159
    %s177 = sphi 0, %s177
    %s179 = sphi 0, %s177
    %s180 = sphi 0, %s179
    %s194 = sphi 0, %s180
    %s198 = sphi 0, %s198
    %s200 = sphi 0, %s198
    %s201 = sphi 0, %s200
    %s215 = sphi 0, %s201
    %s219 = sphi 0, %s219
    %s221 = sphi 0, %s219
    %s222 = sphi 0, %s221
    %s236 = sphi 0, %s222
    %s240 = sphi 0, %s240
    %s242 = sphi 0, %s240
    %s243 = sphi 0, %s242
    %s257 = sphi 0, %s243
    %s263 = sphi 0, %s265
    %s266 = sphi 0, %s263
    %s267 = sphi 0, %s266
    %s283 = sphi 0, %s267
  $region4: #{visual_transformer_forward.9} parent=0 // loop_header_branch
    %20 = sbr.rel (%p18) target = $region8
  $region5: #{visual_transformer_forward.9} parent=0 // loop_body
    %s22 = ssub.s32 %s17, 1
    %s23 = ssub.s32 %s17, 2
    %s24 = sadd.s32 %s17, 1
    %s25 = ssub.s32 %s17, %s24
    %p26 = scmp.eq.s32.totalorder %s25, 0
    %s28 = sadd.s32 %s27, 1
    %s29 = scalar_select %p26, %s27, %s28
    %p32 = pneg %p26
    %p33 = scmp.eq.s32.totalorder %s17, 1
    %p34 = por %p32, %p33
    %p35 = scmp.ne.s32.totalorder %s27, %s30
    %p36 = scmp.eq.s32.totalorder %s17, 0
    %p37 = por %p35, %p36
    %p38 = scmp.ne.s32.totalorder %s27, %s30
    %p39 = scmp.eq.s32.totalorder %s22, 1
    %p40 = por %p38, %p39
    %p41 = scmp.ne.s32.totalorder %s30, %s31
    %p42 = scmp.eq.s32.totalorder %s22, 0
    %p43 = por %p41, %p42
    %p44 = scmp.ne.s32.totalorder %s30, %s31
    %p45 = scmp.eq.s32.totalorder %s23, 1
    %p46 = por %p44, %p45
    %p48 = scmp.ne.s32.totalorder %s31, %s47
    %p49 = scmp.eq.s32.totalorder %s23, 0
    %p50 = por %p48, %p49
    %s52 = sadd.s32 %s51, 1
    %p55 = scmp.eq.s32.totalorder %s17, 1
    %p56 = scmp.ne.s32.totalorder %s51, %s53
    %p57 = scmp.eq.s32.totalorder %s17, 0
    %p58 = por %p56, %p57
    %p59 = scmp.ne.s32.totalorder %s51, %s53
    %p60 = scmp.eq.s32.totalorder %s22, 1
    %p61 = por %p59, %p60
    %p62 = scmp.ne.s32.totalorder %s53, %s54
    %p63 = scmp.eq.s32.totalorder %s22, 0
    %p64 = por %p62, %p63
    %p65 = scmp.ne.s32.totalorder %s53, %s54
    %p66 = scmp.eq.s32.totalorder %s23, 1
    %p67 = por %p65, %p66
    %p69 = scmp.ne.s32.totalorder %s54, %s68
    %p70 = scmp.eq.s32.totalorder %s23, 0
    %p71 = por %p69, %p70
    %s73 = sadd.s32 %s72, 1
    %p76 = scmp.eq.s32.totalorder %s17, 1
    %p77 = scmp.ne.s32.totalorder %s72, %s74
    %p78 = scmp.eq.s32.totalorder %s17, 0
    %p79 = por %p77, %p78
    %p80 = scmp.ne.s32.totalorder %s72, %s74
    %p81 = scmp.eq.s32.totalorder %s22, 1
    %p82 = por %p80, %p81
    %p83 = scmp.ne.s32.totalorder %s74, %s75
    %p84 = scmp.eq.s32.totalorder %s22, 0
    %p85 = por %p83, %p84
    %p86 = scmp.ne.s32.totalorder %s74, %s75
    %p87 = scmp.eq.s32.totalorder %s23, 1
    %p88 = por %p86, %p87
    %p90 = scmp.ne.s32.totalorder %s75, %s89
    %p91 = scmp.eq.s32.totalorder %s23, 0
    %p92 = por %p90, %p91
    %s94 = sadd.s32 %s93, 1
    %p97 = scmp.eq.s32.totalorder %s17, 1
    %p98 = scmp.ne.s32.totalorder %s93, %s95
    %p99 = scmp.eq.s32.totalorder %s17, 0
    %p100 = por %p98, %p99
    %p101 = scmp.ne.s32.totalorder %s93, %s95
    %p102 = scmp.eq.s32.totalorder %s22, 1
    %p103 = por %p101, %p102
    %p104 = scmp.ne.s32.totalorder %s95, %s96
    %p105 = scmp.eq.s32.totalorder %s22, 0
    %p106 = por %p104, %p105
    %p107 = scmp.ne.s32.totalorder %s95, %s96
    %p108 = scmp.eq.s32.totalorder %s23, 1
    %p109 = por %p107, %p108
    %p111 = scmp.ne.s32.totalorder %s96, %s110
    %p112 = scmp.eq.s32.totalorder %s23, 0
    %p113 = por %p111, %p112
    %s115 = sadd.s32 %s114, 1
    %p118 = scmp.eq.s32.totalorder %s17, 1
    %p119 = scmp.ne.s32.totalorder %s114, %s116
    %p120 = scmp.eq.s32.totalorder %s17, 0
    %p121 = por %p119, %p120
    %p122 = scmp.ne.s32.totalorder %s114, %s116
    %p123 = scmp.eq.s32.totalorder %s22, 1
    %p124 = por %p122, %p123
    %p125 = scmp.ne.s32.totalorder %s116, %s117
    %p126 = scmp.eq.s32.totalorder %s22, 0
    %p127 = por %p125, %p126
    %p128 = scmp.ne.s32.totalorder %s116, %s117
    %p129 = scmp.eq.s32.totalorder %s23, 1
    %p130 = por %p128, %p129
    %p132 = scmp.ne.s32.totalorder %s117, %s131
    %p133 = scmp.eq.s32.totalorder %s23, 0
    %p134 = por %p132, %p133
    %s136 = sadd.s32 %s135, 1
    %p139 = scmp.eq.s32.totalorder %s17, 1
    %p140 = scmp.ne.s32.totalorder %s135, %s137
    %p141 = scmp.eq.s32.totalorder %s17, 0
    %p142 = por %p140, %p141
    %p143 = scmp.ne.s32.totalorder %s135, %s137
    %p144 = scmp.eq.s32.totalorder %s22, 1
    %p145 = por %p143, %p144
    %p146 = scmp.ne.s32.totalorder %s137, %s138
    %p147 = scmp.eq.s32.totalorder %s22, 0
    %p148 = por %p146, %p147
    %p149 = scmp.ne.s32.totalorder %s137, %s138
    %p150 = scmp.eq.s32.totalorder %s23, 1
    %p151 = por %p149, %p150
    %p153 = scmp.ne.s32.totalorder %s138, %s152
    %p154 = scmp.eq.s32.totalorder %s23, 0
    %p155 = por %p153, %p154
    %s157 = sadd.s32 %s156, 1
    %p160 = scmp.eq.s32.totalorder %s17, 1
    %p161 = scmp.ne.s32.totalorder %s156, %s158
    %p162 = scmp.eq.s32.totalorder %s17, 0
    %p163 = por %p161, %p162
    %p164 = scmp.ne.s32.totalorder %s156, %s158
    %p165 = scmp.eq.s32.totalorder %s22, 1
    %p166 = por %p164, %p165
    %p167 = scmp.ne.s32.totalorder %s158, %s159
    %p168 = scmp.eq.s32.totalorder %s22, 0
    %p169 = por %p167, %p168
    %p170 = scmp.ne.s32.totalorder %s158, %s159
    %p171 = scmp.eq.s32.totalorder %s23, 1
    %p172 = por %p170, %p171
    %p174 = scmp.ne.s32.totalorder %s159, %s173
    %p175 = scmp.eq.s32.totalorder %s23, 0
    %p176 = por %p174, %p175
    %s178 = sadd.s32 %s177, 1
    %p181 = scmp.eq.s32.totalorder %s17, 1
    %p182 = scmp.ne.s32.totalorder %s177, %s179
    %p183 = scmp.eq.s32.totalorder %s17, 0
    %p184 = por %p182, %p183
    %p185 = scmp.ne.s32.totalorder %s177, %s179
    %p186 = scmp.eq.s32.totalorder %s22, 1
    %p187 = por %p185, %p186
    %p188 = scmp.ne.s32.totalorder %s179, %s180
    %p189 = scmp.eq.s32.totalorder %s22, 0
    %p190 = por %p188, %p189
    %p191 = scmp.ne.s32.totalorder %s179, %s180
    %p192 = scmp.eq.s32.totalorder %s23, 1
    %p193 = por %p191, %p192
    %p195 = scmp.ne.s32.totalorder %s180, %s194
    %p196 = scmp.eq.s32.totalorder %s23, 0
    %p197 = por %p195, %p196
    %s199 = sadd.s32 %s198, 1
    %p202 = scmp.eq.s32.totalorder %s17, 1
    %p203 = scmp.ne.s32.totalorder %s198, %s200
    %p204 = scmp.eq.s32.totalorder %s17, 0
    %p205 = por %p203, %p204
    %p206 = scmp.ne.s32.totalorder %s198, %s200
    %p207 = scmp.eq.s32.totalorder %s22, 1
    %p208 = por %p206, %p207
    %p209 = scmp.ne.s32.totalorder %s200, %s201
    %p210 = scmp.eq.s32.totalorder %s22, 0
    %p211 = por %p209, %p210
    %p212 = scmp.ne.s32.totalorder %s200, %s201
    %p213 = scmp.eq.s32.totalorder %s23, 1
    %p214 = por %p212, %p213
    %p216 = scmp.ne.s32.totalorder %s201, %s215
    %p217 = scmp.eq.s32.totalorder %s23, 0
    %p218 = por %p216, %p217
    %s220 = sadd.s32 %s219, 1
    %p223 = scmp.eq.s32.totalorder %s17, 1
    %p224 = scmp.ne.s32.totalorder %s219, %s221
    %p225 = scmp.eq.s32.totalorder %s17, 0
    %p226 = por %p224, %p225
    %p227 = scmp.ne.s32.totalorder %s219, %s221
    %p228 = scmp.eq.s32.totalorder %s22, 1
    %p229 = por %p227, %p228
    %p230 = scmp.ne.s32.totalorder %s221, %s222
    %p231 = scmp.eq.s32.totalorder %s22, 0
    %p232 = por %p230, %p231
    %p233 = scmp.ne.s32.totalorder %s221, %s222
    %p234 = scmp.eq.s32.totalorder %s23, 1
    %p235 = por %p233, %p234
    %p237 = scmp.ne.s32.totalorder %s222, %s236
    %p238 = scmp.eq.s32.totalorder %s23, 0
    %p239 = por %p237, %p238
    %s241 = sadd.s32 %s240, 1
    %p244 = scmp.eq.s32.totalorder %s17, 1
    %p245 = scmp.ne.s32.totalorder %s240, %s242
    %p246 = scmp.eq.s32.totalorder %s17, 0
    %p247 = por %p245, %p246
    %p248 = scmp.ne.s32.totalorder %s240, %s242
    %p249 = scmp.eq.s32.totalorder %s22, 1
    %p250 = por %p248, %p249
    %p251 = scmp.ne.s32.totalorder %s242, %s243
    %p252 = scmp.eq.s32.totalorder %s22, 0
    %p253 = por %p251, %p252
    %p254 = scmp.ne.s32.totalorder %s242, %s243
    %p255 = scmp.eq.s32.totalorder %s23, 1
    %p256 = por %p254, %p255
    %p258 = scmp.ne.s32.totalorder %s243, %s257
    %p259 = scmp.eq.s32.totalorder %s23, 0
    %p260 = por %p258, %p259
    %s261 = ssub.s32 %s17, %s24
    %p262 = scmp.eq.s32.totalorder %s261, 0
    %s264 = sadd.s32 %s263, 1
    %s265 = scalar_select %p262, %s263, %s264
    %p268 = pneg %p262
    %p269 = scmp.eq.s32.totalorder %s17, 1
    %p270 = por %p268, %p269
    %p271 = scmp.ne.s32.totalorder %s263, %s266
    %p272 = scmp.eq.s32.totalorder %s17, 0
    %p273 = por %p271, %p272
    %p274 = scmp.ne.s32.totalorder %s263, %s266
    %p275 = scmp.eq.s32.totalorder %s22, 1
    %p276 = por %p274, %p275
    %p277 = scmp.ne.s32.totalorder %s266, %s267
    %p278 = scmp.eq.s32.totalorder %s22, 0
    %p279 = por %p277, %p278
    %p280 = scmp.ne.s32.totalorder %s266, %s267
    %p281 = scmp.eq.s32.totalorder %s23, 1
    %p282 = por %p280, %p281
    %p284 = scmp.ne.s32.totalorder %s267, %s283
    %p285 = scmp.eq.s32.totalorder %s23, 0
    %p286 = por %p284, %p285
    %p287 = scmp.le.s32.totalorder 1, %s17
    %p288 = scmp.lt.s32.totalorder %s17, 3
    %p289 = pnand %p287, %p288
    %p290 = pneg %p289
    // Predicated region
    $region9: #{visual_transformer_forward.9} parent=5 // pred_check
      _
    $region10: #{visual_transformer_forward.9} parent=5 // pred_check_branch
      %292 = sbr.rel (%p289) target = $region12
    $region11: #{visual_transformer_forward.9} parent=5 // pred_region
      %s293 = ssub.s32 %s17, 1
      // Predicated region
      $region13: #{visual_transformer_forward.9} parent=11 // pred_check
        %p294 = pneg %p64
      $region14: #{visual_transformer_forward.9} parent=11 // pred_check_branch
        %296 = sbr.rel (%p294) target = $region16
      $region15: #{visual_transformer_forward.9} parent=11 // pred_region
        _
      $region16: #{visual_transformer_forward.9} parent=11 // pred_fallthru
        _
      // Predicated region
      $region17: #{visual_transformer_forward.9} parent=11 // pred_check
        %p297 = pneg %p85
      $region18: #{visual_transformer_forward.9} parent=11 // pred_check_branch
        %299 = sbr.rel (%p297) target = $region20
      $region19: #{visual_transformer_forward.9} parent=11 // pred_region
        _
      $region20: #{visual_transformer_forward.9} parent=11 // pred_fallthru
        _
      // Predicated region
      $region21: #{visual_transformer_forward.9} parent=11 // pred_check
        %p300 = pneg %p106
      $region22: #{visual_transformer_forward.9} parent=11 // pred_check_branch
        %302 = sbr.rel (%p300) target = $region24
      $region23: #{visual_transformer_forward.9} parent=11 // pred_region
        _
      $region24: #{visual_transformer_forward.9} parent=11 // pred_fallthru
        _
      // Predicated region
      $region25: #{visual_transformer_forward.9} parent=11 // pred_check
        %p303 = pneg %p127
      $region26: #{visual_transformer_forward.9} parent=11 // pred_check_branch
        %305 = sbr.rel (%p303) target = $region28
      $region27: #{visual_transformer_forward.9} parent=11 // pred_region
        _
      $region28: #{visual_transformer_forward.9} parent=11 // pred_fallthru
        _
      // Predicated region
      $region29: #{visual_transformer_forward.9} parent=11 // pred_check
        %p306 = pneg %p148
      $region30: #{visual_transformer_forward.9} parent=11 // pred_check_branch
        %308 = sbr.rel (%p306) target = $region32
      $region31: #{visual_transformer_forward.9} parent=11 // pred_region
        _
      $region32: #{visual_transformer_forward.9} parent=11 // pred_fallthru
        _
      // Predicated region
      $region33: #{visual_transformer_forward.9} parent=11 // pred_check
        %p309 = pneg %p169
      $region34: #{visual_transformer_forward.9} parent=11 // pred_check_branch
        %311 = sbr.rel (%p309) target = $region36
      $region35: #{visual_transformer_forward.9} parent=11 // pred_region
        _
      $region36: #{visual_transformer_forward.9} parent=11 // pred_fallthru
        _
      // Predicated region
      $region37: #{visual_transformer_forward.9} parent=11 // pred_check
        %p312 = pneg %p190
      $region38: #{visual_transformer_forward.9} parent=11 // pred_check_branch
        %314 = sbr.rel (%p312) target = $region40
      $region39: #{visual_transformer_forward.9} parent=11 // pred_region
        _
      $region40: #{visual_transformer_forward.9} parent=11 // pred_fallthru
        _
      // Predicated region
      $region41: #{visual_transformer_forward.9} parent=11 // pred_check
        %p315 = pneg %p211
      $region42: #{visual_transformer_forward.9} parent=11 // pred_check_branch
        %317 = sbr.rel (%p315) target = $region44
      $region43: #{visual_transformer_forward.9} parent=11 // pred_region
        _
      $region44: #{visual_transformer_forward.9} parent=11 // pred_fallthru
        _
      // Predicated region
      $region45: #{visual_transformer_forward.9} parent=11 // pred_check
        %p318 = pneg %p232
      $region46: #{visual_transformer_forward.9} parent=11 // pred_check_branch
        %320 = sbr.rel (%p318) target = $region48
      $region47: #{visual_transformer_forward.9} parent=11 // pred_region
        _
      $region48: #{visual_transformer_forward.9} parent=11 // pred_fallthru
        _
      // Predicated region
      $region49: #{visual_transformer_forward.9} parent=11 // pred_check
        %p321 = pneg %p253
      $region50: #{visual_transformer_forward.9} parent=11 // pred_check_branch
        %323 = sbr.rel (%p321) target = $region52
      $region51: #{visual_transformer_forward.9} parent=11 // pred_region
        _
      $region52: #{visual_transformer_forward.9} parent=11 // pred_fallthru
        _
    $region12: #{visual_transformer_forward.9} parent=5 // pred_fallthru
      _
    %p324 = scmp.lt.s32.totalorder %s17, 2
    // Predicated region
    $region53: #{visual_transformer_forward.9} parent=5 // pred_check
      %p325 = pneg %p324
    $region54: #{visual_transformer_forward.9} parent=5 // pred_check_branch
      %327 = sbr.rel (%p325) target = $region56
    $region55: #{visual_transformer_forward.9} parent=5 // pred_region
      // Predicated region
      $region57: #{visual_transformer_forward.9} parent=55 // pred_check
        %p328 = pneg %p37
      $region58: #{visual_transformer_forward.9} parent=55 // pred_check_branch
        %330 = sbr.rel (%p328) target = $region60
      $region59: #{visual_transformer_forward.9} parent=55 // pred_region
        %p331 = scmp.lt.s32.totalorder %s17, 1
        %s332 = scalar_select %p331, %s17, 1
        %s333 = smul.addr %s332, 3
        %s334 = smul.addr %s333, 8
        %s335 = scalar_lea.vmem %s0, %s334
      $region60: #{visual_transformer_forward.9} parent=55 // pred_fallthru
        _
    $region56: #{visual_transformer_forward.9} parent=5 // pred_fallthru
      _
    %p336 = scmp.le.s32.totalorder 1, %s17
    %p337 = scmp.lt.s32.totalorder %s17, 3
    %p338 = pnand %p336, %p337
    %p339 = pneg %p338
    // Predicated region
    $region61: #{visual_transformer_forward.9} parent=5 // pred_check
      _
    $region62: #{visual_transformer_forward.9} parent=5 // pred_check_branch
      %341 = sbr.rel (%p338) target = $region64
    $region63: #{visual_transformer_forward.9} parent=5 // pred_region
      %s342 = ssub.s32 %s17, 1
      %p343 = scmp.lt.s32.totalorder %s22, 1
      %s344 = scalar_select %p343, %s22, 1
      %s345 = smul.addr %s344, 3
      %s346 = smul.addr %s345, 8
      %s347 = scalar_lea.vmem %s0, %s346
      %p348 = pneg %p43
      %p349 = pneg %p40
      %p350 = pneg %p64
      %p351 = pneg %p61
      %p352 = pneg %p85
      %p353 = pneg %p82
      %p354 = pneg %p106
      %p355 = pneg %p103
      %p356 = pneg %p127
      %p357 = pneg %p124
      %p358 = pneg %p148
      %p359 = pneg %p145
      %p360 = pneg %p169
      %p361 = pneg %p166
      %p362 = pneg %p190
      %p363 = pneg %p187
      %p364 = pneg %p211
      %p365 = pneg %p208
      %p366 = pneg %p232
      %p367 = pneg %p229
      %p368 = pneg %p253
      %p369 = pneg %p250
      %p370 = pneg %p279
      %p371 = pneg %p276
      %p372 = scmp.lt.s32.totalorder %s22, 1
      %s373 = scalar_select %p372, %s22, 1
      %s374 = smul.addr %s373, 3
      %s375 = smul.addr %s374, 8
      %s376 = scalar_lea.vmem %s11, %s375
      %p377 = scmp.lt.s32.totalorder %s22, 1
      %s378 = scalar_select %p377, %s22, 1
      %s379 = smul.addr %s378, 3
      %s380 = smul.addr %s379, 8
      %s381 = scalar_lea.vmem %s0, %s380
      %p382 = scmp.lt.s32.totalorder %s22, 1
      %s383 = scalar_select %p382, %s22, 1
      %s384 = smul.addr %s383, 3
      %s385 = smul.addr %s384, 8
      %s386 = scalar_lea.vmem %s11, %s385
      %v387 = vld [vmem:[%s381] sm:$0xff]
      %v388 = vld [vmem:[%s381 + $0x8] sm:$0xff]
      %v389 = vld [vmem:[%s381 + $0x10] sm:$0x1]
      %v390 = vld [vmem:[%s1] sm:$0x1]
      %v391 = vld [vmem:[%s2] sm:$0x1]
      %vm392 = vcmask 261120
      %v393 = vsel %vm392, %v387, 0.0
      %394 = vadd.xlane.f32.xlu0 %v393
      %v395 = vpop.xlane.xlu0 %394
      %v396 = vsel %vm392, %v388, 0.0
      %397 = vadd.xlane.f32.xlu0 %v396
      %v398 = vpop.xlane.xlu0 %397
      %vm399 = vcmask 253952
      %v400 = vsel %vm399, %v389, 0.0
      %401 = vadd.xlane.f32.xlu0 %v400
      %v402 = vpop.xlane.xlu0 %401
      %v403 = vrcp.pop 32.0
      %v404 = vmul.f32 %v395, %v403
      %v405 = vmul.f32 %v398, %v403
      %v406 = vmul.f32 %v402, %v403
      %v407 = vsub.f32 %v387, %v404
      %v408 = vsub.f32 %v388, %v405
      %v409 = vsub.f32 %v389, %v406
      %v410 = vmul.f32 %v407, %v407
      %v411 = vmul.f32 %v408, %v408
      %v412 = vmul.f32 %v409, %v409
      %v413 = vsel %vm392, %v410, 0.0
      %414 = vadd.xlane.f32.xlu0 %v413
      %v415 = vpop.xlane.xlu0 %414
      %v416 = vsel %vm392, %v411, 0.0
      %417 = vadd.xlane.f32.xlu0 %v416
      %v418 = vpop.xlane.xlu0 %417
      %v419 = vsel %vm399, %v412, 0.0
      %420 = vadd.xlane.f32.xlu0 %v419
      %v421 = vpop.xlane.xlu0 %420
      %v422 = vmul.f32 %v415, %v403
      %v423 = vmul.f32 %v418, %v403
      %v424 = vmul.f32 %v421, %v403
      %v425 = vadd.f32 %v422, 1e-05
      %v426 = vadd.f32 %v423, 1e-05
      %v427 = vadd.f32 %v424, 1e-05
      %v428 = vrsqrt.pop %v425
      %v429 = vrsqrt.pop %v426
      %v430 = vrsqrt.pop %v427
      %v431 = vmul.f32 %v407, %v428
      %v432 = vmul.f32 %v408, %v429
      %v433 = vmul.f32 %v409, %v430
      %v435 = vlaneseq
      %v436 = vshrl.u32 %v435, 7
      %v437 = vsub.s32 0, %v436
      %v438 = vrot.slane %v390, %v437
      %v440 = vmul.f32 %v431, %v438
      %v441 = vmul.f32 %v432, %v438
      %v442 = vmul.f32 %v433, %v438
      %v444 = vlaneseq
      %v445 = vshrl.u32 %v444, 7
      %v446 = vsub.s32 0, %v445
      %v447 = vrot.slane %v391, %v446
      %v449 = vadd.f32 %v440, %v447
      %v450 = vadd.f32 %v441, %v447
      %v451 = vadd.f32 %v442, %v447
      %v452 = vld [vmem:[%s3] sm:$0xff]
      %v453 = vld [vmem:[%s3 + $0x8] sm:$0xff]
      %v454 = vld [vmem:[%s3 + $0x10] sm:$0xff]
      %v455 = vld [vmem:[%s3 + $0x18] sm:$0xff]
      %v456 = vld [vmem:[%s6] sm:$0x1]
      %v458 = vlaneseq
      %v459 = vshrl.u32 %v458, 7
      %v460 = vsub.s32 0, %v459
      %v461 = vrot.slane %v456, %v460
      %v464 = vsel %vm392, %v449, 0
      %v467 = vsel %vm392, %v450, 0
      %v470 = vsel %vm392, %v451, 0
      %472 = vmatprep.subr.mxu0 0.0
      %473 = vmatpush1.msra.mxu0 0.0
      %474 = vmatprep.subr.mxu0 0.0
      %475 = vmatpush1.msra.mxu0 0.0
      %476 = vmatprep.subr.mxu0 0.0
      %477 = vmatpush1.msra.mxu0 0.0
      %478 = vmatprep.subr.mxu0 0.0
      %479 = vmatpush1.msra.mxu0 0.0
      %480 = vmatprep.subr.mxu0 0.0
      %481 = vmatpush1.msra.mxu0 0.0
      %482 = vmatprep.subr.mxu0 0.0
      %483 = vmatpush1.msra.mxu0 0.0
      %484 = vmatprep.subr.mxu0 0.0
      %485 = vmatpush1.msra.mxu0 0.0
      %486 = vmatprep.subr.mxu0 0.0
      %487 = vmatpush1.msra.mxu0 0.0
      %488 = vmatprep.subr.mxu0 0.0
      %489 = vmatpush1.msra.mxu0 0.0
      %490 = vmatprep.subr.mxu0 0.0
      %491 = vmatpush1.msra.mxu0 0.0
      %492 = vmatprep.subr.mxu0 0.0
      %493 = vmatpush1.msra.mxu0 0.0
      %494 = vmatprep.subr.mxu0 0.0
      %495 = vmatpush1.msra.mxu0 0.0
      %496 = vmatprep.subr.mxu0 0.0
      %497 = vmatpush1.msra.mxu0 %v455
      %498 = vmatprep.subr.mxu0 0.0
      %499 = vmatpush1.msra.mxu0 %v454
      %500 = vmatprep.subr.mxu0 0.0
      %501 = vmatpush1.msra.mxu0 %v453
      %502 = vmatprep.subr.mxu0 0.0
      %503 = vmatpush1.msra.mxu0 %v452
      %504 = vmatprep.subr.mxu0 0.0
      %505 = vmatpush2.msra.mxu0 0.0
      %506 = vmatprep.subr.mxu0 0.0
      %507 = vmatpush2.msra.mxu0 0.0
      %508 = vmatprep.subr.mxu0 0.0
      %509 = vmatpush2.msra.mxu0 0.0
      %510 = vmatprep.subr.mxu0 0.0
      %511 = vmatpush2.msra.mxu0 0.0
      %512 = vmatprep.subr.mxu0 0.0
      %513 = vmatpush2.msra.mxu0 0.0
      %514 = vmatprep.subr.mxu0 0.0
      %515 = vmatpush2.msra.mxu0 0.0
      %516 = vmatprep.subr.mxu0 0.0
      %517 = vmatpush2.msra.mxu0 0.0
      %518 = vmatprep.subr.mxu0 0.0
      %519 = vmatpush2.msra.mxu0 0.0
      %520 = vmatprep.subr.mxu0 0.0
      %521 = vmatpush2.msra.mxu0 0.0
      %522 = vmatprep.subr.mxu0 0.0
      %523 = vmatpush2.msra.mxu0 0.0
      %524 = vmatprep.subr.mxu0 0.0
      %525 = vmatpush2.msra.mxu0 0.0
      %526 = vmatprep.subr.mxu0 0.0
      %527 = vmatpush2.msra.mxu0 0.0
      %528 = vmatprep.subr.mxu0 0.0
      %529 = vmatpush2.msra.mxu0 0.0
      %530 = vmatprep.subr.mxu0 0.0
      %531 = vmatpush2.msra.mxu0 0.0
      %532 = vmatprep.subr.mxu0 0.0
      %533 = vmatpush2.msra.mxu0 0.0
      %534 = vmatprep.subr.mxu0 0.0
      %535 = vmatpush2.msra.mxu0 0.0
      %536 = vmatprep.mubr.f32.mxu0 0.0
      %537 = vmatmul.mubr.f32.gmra.mxu0 %v464
      %v538 = vpop.f32.mrf.mxu0
      %v539 = vadd.f32 %v461, %v538
      %v540 = vpop.f32.mrf.mxu0
      %541 = vmatprep.mubr.f32.mxu0 0.0
      %542 = vmatmul.mubr.f32.gmra.mxu0 %v467
      %v543 = vpop.f32.mrf.mxu0
      %v544 = vadd.f32 %v461, %v543
      %v545 = vpop.f32.mrf.mxu0
      %546 = vmatprep.mubr.f32.mxu0 0.0
      %547 = vmatmul.mubr.f32.gmra.mxu0 %v470
      %v548 = vpop.f32.mrf.mxu0
      %v549 = vadd.f32 %v461, %v548
      %v550 = vpop.f32.mrf.mxu0
      %551 = vdwg.mxu0
      %v552 = vmul.f32 %v539, 0.35355338
      %v553 = vmul.f32 %v544, 0.35355338
      %v554 = vmul.f32 %v549, 0.35355338
      %v555 = vld [vmem:[%s4] sm:$0xff]
      %v556 = vld [vmem:[%s4 + $0x8] sm:$0xff]
      %v557 = vld [vmem:[%s4 + $0x10] sm:$0xff]
      %v558 = vld [vmem:[%s4 + $0x18] sm:$0xff]
      %v559 = vld [vmem:[%s7] sm:$0x1]
      %v561 = vlaneseq
      %v562 = vshrl.u32 %v561, 7
      %v563 = vsub.s32 0, %v562
      %v564 = vrot.slane %v559, %v563
      %566 = vmatprep.subr.mxu0 0.0
      %567 = vmatpush1.msra.mxu0 0.0
      %568 = vmatprep.subr.mxu0 0.0
      %569 = vmatpush1.msra.mxu0 0.0
      %570 = vmatprep.subr.mxu0 0.0
      %571 = vmatpush1.msra.mxu0 0.0
      %572 = vmatprep.subr.mxu0 0.0
      %573 = vmatpush1.msra.mxu0 0.0
      %574 = vmatprep.subr.mxu0 0.0
      %575 = vmatpush1.msra.mxu0 0.0
      %576 = vmatprep.subr.mxu0 0.0
      %577 = vmatpush1.msra.mxu0 0.0
      %578 = vmatprep.subr.mxu0 0.0
      %579 = vmatpush1.msra.mxu0 0.0
      %580 = vmatprep.subr.mxu0 0.0
      %581 = vmatpush1.msra.mxu0 0.0
      %582 = vmatprep.subr.mxu0 0.0
      %583 = vmatpush1.msra.mxu0 0.0
      %584 = vmatprep.subr.mxu0 0.0
      %585 = vmatpush1.msra.mxu0 0.0
      %586 = vmatprep.subr.mxu0 0.0
      %587 = vmatpush1.msra.mxu0 0.0
      %588 = vmatprep.subr.mxu0 0.0
      %589 = vmatpush1.msra.mxu0 0.0
      %590 = vmatprep.subr.mxu0 0.0
      %591 = vmatpush1.msra.mxu0 %v558
      %592 = vmatprep.subr.mxu0 0.0
      %593 = vmatpush1.msra.mxu0 %v557
      %594 = vmatprep.subr.mxu0 0.0
      %595 = vmatpush1.msra.mxu0 %v556
      %596 = vmatprep.subr.mxu0 0.0
      %597 = vmatpush1.msra.mxu0 %v555
      %598 = vmatprep.subr.mxu0 0.0
      %599 = vmatpush2.msra.mxu0 0.0
      %600 = vmatprep.subr.mxu0 0.0
      %601 = vmatpush2.msra.mxu0 0.0
      %602 = vmatprep.subr.mxu0 0.0
      %603 = vmatpush2.msra.mxu0 0.0
      %604 = vmatprep.subr.mxu0 0.0
      %605 = vmatpush2.msra.mxu0 0.0
      %606 = vmatprep.subr.mxu0 0.0
      %607 = vmatpush2.msra.mxu0 0.0
      %608 = vmatprep.subr.mxu0 0.0
      %609 = vmatpush2.msra.mxu0 0.0
      %610 = vmatprep.subr.mxu0 0.0
      %611 = vmatpush2.msra.mxu0 0.0
      %612 = vmatprep.subr.mxu0 0.0
      %613 = vmatpush2.msra.mxu0 0.0
      %614 = vmatprep.subr.mxu0 0.0
      %615 = vmatpush2.msra.mxu0 0.0
      %616 = vmatprep.subr.mxu0 0.0
      %617 = vmatpush2.msra.mxu0 0.0
      %618 = vmatprep.subr.mxu0 0.0
      %619 = vmatpush2.msra.mxu0 0.0
      %620 = vmatprep.subr.mxu0 0.0
      %621 = vmatpush2.msra.mxu0 0.0
      %622 = vmatprep.subr.mxu0 0.0
      %623 = vmatpush2.msra.mxu0 0.0
      %624 = vmatprep.subr.mxu0 0.0
      %625 = vmatpush2.msra.mxu0 0.0
      %626 = vmatprep.subr.mxu0 0.0
      %627 = vmatpush2.msra.mxu0 0.0
      %628 = vmatprep.subr.mxu0 0.0
      %629 = vmatpush2.msra.mxu0 0.0
      %630 = vmatprep.mubr.f32.mxu0 0.0
      %631 = vmatmul.mubr.f32.gmra.mxu0 %v464
      %v632 = vpop.f32.mrf.mxu0
      %v633 = vadd.f32 %v564, %v632
      %v634 = vpop.f32.mrf.mxu0
      %635 = vmatprep.mubr.f32.mxu0 0.0
      %636 = vmatmul.mubr.f32.gmra.mxu0 %v467
      %v637 = vpop.f32.mrf.mxu0
      %v638 = vadd.f32 %v564, %v637
      %v639 = vpop.f32.mrf.mxu0
      %640 = vmatprep.mubr.f32.mxu0 0.0
      %641 = vmatmul.mubr.f32.gmra.mxu0 %v470
      %v642 = vpop.f32.mrf.mxu0
      %v643 = vadd.f32 %v564, %v642
      %v644 = vpop.f32.mrf.mxu0
      %645 = vdwg.mxu0
      %v646 = vld [vmem:[%s5] sm:$0xff]
      %v647 = vld [vmem:[%s5 + $0x8] sm:$0xff]
      %v648 = vld [vmem:[%s5 + $0x10] sm:$0xff]
      %v649 = vld [vmem:[%s5 + $0x18] sm:$0xff]
      %v650 = vld [vmem:[%s8] sm:$0x1]
      %v652 = vlaneseq
      %v653 = vshrl.u32 %v652, 7
      %v654 = vsub.s32 0, %v653
      %v655 = vrot.slane %v650, %v654
      %657 = vmatprep.subr.mxu0 0.0
      %658 = vmatpush1.msra.mxu0 0.0
      %659 = vmatprep.subr.mxu0 0.0
      %660 = vmatpush1.msra.mxu0 0.0
      %661 = vmatprep.subr.mxu0 0.0
      %662 = vmatpush1.msra.mxu0 0.0
      %663 = vmatprep.subr.mxu0 0.0
      %664 = vmatpush1.msra.mxu0 0.0
      %665 = vmatprep.subr.mxu0 0.0
      %666 = vmatpush1.msra.mxu0 0.0
      %667 = vmatprep.subr.mxu0 0.0
      %668 = vmatpush1.msra.mxu0 0.0
      %669 = vmatprep.subr.mxu0 0.0
      %670 = vmatpush1.msra.mxu0 0.0
      %671 = vmatprep.subr.mxu0 0.0
      %672 = vmatpush1.msra.mxu0 0.0
      %673 = vmatprep.subr.mxu0 0.0
      %674 = vmatpush1.msra.mxu0 0.0
      %675 = vmatprep.subr.mxu0 0.0
      %676 = vmatpush1.msra.mxu0 0.0
      %677 = vmatprep.subr.mxu0 0.0
      %678 = vmatpush1.msra.mxu0 0.0
      %679 = vmatprep.subr.mxu0 0.0
      %680 = vmatpush1.msra.mxu0 0.0
      %681 = vmatprep.subr.mxu0 0.0
      %682 = vmatpush1.msra.mxu0 %v649
      %683 = vmatprep.subr.mxu0 0.0
      %684 = vmatpush1.msra.mxu0 %v648
      %685 = vmatprep.subr.mxu0 0.0
      %686 = vmatpush1.msra.mxu0 %v647
      %687 = vmatprep.subr.mxu0 0.0
      %688 = vmatpush1.msra.mxu0 %v646
      %689 = vmatprep.subr.mxu0 0.0
      %690 = vmatpush2.msra.mxu0 0.0
      %691 = vmatprep.subr.mxu0 0.0
      %692 = vmatpush2.msra.mxu0 0.0
      %693 = vmatprep.subr.mxu0 0.0
      %694 = vmatpush2.msra.mxu0 0.0
      %695 = vmatprep.subr.mxu0 0.0
      %696 = vmatpush2.msra.mxu0 0.0
      %697 = vmatprep.subr.mxu0 0.0
      %698 = vmatpush2.msra.mxu0 0.0
      %699 = vmatprep.subr.mxu0 0.0
      %700 = vmatpush2.msra.mxu0 0.0
      %701 = vmatprep.subr.mxu0 0.0
      %702 = vmatpush2.msra.mxu0 0.0
      %703 = vmatprep.subr.mxu0 0.0
      %704 = vmatpush2.msra.mxu0 0.0
      %705 = vmatprep.subr.mxu0 0.0
      %706 = vmatpush2.msra.mxu0 0.0
      %707 = vmatprep.subr.mxu0 0.0
      %708 = vmatpush2.msra.mxu0 0.0
      %709 = vmatprep.subr.mxu0 0.0
      %710 = vmatpush2.msra.mxu0 0.0
      %711 = vmatprep.subr.mxu0 0.0
      %712 = vmatpush2.msra.mxu0 0.0
      %713 = vmatprep.subr.mxu0 0.0
      %714 = vmatpush2.msra.mxu0 0.0
      %715 = vmatprep.subr.mxu0 0.0
      %716 = vmatpush2.msra.mxu0 0.0
      %717 = vmatprep.subr.mxu0 0.0
      %718 = vmatpush2.msra.mxu0 0.0
      %719 = vmatprep.subr.mxu0 0.0
      %720 = vmatpush2.msra.mxu0 0.0
      %721 = vmatprep.mubr.f32.mxu0 0.0
      %722 = vmatmul.mubr.f32.gmra.mxu0 %v464
      %v723 = vpop.f32.mrf.mxu0
      %v724 = vadd.f32 %v655, %v723
      %v725 = vpop.f32.mrf.mxu0
      %726 = vmatprep.mubr.f32.mxu0 0.0
      %727 = vmatmul.mubr.f32.gmra.mxu0 %v467
      %v728 = vpop.f32.mrf.mxu0
      %v729 = vadd.f32 %v655, %v728
      %v730 = vpop.f32.mrf.mxu0
      %731 = vmatprep.mubr.f32.mxu0 0.0
      %732 = vmatmul.mubr.f32.gmra.mxu0 %v470
      %v733 = vpop.f32.mrf.mxu0
      %v734 = vadd.f32 %v655, %v733
      %v735 = vpop.f32.mrf.mxu0
      %736 = vdwg.mxu0
      %vm737 = vcmask 64512
      %v739 = vsel %vm737, %v552, 0
      %v742 = vsel %vm737, %v553, 0
      %v745 = vsel %vm737, %v554, 0
      %v748 = vsel %vm737, %v633, 0
      %v751 = vsel %vm737, %v638, 0
      %v754 = vsel %vm737, %v643, 0
      %756 = vmatprep.subr.mxu0 0.0
      %757 = vmatpush1.xpose.msra.mxu0 0.0
      %758 = vmatprep.subr.mxu0 0.0
      %759 = vmatpush1.xpose.msra.mxu0 0.0
      %760 = vmatprep.subr.mxu0 0.0
      %761 = vmatpush1.xpose.msra.mxu0 0.0
      %762 = vmatprep.subr.mxu0 0.0
      %763 = vmatpush1.xpose.msra.mxu0 0.0
      %764 = vmatprep.subr.mxu0 0.0
      %765 = vmatpush1.xpose.msra.mxu0 0.0
      %766 = vmatprep.subr.mxu0 0.0
      %767 = vmatpush1.xpose.msra.mxu0 0.0
      %768 = vmatprep.subr.mxu0 0.0
      %769 = vmatpush1.xpose.msra.mxu0 0.0
      %770 = vmatprep.subr.mxu0 0.0
      %771 = vmatpush1.xpose.msra.mxu0 0.0
      %772 = vmatprep.subr.mxu0 0.0
      %773 = vmatpush1.xpose.msra.mxu0 0.0
      %774 = vmatprep.subr.mxu0 0.0
      %775 = vmatpush1.xpose.msra.mxu0 0.0
      %776 = vmatprep.subr.mxu0 0.0
      %777 = vmatpush1.xpose.msra.mxu0 0.0
      %778 = vmatprep.subr.mxu0 0.0
      %779 = vmatpush1.xpose.msra.mxu0 0.0
      %780 = vmatprep.subr.mxu0 0.0
      %781 = vmatpush1.xpose.msra.mxu0 0.0
      %782 = vmatprep.subr.mxu0 0.0
      %783 = vmatpush1.xpose.msra.mxu0 %v754
      %784 = vmatprep.subr.mxu0 0.0
      %785 = vmatpush1.xpose.msra.mxu0 %v751
      %786 = vmatprep.subr.mxu0 0.0
      %787 = vmatpush1.xpose.msra.mxu0 %v748
      %788 = vmatprep.subr.mxu0 0.0
      %789 = vmatpush2.xpose.msra.mxu0 0.0
      %790 = vmatprep.subr.mxu0 0.0
      %791 = vmatpush2.xpose.msra.mxu0 0.0
      %792 = vmatprep.subr.mxu0 0.0
      %793 = vmatpush2.xpose.msra.mxu0 0.0
      %794 = vmatprep.subr.mxu0 0.0
      %795 = vmatpush2.xpose.msra.mxu0 0.0
      %796 = vmatprep.subr.mxu0 0.0
      %797 = vmatpush2.xpose.msra.mxu0 0.0
      %798 = vmatprep.subr.mxu0 0.0
      %799 = vmatpush2.xpose.msra.mxu0 0.0
      %800 = vmatprep.subr.mxu0 0.0
      %801 = vmatpush2.xpose.msra.mxu0 0.0
      %802 = vmatprep.subr.mxu0 0.0
      %803 = vmatpush2.xpose.msra.mxu0 0.0
      %804 = vmatprep.subr.mxu0 0.0
      %805 = vmatpush2.xpose.msra.mxu0 0.0
      %806 = vmatprep.subr.mxu0 0.0
      %807 = vmatpush2.xpose.msra.mxu0 0.0
      %808 = vmatprep.subr.mxu0 0.0
      %809 = vmatpush2.xpose.msra.mxu0 0.0
      %810 = vmatprep.subr.mxu0 0.0
      %811 = vmatpush2.xpose.msra.mxu0 0.0
      %812 = vmatprep.subr.mxu0 0.0
      %813 = vmatpush2.xpose.msra.mxu0 0.0
      %814 = vmatprep.subr.mxu0 0.0
      %815 = vmatpush2.xpose.msra.mxu0 0.0
      %816 = vmatprep.subr.mxu0 0.0
      %817 = vmatpush2.xpose.msra.mxu0 0.0
      %818 = vmatprep.subr.mxu0 0.0
      %819 = vmatpush2.xpose.msra.mxu0 0.0
      %820 = vmatprep.mubr.f32.mxu0 0.0
      %821 = vmatmul.mubr.f32.gmra.mxu0 %v739
      %v822 = vpop.f32.mrf.mxu0
      %v823 = vadd.f32 0.0, %v822
      %v824 = vpop.f32.mrf.mxu0
      %825 = vmatprep.mubr.f32.mxu0 0.0
      %826 = vmatmul.mubr.f32.gmra.mxu0 %v742
      %v827 = vpop.f32.mrf.mxu0
      %v828 = vadd.f32 0.0, %v827
      %v829 = vpop.f32.mrf.mxu0
      %830 = vmatprep.mubr.f32.mxu0 0.0
      %831 = vmatmul.mubr.f32.gmra.mxu0 %v745
      %v832 = vpop.f32.mrf.mxu0
      %v833 = vadd.f32 0.0, %v832
      %v834 = vpop.f32.mrf.mxu0
      %835 = vdwg.mxu0
      %vm836 = vcmask 138240
      %v837 = vsel %vm836, %v823, -inf
      %838 = vmax.xlane.f32.xlu0 %v837
      %v839 = vpop.xlane.xlu0 %838
      %v840 = vsel %vm836, %v828, -inf
      %841 = vmax.xlane.f32.xlu0 %v840
      %v842 = vpop.xlane.xlu0 %841
      %vm843 = vcmask 131072
      %v844 = vsel %vm843, %v833, -inf
      %845 = vmax.xlane.f32.xlu0 %v844
      %v846 = vpop.xlane.xlu0 %845
      %v847 = vsub.f32 %v823, %v839
      %v848 = vsub.f32 %v828, %v842
      %v849 = vsub.f32 %v833, %v846
      %v850 = vmul.f32 %v847, 1.442695
      %v851 = vpow.pop %v850
      %v852 = vmul.f32 %v848, 1.442695
      %v853 = vpow.pop %v852
      %v854 = vmul.f32 %v849, 1.442695
      %v855 = vpow.pop %v854
      %v856 = vsel %vm836, %v851, 0.0
      %857 = vadd.xlane.f32.xlu0 %v856
      %v858 = vpop.xlane.xlu0 %857
      %v859 = vsel %vm836, %v853, 0.0
      %860 = vadd.xlane.f32.xlu0 %v859
      %v861 = vpop.xlane.xlu0 %860
      %v862 = vsel %vm843, %v855, 0.0
      %863 = vadd.xlane.f32.xlu0 %v862
      %v864 = vpop.xlane.xlu0 %863
      %v865 = vrcp.pop %v858
      %v866 = vrcp.pop %v861
      %v867 = vrcp.pop %v864
      %v868 = vmul.f32 %v851, %v865
      %v869 = vmul.f32 %v853, %v866
      %v870 = vmul.f32 %v855, %v867
      %v872 = vsel %vm836, %v868, 0
      %v875 = vsel %vm836, %v869, 0
      %v878 = vsel %vm836, %v870, 0
      %vm880 = vcmask 1040384
      %v882 = vsel %vm880, %v734, 0
      %884 = vmatprep.subr.mxu0 0.0
      %885 = vmatpush1.msra.mxu0 0.0
      %886 = vmatprep.subr.mxu0 0.0
      %887 = vmatpush1.msra.mxu0 0.0
      %888 = vmatprep.subr.mxu0 0.0
      %889 = vmatpush1.msra.mxu0 0.0
      %890 = vmatprep.subr.mxu0 0.0
      %891 = vmatpush1.msra.mxu0 0.0
      %892 = vmatprep.subr.mxu0 0.0
      %893 = vmatpush1.msra.mxu0 0.0
      %894 = vmatprep.subr.mxu0 0.0
      %895 = vmatpush1.msra.mxu0 0.0
      %896 = vmatprep.subr.mxu0 0.0
      %897 = vmatpush1.msra.mxu0 0.0
      %898 = vmatprep.subr.mxu0 0.0
      %899 = vmatpush1.msra.mxu0 0.0
      %900 = vmatprep.subr.mxu0 0.0
      %901 = vmatpush1.msra.mxu0 0.0
      %902 = vmatprep.subr.mxu0 0.0
      %903 = vmatpush1.msra.mxu0 0.0
      %904 = vmatprep.subr.mxu0 0.0
      %905 = vmatpush1.msra.mxu0 0.0
      %906 = vmatprep.subr.mxu0 0.0
      %907 = vmatpush1.msra.mxu0 0.0
      %908 = vmatprep.subr.mxu0 0.0
      %909 = vmatpush1.msra.mxu0 0.0
      %910 = vmatprep.subr.mxu0 0.0
      %911 = vmatpush1.msra.mxu0 %v882
      %912 = vmatprep.subr.mxu0 0.0
      %913 = vmatpush1.msra.mxu0 %v729
      %914 = vmatprep.subr.mxu0 0.0
      %915 = vmatpush1.msra.mxu0 %v724
      %916 = vmatprep.subr.mxu0 0.0
      %917 = vmatpush2.msra.mxu0 0.0
      %918 = vmatprep.subr.mxu0 0.0
      %919 = vmatpush2.msra.mxu0 0.0
      %920 = vmatprep.subr.mxu0 0.0
      %921 = vmatpush2.msra.mxu0 0.0
      %922 = vmatprep.subr.mxu0 0.0
      %923 = vmatpush2.msra.mxu0 0.0
      %924 = vmatprep.subr.mxu0 0.0
      %925 = vmatpush2.msra.mxu0 0.0
      %926 = vmatprep.subr.mxu0 0.0
      %927 = vmatpush2.msra.mxu0 0.0
      %928 = vmatprep.subr.mxu0 0.0
      %929 = vmatpush2.msra.mxu0 0.0
      %930 = vmatprep.subr.mxu0 0.0
      %931 = vmatpush2.msra.mxu0 0.0
      %932 = vmatprep.subr.mxu0 0.0
      %933 = vmatpush2.msra.mxu0 0.0
      %934 = vmatprep.subr.mxu0 0.0
      %935 = vmatpush2.msra.mxu0 0.0
      %936 = vmatprep.subr.mxu0 0.0
      %937 = vmatpush2.msra.mxu0 0.0
      %938 = vmatprep.subr.mxu0 0.0
      %939 = vmatpush2.msra.mxu0 0.0
      %940 = vmatprep.subr.mxu0 0.0
      %941 = vmatpush2.msra.mxu0 0.0
      %942 = vmatprep.subr.mxu0 0.0
      %943 = vmatpush2.msra.mxu0 0.0
      %944 = vmatprep.subr.mxu0 0.0
      %945 = vmatpush2.msra.mxu0 0.0
      %946 = vmatprep.subr.mxu0 0.0
      %947 = vmatpush2.msra.mxu0 0.0
      %948 = vmatprep.mubr.f32.mxu0 0.0
      %949 = vmatmul.mubr.f32.gmra.mxu0 %v872
      %v950 = vpop.f32.mrf.mxu0
      %v951 = vadd.f32 0.0, %v950
      %v952 = vpop.f32.mrf.mxu0
      %953 = vmatprep.mubr.f32.mxu0 0.0
      %954 = vmatmul.mubr.f32.gmra.mxu0 %v875
      %v955 = vpop.f32.mrf.mxu0
      %v956 = vadd.f32 0.0, %v955
      %v957 = vpop.f32.mrf.mxu0
      %958 = vmatprep.mubr.f32.mxu0 0.0
      %959 = vmatmul.mubr.f32.gmra.mxu0 %v878
      %v960 = vpop.f32.mrf.mxu0
      %v961 = vadd.f32 0.0, %v960
      %v962 = vpop.f32.mrf.mxu0
      %963 = vdwg.mxu0
      %v964 = vld [vmem:[%s9] sm:$0xff]
      %s965 = scalar_lea.vmem %s3, 32
      %v966 = vld [vmem:[%s965] sm:$0xff]
      %v967 = vld [vmem:[%s965 + $0x8] sm:$0xff]
      %v968 = vld [vmem:[%s965 + $0x10] sm:$0xff]
      %v969 = vld [vmem:[%s965 + $0x18] sm:$0xff]
      %s970 = scalar_lea.vmem %s6, 1
      %v971 = vld [vmem:[%s970] sm:$0x1]
      %v973 = vlaneseq
      %v974 = vshrl.u32 %v973, 7
      %v975 = vsub.s32 0, %v974
      %v976 = vrot.slane %v971, %v975
      %978 = vmatprep.subr.mxu0 0.0
      %979 = vmatpush1.msra.mxu0 0.0
      %980 = vmatprep.subr.mxu0 0.0
      %981 = vmatpush1.msra.mxu0 0.0
      %982 = vmatprep.subr.mxu0 0.0
      %983 = vmatpush1.msra.mxu0 0.0
      %984 = vmatprep.subr.mxu0 0.0
      %985 = vmatpush1.msra.mxu0 0.0
      %986 = vmatprep.subr.mxu0 0.0
      %987 = vmatpush1.msra.mxu0 0.0
      %988 = vmatprep.subr.mxu0 0.0
      %989 = vmatpush1.msra.mxu0 0.0
      %990 = vmatprep.subr.mxu0 0.0
      %991 = vmatpush1.msra.mxu0 0.0
      %992 = vmatprep.subr.mxu0 0.0
      %993 = vmatpush1.msra.mxu0 0.0
      %994 = vmatprep.subr.mxu0 0.0
      %995 = vmatpush1.msra.mxu0 0.0
      %996 = vmatprep.subr.mxu0 0.0
      %997 = vmatpush1.msra.mxu0 0.0
      %998 = vmatprep.subr.mxu0 0.0
      %999 = vmatpush1.msra.mxu0 0.0
      %1000 = vmatprep.subr.mxu0 0.0
      %1001 = vmatpush1.msra.mxu0 0.0
      %1002 = vmatprep.subr.mxu0 0.0
      %1003 = vmatpush1.msra.mxu0 %v969
      %1004 = vmatprep.subr.mxu0 0.0
      %1005 = vmatpush1.msra.mxu0 %v968
      %1006 = vmatprep.subr.mxu0 0.0
      %1007 = vmatpush1.msra.mxu0 %v967
      %1008 = vmatprep.subr.mxu0 0.0
      %1009 = vmatpush1.msra.mxu0 %v966
      %1010 = vmatprep.subr.mxu0 0.0
      %1011 = vmatpush2.msra.mxu0 0.0
      %1012 = vmatprep.subr.mxu0 0.0
      %1013 = vmatpush2.msra.mxu0 0.0
      %1014 = vmatprep.subr.mxu0 0.0
      %1015 = vmatpush2.msra.mxu0 0.0
      %1016 = vmatprep.subr.mxu0 0.0
      %1017 = vmatpush2.msra.mxu0 0.0
      %1018 = vmatprep.subr.mxu0 0.0
      %1019 = vmatpush2.msra.mxu0 0.0
      %1020 = vmatprep.subr.mxu0 0.0
      %1021 = vmatpush2.msra.mxu0 0.0
      %1022 = vmatprep.subr.mxu0 0.0
      %1023 = vmatpush2.msra.mxu0 0.0
      %1024 = vmatprep.subr.mxu0 0.0
      %1025 = vmatpush2.msra.mxu0 0.0
      %1026 = vmatprep.subr.mxu0 0.0
      %1027 = vmatpush2.msra.mxu0 0.0
      %1028 = vmatprep.subr.mxu0 0.0
      %1029 = vmatpush2.msra.mxu0 0.0
      %1030 = vmatprep.subr.mxu0 0.0
      %1031 = vmatpush2.msra.mxu0 0.0
      %1032 = vmatprep.subr.mxu0 0.0
      %1033 = vmatpush2.msra.mxu0 0.0
      %1034 = vmatprep.subr.mxu0 0.0
      %1035 = vmatpush2.msra.mxu0 0.0
      %1036 = vmatprep.subr.mxu0 0.0
      %1037 = vmatpush2.msra.mxu0 0.0
      %1038 = vmatprep.subr.mxu0 0.0
      %1039 = vmatpush2.msra.mxu0 0.0
      %1040 = vmatprep.subr.mxu0 0.0
      %1041 = vmatpush2.msra.mxu0 0.0
      %1042 = vmatprep.mubr.f32.mxu0 0.0
      %1043 = vmatmul.mubr.f32.gmra.mxu0 %v464
      %v1044 = vpop.f32.mrf.mxu0
      %v1045 = vadd.f32 %v976, %v1044
      %v1046 = vpop.f32.mrf.mxu0
      %1047 = vmatprep.mubr.f32.mxu0 0.0
      %1048 = vmatmul.mubr.f32.gmra.mxu0 %v467
      %v1049 = vpop.f32.mrf.mxu0
      %v1050 = vadd.f32 %v976, %v1049
      %v1051 = vpop.f32.mrf.mxu0
      %1052 = vmatprep.mubr.f32.mxu0 0.0
      %1053 = vmatmul.mubr.f32.gmra.mxu0 %v470
      %v1054 = vpop.f32.mrf.mxu0
      %v1055 = vadd.f32 %v976, %v1054
      %v1056 = vpop.f32.mrf.mxu0
      %1057 = vdwg.mxu0
      %v1058 = vmul.f32 %v1045, 0.35355338
      %v1059 = vmul.f32 %v1050, 0.35355338
      %v1060 = vmul.f32 %v1055, 0.35355338
      %s1061 = scalar_lea.vmem %s4, 32
      %v1062 = vld [vmem:[%s1061] sm:$0xff]
      %v1063 = vld [vmem:[%s1061 + $0x8] sm:$0xff]
      %v1064 = vld [vmem:[%s1061 + $0x10] sm:$0xff]
      %v1065 = vld [vmem:[%s1061 + $0x18] sm:$0xff]
      %s1066 = scalar_lea.vmem %s7, 1
      %v1067 = vld [vmem:[%s1066] sm:$0x1]
      %v1069 = vlaneseq
      %v1070 = vshrl.u32 %v1069, 7
      %v1071 = vsub.s32 0, %v1070
      %v1072 = vrot.slane %v1067, %v1071
      %1074 = vmatprep.subr.mxu0 0.0
      %1075 = vmatpush1.msra.mxu0 0.0
      %1076 = vmatprep.subr.mxu0 0.0
      %1077 = vmatpush1.msra.mxu0 0.0
      %1078 = vmatprep.subr.mxu0 0.0
      %1079 = vmatpush1.msra.mxu0 0.0
      %1080 = vmatprep.subr.mxu0 0.0
      %1081 = vmatpush1.msra.mxu0 0.0
      %1082 = vmatprep.subr.mxu0 0.0
      %1083 = vmatpush1.msra.mxu0 0.0
      %1084 = vmatprep.subr.mxu0 0.0
      %1085 = vmatpush1.msra.mxu0 0.0
      %1086 = vmatprep.subr.mxu0 0.0
      %1087 = vmatpush1.msra.mxu0 0.0
      %1088 = vmatprep.subr.mxu0 0.0
      %1089 = vmatpush1.msra.mxu0 0.0
      %1090 = vmatprep.subr.mxu0 0.0
      %1091 = vmatpush1.msra.mxu0 0.0
      %1092 = vmatprep.subr.mxu0 0.0
      %1093 = vmatpush1.msra.mxu0 0.0
      %1094 = vmatprep.subr.mxu0 0.0
      %1095 = vmatpush1.msra.mxu0 0.0
      %1096 = vmatprep.subr.mxu0 0.0
      %1097 = vmatpush1.msra.mxu0 0.0
      %1098 = vmatprep.subr.mxu0 0.0
      %1099 = vmatpush1.msra.mxu0 %v1065
      %1100 = vmatprep.subr.mxu0 0.0
      %1101 = vmatpush1.msra.mxu0 %v1064
      %1102 = vmatprep.subr.mxu0 0.0
      %1103 = vmatpush1.msra.mxu0 %v1063
      %1104 = vmatprep.subr.mxu0 0.0
      %1105 = vmatpush1.msra.mxu0 %v1062
      %1106 = vmatprep.subr.mxu0 0.0
      %1107 = vmatpush2.msra.mxu0 0.0
      %1108 = vmatprep.subr.mxu0 0.0
      %1109 = vmatpush2.msra.mxu0 0.0
      %1110 = vmatprep.subr.mxu0 0.0
      %1111 = vmatpush2.msra.mxu0 0.0
      %1112 = vmatprep.subr.mxu0 0.0
      %1113 = vmatpush2.msra.mxu0 0.0
      %1114 = vmatprep.subr.mxu0 0.0
      %1115 = vmatpush2.msra.mxu0 0.0
      %1116 = vmatprep.subr.mxu0 0.0
      %1117 = vmatpush2.msra.mxu0 0.0
      %1118 = vmatprep.subr.mxu0 0.0
      %1119 = vmatpush2.msra.mxu0 0.0
      %1120 = vmatprep.subr.mxu0 0.0
      %1121 = vmatpush2.msra.mxu0 0.0
      %1122 = vmatprep.subr.mxu0 0.0
      %1123 = vmatpush2.msra.mxu0 0.0
      %1124 = vmatprep.subr.mxu0 0.0
      %1125 = vmatpush2.msra.mxu0 0.0
      %1126 = vmatprep.subr.mxu0 0.0
      %1127 = vmatpush2.msra.mxu0 0.0
      %1128 = vmatprep.subr.mxu0 0.0
      %1129 = vmatpush2.msra.mxu0 0.0
      %1130 = vmatprep.subr.mxu0 0.0
      %1131 = vmatpush2.msra.mxu0 0.0
      %1132 = vmatprep.subr.mxu0 0.0
      %1133 = vmatpush2.msra.mxu0 0.0
      %1134 = vmatprep.subr.mxu0 0.0
      %1135 = vmatpush2.msra.mxu0 0.0
      %1136 = vmatprep.subr.mxu0 0.0
      %1137 = vmatpush2.msra.mxu0 0.0
      %1138 = vmatprep.mubr.f32.mxu0 0.0
      %1139 = vmatmul.mubr.f32.gmra.mxu0 %v464
      %v1140 = vpop.f32.mrf.mxu0
      %v1141 = vadd.f32 %v1072, %v1140
      %v1142 = vpop.f32.mrf.mxu0
      %1143 = vmatprep.mubr.f32.mxu0 0.0
      %1144 = vmatmul.mubr.f32.gmra.mxu0 %v467
      %v1145 = vpop.f32.mrf.mxu0
      %v1146 = vadd.f32 %v1072, %v1145
      %v1147 = vpop.f32.mrf.mxu0
      %1148 = vmatprep.mubr.f32.mxu0 0.0
      %1149 = vmatmul.mubr.f32.gmra.mxu0 %v470
      %v1150 = vpop.f32.mrf.mxu0
      %v1151 = vadd.f32 %v1072, %v1150
      %v1152 = vpop.f32.mrf.mxu0
      %1153 = vdwg.mxu0
      %s1154 = scalar_lea.vmem %s5, 32
      %v1155 = vld [vmem:[%s1154] sm:$0xff]
      %v1156 = vld [vmem:[%s1154 + $0x8] sm:$0xff]
      %v1157 = vld [vmem:[%s1154 + $0x10] sm:$0xff]
      %v1158 = vld [vmem:[%s1154 + $0x18] sm:$0xff]
      %s1159 = scalar_lea.vmem %s8, 1
      %v1160 = vld [vmem:[%s1159] sm:$0x1]
      %v1162 = vlaneseq
      %v1163 = vshrl.u32 %v1162, 7
      %v1164 = vsub.s32 0, %v1163
      %v1165 = vrot.slane %v1160, %v1164
      %1167 = vmatprep.subr.mxu0 0.0
      %1168 = vmatpush1.msra.mxu0 0.0
      %1169 = vmatprep.subr.mxu0 0.0
      %1170 = vmatpush1.msra.mxu0 0.0
      %1171 = vmatprep.subr.mxu0 0.0
      %1172 = vmatpush1.msra.mxu0 0.0
      %1173 = vmatprep.subr.mxu0 0.0
      %1174 = vmatpush1.msra.mxu0 0.0
      %1175 = vmatprep.subr.mxu0 0.0
      %1176 = vmatpush1.msra.mxu0 0.0
      %1177 = vmatprep.subr.mxu0 0.0
      %1178 = vmatpush1.msra.mxu0 0.0
      %1179 = vmatprep.subr.mxu0 0.0
      %1180 = vmatpush1.msra.mxu0 0.0
      %1181 = vmatprep.subr.mxu0 0.0
      %1182 = vmatpush1.msra.mxu0 0.0
      %1183 = vmatprep.subr.mxu0 0.0
      %1184 = vmatpush1.msra.mxu0 0.0
      %1185 = vmatprep.subr.mxu0 0.0
      %1186 = vmatpush1.msra.mxu0 0.0
      %1187 = vmatprep.subr.mxu0 0.0
      %1188 = vmatpush1.msra.mxu0 0.0
      %1189 = vmatprep.subr.mxu0 0.0
      %1190 = vmatpush1.msra.mxu0 0.0
      %1191 = vmatprep.subr.mxu0 0.0
      %1192 = vmatpush1.msra.mxu0 %v1158
      %1193 = vmatprep.subr.mxu0 0.0
      %1194 = vmatpush1.msra.mxu0 %v1157
      %1195 = vmatprep.subr.mxu0 0.0
      %1196 = vmatpush1.msra.mxu0 %v1156
      %1197 = vmatprep.subr.mxu0 0.0
      %1198 = vmatpush1.msra.mxu0 %v1155
      %1199 = vmatprep.subr.mxu0 0.0
      %1200 = vmatpush2.msra.mxu0 0.0
      %1201 = vmatprep.subr.mxu0 0.0
      %1202 = vmatpush2.msra.mxu0 0.0
      %1203 = vmatprep.subr.mxu0 0.0
      %1204 = vmatpush2.msra.mxu0 0.0
      %1205 = vmatprep.subr.mxu0 0.0
      %1206 = vmatpush2.msra.mxu0 0.0
      %1207 = vmatprep.subr.mxu0 0.0
      %1208 = vmatpush2.msra.mxu0 0.0
      %1209 = vmatprep.subr.mxu0 0.0
      %1210 = vmatpush2.msra.mxu0 0.0
      %1211 = vmatprep.subr.mxu0 0.0
      %1212 = vmatpush2.msra.mxu0 0.0
      %1213 = vmatprep.subr.mxu0 0.0
      %1214 = vmatpush2.msra.mxu0 0.0
      %1215 = vmatprep.subr.mxu0 0.0
      %1216 = vmatpush2.msra.mxu0 0.0
      %1217 = vmatprep.subr.mxu0 0.0
      %1218 = vmatpush2.msra.mxu0 0.0
      %1219 = vmatprep.subr.mxu0 0.0
      %1220 = vmatpush2.msra.mxu0 0.0
      %1221 = vmatprep.subr.mxu0 0.0
      %1222 = vmatpush2.msra.mxu0 0.0
      %1223 = vmatprep.subr.mxu0 0.0
      %1224 = vmatpush2.msra.mxu0 0.0
      %1225 = vmatprep.subr.mxu0 0.0
      %1226 = vmatpush2.msra.mxu0 0.0
      %1227 = vmatprep.subr.mxu0 0.0
      %1228 = vmatpush2.msra.mxu0 0.0
      %1229 = vmatprep.subr.mxu0 0.0
      %1230 = vmatpush2.msra.mxu0 0.0
      %1231 = vmatprep.mubr.f32.mxu0 0.0
      %1232 = vmatmul.mubr.f32.gmra.mxu0 %v464
      %v1233 = vpop.f32.mrf.mxu0
      %v1234 = vadd.f32 %v1165, %v1233
      %v1235 = vpop.f32.mrf.mxu0
      %1236 = vmatprep.mubr.f32.mxu0 0.0
      %1237 = vmatmul.mubr.f32.gmra.mxu0 %v467
      %v1238 = vpop.f32.mrf.mxu0
      %v1239 = vadd.f32 %v1165, %v1238
      %v1240 = vpop.f32.mrf.mxu0
      %1241 = vmatprep.mubr.f32.mxu0 0.0
      %1242 = vmatmul.mubr.f32.gmra.mxu0 %v470
      %v1243 = vpop.f32.mrf.mxu0
      %v1244 = vadd.f32 %v1165, %v1243
      %v1245 = vpop.f32.mrf.mxu0
      %1246 = vdwg.mxu0
      %v1248 = vsel %vm737, %v1058, 0
      %v1251 = vsel %vm737, %v1059, 0
      %v1254 = vsel %vm737, %v1060, 0
      %v1257 = vsel %vm737, %v1141, 0
      %v1260 = vsel %vm737, %v1146, 0
      %v1263 = vsel %vm737, %v1151, 0
      %1265 = vmatprep.subr.mxu0 0.0
      %1266 = vmatpush1.xpose.msra.mxu0 0.0
      %1267 = vmatprep.subr.mxu0 0.0
      %1268 = vmatpush1.xpose.msra.mxu0 0.0
      %1269 = vmatprep.subr.mxu0 0.0
      %1270 = vmatpush1.xpose.msra.mxu0 0.0
      %1271 = vmatprep.subr.mxu0 0.0
      %1272 = vmatpush1.xpose.msra.mxu0 0.0
      %1273 = vmatprep.subr.mxu0 0.0
      %1274 = vmatpush1.xpose.msra.mxu0 0.0
      %1275 = vmatprep.subr.mxu0 0.0
      %1276 = vmatpush1.xpose.msra.mxu0 0.0
      %1277 = vmatprep.subr.mxu0 0.0
      %1278 = vmatpush1.xpose.msra.mxu0 0.0
      %1279 = vmatprep.subr.mxu0 0.0
      %1280 = vmatpush1.xpose.msra.mxu0 0.0
      %1281 = vmatprep.subr.mxu0 0.0
      %1282 = vmatpush1.xpose.msra.mxu0 0.0
      %1283 = vmatprep.subr.mxu0 0.0
      %1284 = vmatpush1.xpose.msra.mxu0 0.0
      %1285 = vmatprep.subr.mxu0 0.0
      %1286 = vmatpush1.xpose.msra.mxu0 0.0
      %1287 = vmatprep.subr.mxu0 0.0
      %1288 = vmatpush1.xpose.msra.mxu0 0.0
      %1289 = vmatprep.subr.mxu0 0.0
      %1290 = vmatpush1.xpose.msra.mxu0 0.0
      %1291 = vmatprep.subr.mxu0 0.0
      %1292 = vmatpush1.xpose.msra.mxu0 %v1263
      %1293 = vmatprep.subr.mxu0 0.0
      %1294 = vmatpush1.xpose.msra.mxu0 %v1260
      %1295 = vmatprep.subr.mxu0 0.0
      %1296 = vmatpush1.xpose.msra.mxu0 %v1257
      %1297 = vmatprep.subr.mxu0 0.0
      %1298 = vmatpush2.xpose.msra.mxu0 0.0
      %1299 = vmatprep.subr.mxu0 0.0
      %1300 = vmatpush2.xpose.msra.mxu0 0.0
      %1301 = vmatprep.subr.mxu0 0.0
      %1302 = vmatpush2.xpose.msra.mxu0 0.0
      %1303 = vmatprep.subr.mxu0 0.0
      %1304 = vmatpush2.xpose.msra.mxu0 0.0
      %1305 = vmatprep.subr.mxu0 0.0
      %1306 = vmatpush2.xpose.msra.mxu0 0.0
      %1307 = vmatprep.subr.mxu0 0.0
      %1308 = vmatpush2.xpose.msra.mxu0 0.0
      %1309 = vmatprep.subr.mxu0 0.0
      %1310 = vmatpush2.xpose.msra.mxu0 0.0
      %1311 = vmatprep.subr.mxu0 0.0
      %1312 = vmatpush2.xpose.msra.mxu0 0.0
      %1313 = vmatprep.subr.mxu0 0.0
      %1314 = vmatpush2.xpose.msra.mxu0 0.0
      %1315 = vmatprep.subr.mxu0 0.0
      %1316 = vmatpush2.xpose.msra.mxu0 0.0
      %1317 = vmatprep.subr.mxu0 0.0
      %1318 = vmatpush2.xpose.msra.mxu0 0.0
      %1319 = vmatprep.subr.mxu0 0.0
      %1320 = vmatpush2.xpose.msra.mxu0 0.0
      %1321 = vmatprep.subr.mxu0 0.0
      %1322 = vmatpush2.xpose.msra.mxu0 0.0
      %1323 = vmatprep.subr.mxu0 0.0
      %1324 = vmatpush2.xpose.msra.mxu0 0.0
      %1325 = vmatprep.subr.mxu0 0.0
      %1326 = vmatpush2.xpose.msra.mxu0 0.0
      %1327 = vmatprep.subr.mxu0 0.0
      %1328 = vmatpush2.xpose.msra.mxu0 0.0
      %1329 = vmatprep.mubr.f32.mxu0 0.0
      %1330 = vmatmul.mubr.f32.gmra.mxu0 %v1248
      %v1331 = vpop.f32.mrf.mxu0
      %v1332 = vadd.f32 0.0, %v1331
      %v1333 = vpop.f32.mrf.mxu0
      %1334 = vmatprep.mubr.f32.mxu0 0.0
      %1335 = vmatmul.mubr.f32.gmra.mxu0 %v1251
      %v1336 = vpop.f32.mrf.mxu0
      %v1337 = vadd.f32 0.0, %v1336
      %v1338 = vpop.f32.mrf.mxu0
      %1339 = vmatprep.mubr.f32.mxu0 0.0
      %1340 = vmatmul.mubr.f32.gmra.mxu0 %v1254
      %v1341 = vpop.f32.mrf.mxu0
      %v1342 = vadd.f32 0.0, %v1341
      %v1343 = vpop.f32.mrf.mxu0
      %1344 = vdwg.mxu0
      %v1345 = vsel %vm836, %v1332, -inf
      %1346 = vmax.xlane.f32.xlu0 %v1345
      %v1347 = vpop.xlane.xlu0 %1346
      %v1348 = vsel %vm836, %v1337, -inf
      %1349 = vmax.xlane.f32.xlu0 %v1348
      %v1350 = vpop.xlane.xlu0 %1349
      %v1351 = vsel %vm843, %v1342, -inf
      %1352 = vmax.xlane.f32.xlu0 %v1351
      %v1353 = vpop.xlane.xlu0 %1352
      %v1354 = vsub.f32 %v1332, %v1347
      %v1355 = vsub.f32 %v1337, %v1350
      %v1356 = vsub.f32 %v1342, %v1353
      %v1357 = vmul.f32 %v1354, 1.442695
      %v1358 = vpow.pop %v1357
      %v1359 = vmul.f32 %v1355, 1.442695
      %v1360 = vpow.pop %v1359
      %v1361 = vmul.f32 %v1356, 1.442695
      %v1362 = vpow.pop %v1361
      %v1363 = vsel %vm836, %v1358, 0.0
      %1364 = vadd.xlane.f32.xlu0 %v1363
      %v1365 = vpop.xlane.xlu0 %1364
      %v1366 = vsel %vm836, %v1360, 0.0
      %1367 = vadd.xlane.f32.xlu0 %v1366
      %v1368 = vpop.xlane.xlu0 %1367
      %v1369 = vsel %vm843, %v1362, 0.0
      %1370 = vadd.xlane.f32.xlu0 %v1369
      %v1371 = vpop.xlane.xlu0 %1370
      %v1372 = vrcp.pop %v1365
      %v1373 = vrcp.pop %v1368
      %v1374 = vrcp.pop %v1371
      %v1375 = vmul.f32 %v1358, %v1372
      %v1376 = vmul.f32 %v1360, %v1373
      %v1377 = vmul.f32 %v1362, %v1374
      %v1379 = vsel %vm836, %v1375, 0
      %v1382 = vsel %vm836, %v1376, 0
      %v1385 = vsel %vm836, %v1377, 0
      %v1388 = vsel %vm880, %v1244, 0
      %1390 = vmatprep.subr.mxu0 0.0
      %1391 = vmatpush1.msra.mxu0 0.0
      %1392 = vmatprep.subr.mxu0 0.0
      %1393 = vmatpush1.msra.mxu0 0.0
      %1394 = vmatprep.subr.mxu0 0.0
      %1395 = vmatpush1.msra.mxu0 0.0
      %1396 = vmatprep.subr.mxu0 0.0
      %1397 = vmatpush1.msra.mxu0 0.0
      %1398 = vmatprep.subr.mxu0 0.0
      %1399 = vmatpush1.msra.mxu0 0.0
      %1400 = vmatprep.subr.mxu0 0.0
      %1401 = vmatpush1.msra.mxu0 0.0
      %1402 = vmatprep.subr.mxu0 0.0
      %1403 = vmatpush1.msra.mxu0 0.0
      %1404 = vmatprep.subr.mxu0 0.0
      %1405 = vmatpush1.msra.mxu0 0.0
      %1406 = vmatprep.subr.mxu0 0.0
      %1407 = vmatpush1.msra.mxu0 0.0
      %1408 = vmatprep.subr.mxu0 0.0
      %1409 = vmatpush1.msra.mxu0 0.0
      %1410 = vmatprep.subr.mxu0 0.0
      %1411 = vmatpush1.msra.mxu0 0.0
      %1412 = vmatprep.subr.mxu0 0.0
      %1413 = vmatpush1.msra.mxu0 0.0
      %1414 = vmatprep.subr.mxu0 0.0
      %1415 = vmatpush1.msra.mxu0 0.0
      %1416 = vmatprep.subr.mxu0 0.0
      %1417 = vmatpush1.msra.mxu0 %v1388
      %1418 = vmatprep.subr.mxu0 0.0
      %1419 = vmatpush1.msra.mxu0 %v1239
      %1420 = vmatprep.subr.mxu0 0.0
      %1421 = vmatpush1.msra.mxu0 %v1234
      %1422 = vmatprep.subr.mxu0 0.0
      %1423 = vmatpush2.msra.mxu0 0.0
      %1424 = vmatprep.subr.mxu0 0.0
      %1425 = vmatpush2.msra.mxu0 0.0
      %1426 = vmatprep.subr.mxu0 0.0
      %1427 = vmatpush2.msra.mxu0 0.0
      %1428 = vmatprep.subr.mxu0 0.0
      %1429 = vmatpush2.msra.mxu0 0.0
      %1430 = vmatprep.subr.mxu0 0.0
      %1431 = vmatpush2.msra.mxu0 0.0
      %1432 = vmatprep.subr.mxu0 0.0
      %1433 = vmatpush2.msra.mxu0 0.0
      %1434 = vmatprep.subr.mxu0 0.0
      %1435 = vmatpush2.msra.mxu0 0.0
      %1436 = vmatprep.subr.mxu0 0.0
      %1437 = vmatpush2.msra.mxu0 0.0
      %1438 = vmatprep.subr.mxu0 0.0
      %1439 = vmatpush2.msra.mxu0 0.0
      %1440 = vmatprep.subr.mxu0 0.0
      %1441 = vmatpush2.msra.mxu0 0.0
      %1442 = vmatprep.subr.mxu0 0.0
      %1443 = vmatpush2.msra.mxu0 0.0
      %1444 = vmatprep.subr.mxu0 0.0
      %1445 = vmatpush2.msra.mxu0 0.0
      %1446 = vmatprep.subr.mxu0 0.0
      %1447 = vmatpush2.msra.mxu0 0.0
      %1448 = vmatprep.subr.mxu0 0.0
      %1449 = vmatpush2.msra.mxu0 0.0
      %1450 = vmatprep.subr.mxu0 0.0
      %1451 = vmatpush2.msra.mxu0 0.0
      %1452 = vmatprep.subr.mxu0 0.0
      %1453 = vmatpush2.msra.mxu0 0.0
      %1454 = vmatprep.mubr.f32.mxu0 0.0
      %1455 = vmatmul.mubr.f32.gmra.mxu0 %v1379
      %v1456 = vpop.f32.mrf.mxu0
      %v1457 = vadd.f32 0.0, %v1456
      %v1458 = vpop.f32.mrf.mxu0
      %1459 = vmatprep.mubr.f32.mxu0 0.0
      %1460 = vmatmul.mubr.f32.gmra.mxu0 %v1382
      %v1461 = vpop.f32.mrf.mxu0
      %v1462 = vadd.f32 0.0, %v1461
      %v1463 = vpop.f32.mrf.mxu0
      %1464 = vmatprep.mubr.f32.mxu0 0.0
      %1465 = vmatmul.mubr.f32.gmra.mxu0 %v1385
      %v1466 = vpop.f32.mrf.mxu0
      %v1467 = vadd.f32 0.0, %v1466
      %v1468 = vpop.f32.mrf.mxu0
      %1469 = vdwg.mxu0
      %s1470 = scalar_lea.vmem %s9, 8
      %v1471 = vld [vmem:[%s1470] sm:$0xff]
      %v1473 = vsel %vm737, %v1457, 0
      %v1476 = vsel %vm737, %v1462, 0
      %v1479 = vsel %vm737, %v1467, 0
      %1481 = vmatprep.subr.mxu0 0.0
      %1482 = vmatpush1.msra.mxu0 0.0
      %1483 = vmatprep.subr.mxu0 0.0
      %1484 = vmatpush1.msra.mxu0 0.0
      %1485 = vmatprep.subr.mxu0 0.0
      %1486 = vmatpush1.msra.mxu0 0.0
      %1487 = vmatprep.subr.mxu0 0.0
      %1488 = vmatpush1.msra.mxu0 0.0
      %1489 = vmatprep.subr.mxu0 0.0
      %1490 = vmatpush1.msra.mxu0 0.0
      %1491 = vmatprep.subr.mxu0 0.0
      %1492 = vmatpush1.msra.mxu0 0.0
      %1493 = vmatprep.subr.mxu0 0.0
      %1494 = vmatpush1.msra.mxu0 0.0
      %1495 = vmatprep.subr.mxu0 0.0
      %1496 = vmatpush1.msra.mxu0 0.0
      %1497 = vmatprep.subr.mxu0 0.0
      %1498 = vmatpush1.msra.mxu0 0.0
      %1499 = vmatprep.subr.mxu0 0.0
      %1500 = vmatpush1.msra.mxu0 0.0
      %1501 = vmatprep.subr.mxu0 0.0
      %1502 = vmatpush1.msra.mxu0 0.0
      %1503 = vmatprep.subr.mxu0 0.0
      %1504 = vmatpush1.msra.mxu0 0.0
      %1505 = vmatprep.subr.mxu0 0.0
      %1506 = vmatpush1.msra.mxu0 0.0
      %1507 = vmatprep.subr.mxu0 0.0
      %1508 = vmatpush1.msra.mxu0 0.0
      %1509 = vmatprep.subr.mxu0 0.0
      %1510 = vmatpush1.msra.mxu0 0.0
      %1511 = vmatprep.subr.mxu0 0.0
      %1512 = vmatpush1.msra.mxu0 %v1471
      %1513 = vmatprep.subr.mxu0 0.0
      %1514 = vmatpush2.msra.mxu0 0.0
      %1515 = vmatprep.subr.mxu0 0.0
      %1516 = vmatpush2.msra.mxu0 0.0
      %1517 = vmatprep.subr.mxu0 0.0
      %1518 = vmatpush2.msra.mxu0 0.0
      %1519 = vmatprep.subr.mxu0 0.0
      %1520 = vmatpush2.msra.mxu0 0.0
      %1521 = vmatprep.subr.mxu0 0.0
      %1522 = vmatpush2.msra.mxu0 0.0
      %1523 = vmatprep.subr.mxu0 0.0
      %1524 = vmatpush2.msra.mxu0 0.0
      %1525 = vmatprep.subr.mxu0 0.0
      %1526 = vmatpush2.msra.mxu0 0.0
      %1527 = vmatprep.subr.mxu0 0.0
      %1528 = vmatpush2.msra.mxu0 0.0
      %1529 = vmatprep.subr.mxu0 0.0
      %1530 = vmatpush2.msra.mxu0 0.0
      %1531 = vmatprep.subr.mxu0 0.0
      %1532 = vmatpush2.msra.mxu0 0.0
      %1533 = vmatprep.subr.mxu0 0.0
      %1534 = vmatpush2.msra.mxu0 0.0
      %1535 = vmatprep.subr.mxu0 0.0
      %1536 = vmatpush2.msra.mxu0 0.0
      %1537 = vmatprep.subr.mxu0 0.0
      %1538 = vmatpush2.msra.mxu0 0.0
      %1539 = vmatprep.subr.mxu0 0.0
      %1540 = vmatpush2.msra.mxu0 0.0
      %1541 = vmatprep.subr.mxu0 0.0
      %1542 = vmatpush2.msra.mxu0 0.0
      %1543 = vmatprep.subr.mxu0 0.0
      %1544 = vmatpush2.msra.mxu0 0.0
      %1545 = vmatprep.mubr.f32.mxu0 0.0
      %1546 = vmatmul.mubr.f32.gmra.mxu0 %v1473
      %v1547 = vpop.f32.mrf.mxu0
      %v1548 = vadd.f32 0.0, %v1547
      %v1549 = vpop.f32.mrf.mxu0
      %1550 = vmatprep.mubr.f32.mxu0 0.0
      %1551 = vmatmul.mubr.f32.gmra.mxu0 %v1476
      %v1552 = vpop.f32.mrf.mxu0
      %v1553 = vadd.f32 0.0, %v1552
      %v1554 = vpop.f32.mrf.mxu0
      %1555 = vmatprep.mubr.f32.mxu0 0.0
      %1556 = vmatmul.mubr.f32.gmra.mxu0 %v1479
      %v1557 = vpop.f32.mrf.mxu0
      %v1558 = vadd.f32 0.0, %v1557
      %v1559 = vpop.f32.mrf.mxu0
      %1560 = vdwg.mxu0
      %v1562 = vsel %vm737, %v951, 0
      %v1565 = vsel %vm737, %v956, 0
      %v1568 = vsel %vm737, %v961, 0
      %1570 = vmatprep.subr.mxu0 0.0
      %1571 = vmatpush1.msra.mxu0 0.0
      %1572 = vmatprep.subr.mxu0 0.0
      %1573 = vmatpush1.msra.mxu0 0.0
      %1574 = vmatprep.subr.mxu0 0.0
      %1575 = vmatpush1.msra.mxu0 0.0
      %1576 = vmatprep.subr.mxu0 0.0
      %1577 = vmatpush1.msra.mxu0 0.0
      %1578 = vmatprep.subr.mxu0 0.0
      %1579 = vmatpush1.msra.mxu0 0.0
      %1580 = vmatprep.subr.mxu0 0.0
      %1581 = vmatpush1.msra.mxu0 0.0
      %1582 = vmatprep.subr.mxu0 0.0
      %1583 = vmatpush1.msra.mxu0 0.0
      %1584 = vmatprep.subr.mxu0 0.0
      %1585 = vmatpush1.msra.mxu0 0.0
      %1586 = vmatprep.subr.mxu0 0.0
      %1587 = vmatpush1.msra.mxu0 0.0
      %1588 = vmatprep.subr.mxu0 0.0
      %1589 = vmatpush1.msra.mxu0 0.0
      %1590 = vmatprep.subr.mxu0 0.0
      %1591 = vmatpush1.msra.mxu0 0.0
      %1592 = vmatprep.subr.mxu0 0.0
      %1593 = vmatpush1.msra.mxu0 0.0
      %1594 = vmatprep.subr.mxu0 0.0
      %1595 = vmatpush1.msra.mxu0 0.0
      %1596 = vmatprep.subr.mxu0 0.0
      %1597 = vmatpush1.msra.mxu0 0.0
      %1598 = vmatprep.subr.mxu0 0.0
      %1599 = vmatpush1.msra.mxu0 0.0
      %1600 = vmatprep.subr.mxu0 0.0
      %1601 = vmatpush1.msra.mxu0 %v964
      %1602 = vmatprep.subr.mxu0 0.0
      %1603 = vmatpush2.msra.mxu0 0.0
      %1604 = vmatprep.subr.mxu0 0.0
      %1605 = vmatpush2.msra.mxu0 0.0
      %1606 = vmatprep.subr.mxu0 0.0
      %1607 = vmatpush2.msra.mxu0 0.0
      %1608 = vmatprep.subr.mxu0 0.0
      %1609 = vmatpush2.msra.mxu0 0.0
      %1610 = vmatprep.subr.mxu0 0.0
      %1611 = vmatpush2.msra.mxu0 0.0
      %1612 = vmatprep.subr.mxu0 0.0
      %1613 = vmatpush2.msra.mxu0 0.0
      %1614 = vmatprep.subr.mxu0 0.0
      %1615 = vmatpush2.msra.mxu0 0.0
      %1616 = vmatprep.subr.mxu0 0.0
      %1617 = vmatpush2.msra.mxu0 0.0
      %1618 = vmatprep.subr.mxu0 0.0
      %1619 = vmatpush2.msra.mxu0 0.0
      %1620 = vmatprep.subr.mxu0 0.0
      %1621 = vmatpush2.msra.mxu0 0.0
      %1622 = vmatprep.subr.mxu0 0.0
      %1623 = vmatpush2.msra.mxu0 0.0
      %1624 = vmatprep.subr.mxu0 0.0
      %1625 = vmatpush2.msra.mxu0 0.0
      %1626 = vmatprep.subr.mxu0 0.0
      %1627 = vmatpush2.msra.mxu0 0.0
      %1628 = vmatprep.subr.mxu0 0.0
      %1629 = vmatpush2.msra.mxu0 0.0
      %1630 = vmatprep.subr.mxu0 0.0
      %1631 = vmatpush2.msra.mxu0 0.0
      %1632 = vmatprep.subr.mxu0 0.0
      %1633 = vmatpush2.msra.mxu0 0.0
      %1634 = vmatprep.mubr.f32.mxu0 0.0
      %1635 = vmatmul.mubr.f32.gmra.mxu0 %v1562
      %v1636 = vpop.f32.mrf.mxu0
      %v1637 = vadd.f32 %v1548, %v1636
      %v1638 = vpop.f32.mrf.mxu0
      %1639 = vmatprep.mubr.f32.mxu0 0.0
      %1640 = vmatmul.mubr.f32.gmra.mxu0 %v1565
      %v1641 = vpop.f32.mrf.mxu0
      %v1642 = vadd.f32 %v1553, %v1641
      %v1643 = vpop.f32.mrf.mxu0
      %1644 = vmatprep.mubr.f32.mxu0 0.0
      %1645 = vmatmul.mubr.f32.gmra.mxu0 %v1568
      %v1646 = vpop.f32.mrf.mxu0
      %v1647 = vadd.f32 %v1558, %v1646
      %v1648 = vpop.f32.mrf.mxu0
      %1649 = vdwg.mxu0
      %s1650 = scalar_lea.vmem %s3, 64
      %v1651 = vld [vmem:[%s1650] sm:$0xff]
      %v1652 = vld [vmem:[%s1650 + $0x8] sm:$0xff]
      %v1653 = vld [vmem:[%s1650 + $0x10] sm:$0xff]
      %v1654 = vld [vmem:[%s1650 + $0x18] sm:$0xff]
      %s1655 = scalar_lea.vmem %s6, 2
      %v1656 = vld [vmem:[%s1655] sm:$0x1]
      %v1658 = vlaneseq
      %v1659 = vshrl.u32 %v1658, 7
      %v1660 = vsub.s32 0, %v1659
      %v1661 = vrot.slane %v1656, %v1660
      %1663 = vmatprep.subr.mxu0 0.0
      %1664 = vmatpush1.msra.mxu0 0.0
      %1665 = vmatprep.subr.mxu0 0.0
      %1666 = vmatpush1.msra.mxu0 0.0
      %1667 = vmatprep.subr.mxu0 0.0
      %1668 = vmatpush1.msra.mxu0 0.0
      %1669 = vmatprep.subr.mxu0 0.0
      %1670 = vmatpush1.msra.mxu0 0.0
      %1671 = vmatprep.subr.mxu0 0.0
      %1672 = vmatpush1.msra.mxu0 0.0
      %1673 = vmatprep.subr.mxu0 0.0
      %1674 = vmatpush1.msra.mxu0 0.0
      %1675 = vmatprep.subr.mxu0 0.0
      %1676 = vmatpush1.msra.mxu0 0.0
      %1677 = vmatprep.subr.mxu0 0.0
      %1678 = vmatpush1.msra.mxu0 0.0
      %1679 = vmatprep.subr.mxu0 0.0
      %1680 = vmatpush1.msra.mxu0 0.0
      %1681 = vmatprep.subr.mxu0 0.0
      %1682 = vmatpush1.msra.mxu0 0.0
      %1683 = vmatprep.subr.mxu0 0.0
      %1684 = vmatpush1.msra.mxu0 0.0
      %1685 = vmatprep.subr.mxu0 0.0
      %1686 = vmatpush1.msra.mxu0 0.0
      %1687 = vmatprep.subr.mxu0 0.0
      %1688 = vmatpush1.msra.mxu0 %v1654
      %1689 = vmatprep.subr.mxu0 0.0
      %1690 = vmatpush1.msra.mxu0 %v1653
      %1691 = vmatprep.subr.mxu0 0.0
      %1692 = vmatpush1.msra.mxu0 %v1652
      %1693 = vmatprep.subr.mxu0 0.0
      %1694 = vmatpush1.msra.mxu0 %v1651
      %1695 = vmatprep.subr.mxu0 0.0
      %1696 = vmatpush2.msra.mxu0 0.0
      %1697 = vmatprep.subr.mxu0 0.0
      %1698 = vmatpush2.msra.mxu0 0.0
      %1699 = vmatprep.subr.mxu0 0.0
      %1700 = vmatpush2.msra.mxu0 0.0
      %1701 = vmatprep.subr.mxu0 0.0
      %1702 = vmatpush2.msra.mxu0 0.0
      %1703 = vmatprep.subr.mxu0 0.0
      %1704 = vmatpush2.msra.mxu0 0.0
      %1705 = vmatprep.subr.mxu0 0.0
      %1706 = vmatpush2.msra.mxu0 0.0
      %1707 = vmatprep.subr.mxu0 0.0
      %1708 = vmatpush2.msra.mxu0 0.0
      %1709 = vmatprep.subr.mxu0 0.0
      %1710 = vmatpush2.msra.mxu0 0.0
      %1711 = vmatprep.subr.mxu0 0.0
      %1712 = vmatpush2.msra.mxu0 0.0
      %1713 = vmatprep.subr.mxu0 0.0
      %1714 = vmatpush2.msra.mxu0 0.0
      %1715 = vmatprep.subr.mxu0 0.0
      %1716 = vmatpush2.msra.mxu0 0.0
      %1717 = vmatprep.subr.mxu0 0.0
      %1718 = vmatpush2.msra.mxu0 0.0
      %1719 = vmatprep.subr.mxu0 0.0
      %1720 = vmatpush2.msra.mxu0 0.0
      %1721 = vmatprep.subr.mxu0 0.0
      %1722 = vmatpush2.msra.mxu0 0.0
      %1723 = vmatprep.subr.mxu0 0.0
      %1724 = vmatpush2.msra.mxu0 0.0
      %1725 = vmatprep.subr.mxu0 0.0
      %1726 = vmatpush2.msra.mxu0 0.0
      %1727 = vmatprep.mubr.f32.mxu0 0.0
      %1728 = vmatmul.mubr.f32.gmra.mxu0 %v464
      %v1729 = vpop.f32.mrf.mxu0
      %v1730 = vadd.f32 %v1661, %v1729
      %v1731 = vpop.f32.mrf.mxu0
      %1732 = vmatprep.mubr.f32.mxu0 0.0
      %1733 = vmatmul.mubr.f32.gmra.mxu0 %v467
      %v1734 = vpop.f32.mrf.mxu0
      %v1735 = vadd.f32 %v1661, %v1734
      %v1736 = vpop.f32.mrf.mxu0
      %1737 = vmatprep.mubr.f32.mxu0 0.0
      %1738 = vmatmul.mubr.f32.gmra.mxu0 %v470
      %v1739 = vpop.f32.mrf.mxu0
      %v1740 = vadd.f32 %v1661, %v1739
      %v1741 = vpop.f32.mrf.mxu0
      %1742 = vdwg.mxu0
      %v1743 = vmul.f32 %v1730, 0.35355338
      %v1744 = vmul.f32 %v1735, 0.35355338
      %v1745 = vmul.f32 %v1740, 0.35355338
      %s1746 = scalar_lea.vmem %s4, 64
      %v1747 = vld [vmem:[%s1746] sm:$0xff]
      %v1748 = vld [vmem:[%s1746 + $0x8] sm:$0xff]
      %v1749 = vld [vmem:[%s1746 + $0x10] sm:$0xff]
      %v1750 = vld [vmem:[%s1746 + $0x18] sm:$0xff]
      %s1751 = scalar_lea.vmem %s7, 2
      %v1752 = vld [vmem:[%s1751] sm:$0x1]
      %v1754 = vlaneseq
      %v1755 = vshrl.u32 %v1754, 7
      %v1756 = vsub.s32 0, %v1755
      %v1757 = vrot.slane %v1752, %v1756
      %1759 = vmatprep.subr.mxu0 0.0
      %1760 = vmatpush1.msra.mxu0 0.0
      %1761 = vmatprep.subr.mxu0 0.0
      %1762 = vmatpush1.msra.mxu0 0.0
      %1763 = vmatprep.subr.mxu0 0.0
      %1764 = vmatpush1.msra.mxu0 0.0
      %1765 = vmatprep.subr.mxu0 0.0
      %1766 = vmatpush1.msra.mxu0 0.0
      %1767 = vmatprep.subr.mxu0 0.0
      %1768 = vmatpush1.msra.mxu0 0.0
      %1769 = vmatprep.subr.mxu0 0.0
      %1770 = vmatpush1.msra.mxu0 0.0
      %1771 = vmatprep.subr.mxu0 0.0
      %1772 = vmatpush1.msra.mxu0 0.0
      %1773 = vmatprep.subr.mxu0 0.0
      %1774 = vmatpush1.msra.mxu0 0.0
      %1775 = vmatprep.subr.mxu0 0.0
      %1776 = vmatpush1.msra.mxu0 0.0
      %1777 = vmatprep.subr.mxu0 0.0
      %1778 = vmatpush1.msra.mxu0 0.0
      %1779 = vmatprep.subr.mxu0 0.0
      %1780 = vmatpush1.msra.mxu0 0.0
      %1781 = vmatprep.subr.mxu0 0.0
      %1782 = vmatpush1.msra.mxu0 0.0
      %1783 = vmatprep.subr.mxu0 0.0
      %1784 = vmatpush1.msra.mxu0 %v1750
      %1785 = vmatprep.subr.mxu0 0.0
      %1786 = vmatpush1.msra.mxu0 %v1749
      %1787 = vmatprep.subr.mxu0 0.0
      %1788 = vmatpush1.msra.mxu0 %v1748
      %1789 = vmatprep.subr.mxu0 0.0
      %1790 = vmatpush1.msra.mxu0 %v1747
      %1791 = vmatprep.subr.mxu0 0.0
      %1792 = vmatpush2.msra.mxu0 0.0
      %1793 = vmatprep.subr.mxu0 0.0
      %1794 = vmatpush2.msra.mxu0 0.0
      %1795 = vmatprep.subr.mxu0 0.0
      %1796 = vmatpush2.msra.mxu0 0.0
      %1797 = vmatprep.subr.mxu0 0.0
      %1798 = vmatpush2.msra.mxu0 0.0
      %1799 = vmatprep.subr.mxu0 0.0
      %1800 = vmatpush2.msra.mxu0 0.0
      %1801 = vmatprep.subr.mxu0 0.0
      %1802 = vmatpush2.msra.mxu0 0.0
      %1803 = vmatprep.subr.mxu0 0.0
      %1804 = vmatpush2.msra.mxu0 0.0
      %1805 = vmatprep.subr.mxu0 0.0
      %1806 = vmatpush2.msra.mxu0 0.0
      %1807 = vmatprep.subr.mxu0 0.0
      %1808 = vmatpush2.msra.mxu0 0.0
      %1809 = vmatprep.subr.mxu0 0.0
      %1810 = vmatpush2.msra.mxu0 0.0
      %1811 = vmatprep.subr.mxu0 0.0
      %1812 = vmatpush2.msra.mxu0 0.0
      %1813 = vmatprep.subr.mxu0 0.0
      %1814 = vmatpush2.msra.mxu0 0.0
      %1815 = vmatprep.subr.mxu0 0.0
      %1816 = vmatpush2.msra.mxu0 0.0
      %1817 = vmatprep.subr.mxu0 0.0
      %1818 = vmatpush2.msra.mxu0 0.0
      %1819 = vmatprep.subr.mxu0 0.0
      %1820 = vmatpush2.msra.mxu0 0.0
      %1821 = vmatprep.subr.mxu0 0.0
      %1822 = vmatpush2.msra.mxu0 0.0
      %1823 = vmatprep.mubr.f32.mxu0 0.0
      %1824 = vmatmul.mubr.f32.gmra.mxu0 %v464
      %v1825 = vpop.f32.mrf.mxu0
      %v1826 = vadd.f32 %v1757, %v1825
      %v1827 = vpop.f32.mrf.mxu0
      %1828 = vmatprep.mubr.f32.mxu0 0.0
      %1829 = vmatmul.mubr.f32.gmra.mxu0 %v467
      %v1830 = vpop.f32.mrf.mxu0
      %v1831 = vadd.f32 %v1757, %v1830
      %v1832 = vpop.f32.mrf.mxu0
      %1833 = vmatprep.mubr.f32.mxu0 0.0
      %1834 = vmatmul.mubr.f32.gmra.mxu0 %v470
      %v1835 = vpop.f32.mrf.mxu0
      %v1836 = vadd.f32 %v1757, %v1835
      %v1837 = vpop.f32.mrf.mxu0
      %1838 = vdwg.mxu0
      %s1839 = scalar_lea.vmem %s5, 64
      %v1840 = vld [vmem:[%s1839] sm:$0xff]
      %v1841 = vld [vmem:[%s1839 + $0x8] sm:$0xff]
      %v1842 = vld [vmem:[%s1839 + $0x10] sm:$0xff]
      %v1843 = vld [vmem:[%s1839 + $0x18] sm:$0xff]
      %s1844 = scalar_lea.vmem %s8, 2
      %v1845 = vld [vmem:[%s1844] sm:$0x1]
      %v1847 = vlaneseq
      %v1848 = vshrl.u32 %v1847, 7
      %v1849 = vsub.s32 0, %v1848
      %v1850 = vrot.slane %v1845, %v1849
      %1852 = vmatprep.subr.mxu0 0.0
      %1853 = vmatpush1.msra.mxu0 0.0
      %1854 = vmatprep.subr.mxu0 0.0
      %1855 = vmatpush1.msra.mxu0 0.0
      %1856 = vmatprep.subr.mxu0 0.0
      %1857 = vmatpush1.msra.mxu0 0.0
      %1858 = vmatprep.subr.mxu0 0.0
      %1859 = vmatpush1.msra.mxu0 0.0
      %1860 = vmatprep.subr.mxu0 0.0
      %1861 = vmatpush1.msra.mxu0 0.0
      %1862 = vmatprep.subr.mxu0 0.0
      %1863 = vmatpush1.msra.mxu0 0.0
      %1864 = vmatprep.subr.mxu0 0.0
      %1865 = vmatpush1.msra.mxu0 0.0
      %1866 = vmatprep.subr.mxu0 0.0
      %1867 = vmatpush1.msra.mxu0 0.0
      %1868 = vmatprep.subr.mxu0 0.0
      %1869 = vmatpush1.msra.mxu0 0.0
      %1870 = vmatprep.subr.mxu0 0.0
      %1871 = vmatpush1.msra.mxu0 0.0
      %1872 = vmatprep.subr.mxu0 0.0
      %1873 = vmatpush1.msra.mxu0 0.0
      %1874 = vmatprep.subr.mxu0 0.0
      %1875 = vmatpush1.msra.mxu0 0.0
      %1876 = vmatprep.subr.mxu0 0.0
      %1877 = vmatpush1.msra.mxu0 %v1843
      %1878 = vmatprep.subr.mxu0 0.0
      %1879 = vmatpush1.msra.mxu0 %v1842
      %1880 = vmatprep.subr.mxu0 0.0
      %1881 = vmatpush1.msra.mxu0 %v1841
      %1882 = vmatprep.subr.mxu0 0.0
      %1883 = vmatpush1.msra.mxu0 %v1840
      %1884 = vmatprep.subr.mxu0 0.0
      %1885 = vmatpush2.msra.mxu0 0.0
      %1886 = vmatprep.subr.mxu0 0.0
      %1887 = vmatpush2.msra.mxu0 0.0
      %1888 = vmatprep.subr.mxu0 0.0
      %1889 = vmatpush2.msra.mxu0 0.0
      %1890 = vmatprep.subr.mxu0 0.0
      %1891 = vmatpush2.msra.mxu0 0.0
      %1892 = vmatprep.subr.mxu0 0.0
      %1893 = vmatpush2.msra.mxu0 0.0
      %1894 = vmatprep.subr.mxu0 0.0
      %1895 = vmatpush2.msra.mxu0 0.0
      %1896 = vmatprep.subr.mxu0 0.0
      %1897 = vmatpush2.msra.mxu0 0.0
      %1898 = vmatprep.subr.mxu0 0.0
      %1899 = vmatpush2.msra.mxu0 0.0
      %1900 = vmatprep.subr.mxu0 0.0
      %1901 = vmatpush2.msra.mxu0 0.0
      %1902 = vmatprep.subr.mxu0 0.0
      %1903 = vmatpush2.msra.mxu0 0.0
      %1904 = vmatprep.subr.mxu0 0.0
      %1905 = vmatpush2.msra.mxu0 0.0
      %1906 = vmatprep.subr.mxu0 0.0
      %1907 = vmatpush2.msra.mxu0 0.0
      %1908 = vmatprep.subr.mxu0 0.0
      %1909 = vmatpush2.msra.mxu0 0.0
      %1910 = vmatprep.subr.mxu0 0.0
      %1911 = vmatpush2.msra.mxu0 0.0
      %1912 = vmatprep.subr.mxu0 0.0
      %1913 = vmatpush2.msra.mxu0 0.0
      %1914 = vmatprep.subr.mxu0 0.0
      %1915 = vmatpush2.msra.mxu0 0.0
      %1916 = vmatprep.mubr.f32.mxu0 0.0
      %1917 = vmatmul.mubr.f32.gmra.mxu0 %v464
      %v1918 = vpop.f32.mrf.mxu0
      %v1919 = vadd.f32 %v1850, %v1918
      %v1920 = vpop.f32.mrf.mxu0
      %1921 = vmatprep.mubr.f32.mxu0 0.0
      %1922 = vmatmul.mubr.f32.gmra.mxu0 %v467
      %v1923 = vpop.f32.mrf.mxu0
      %v1924 = vadd.f32 %v1850, %v1923
      %v1925 = vpop.f32.mrf.mxu0
      %1926 = vmatprep.mubr.f32.mxu0 0.0
      %1927 = vmatmul.mubr.f32.gmra.mxu0 %v470
      %v1928 = vpop.f32.mrf.mxu0
      %v1929 = vadd.f32 %v1850, %v1928
      %v1930 = vpop.f32.mrf.mxu0
      %1931 = vdwg.mxu0
      %v1933 = vsel %vm737, %v1743, 0
      %v1936 = vsel %vm737, %v1744, 0
      %v1939 = vsel %vm737, %v1745, 0
      %v1942 = vsel %vm737, %v1826, 0
      %v1945 = vsel %vm737, %v1831, 0
      %v1948 = vsel %vm737, %v1836, 0
      %1950 = vmatprep.subr.mxu0 0.0
      %1951 = vmatpush1.xpose.msra.mxu0 0.0
      %1952 = vmatprep.subr.mxu0 0.0
      %1953 = vmatpush1.xpose.msra.mxu0 0.0
      %1954 = vmatprep.subr.mxu0 0.0
      %1955 = vmatpush1.xpose.msra.mxu0 0.0
      %1956 = vmatprep.subr.mxu0 0.0
      %1957 = vmatpush1.xpose.msra.mxu0 0.0
      %1958 = vmatprep.subr.mxu0 0.0
      %1959 = vmatpush1.xpose.msra.mxu0 0.0
      %1960 = vmatprep.subr.mxu0 0.0
      %1961 = vmatpush1.xpose.msra.mxu0 0.0
      %1962 = vmatprep.subr.mxu0 0.0
      %1963 = vmatpush1.xpose.msra.mxu0 0.0
      %1964 = vmatprep.subr.mxu0 0.0
      %1965 = vmatpush1.xpose.msra.mxu0 0.0
      %1966 = vmatprep.subr.mxu0 0.0
      %1967 = vmatpush1.xpose.msra.mxu0 0.0
      %1968 = vmatprep.subr.mxu0 0.0
      %1969 = vmatpush1.xpose.msra.mxu0 0.0
      %1970 = vmatprep.subr.mxu0 0.0
      %1971 = vmatpush1.xpose.msra.mxu0 0.0
      %1972 = vmatprep.subr.mxu0 0.0
      %1973 = vmatpush1.xpose.msra.mxu0 0.0
      %1974 = vmatprep.subr.mxu0 0.0
      %1975 = vmatpush1.xpose.msra.mxu0 0.0
      %1976 = vmatprep.subr.mxu0 0.0
      %1977 = vmatpush1.xpose.msra.mxu0 %v1948
      %1978 = vmatprep.subr.mxu0 0.0
      %1979 = vmatpush1.xpose.msra.mxu0 %v1945
      %1980 = vmatprep.subr.mxu0 0.0
      %1981 = vmatpush1.xpose.msra.mxu0 %v1942
      %1982 = vmatprep.subr.mxu0 0.0
      %1983 = vmatpush2.xpose.msra.mxu0 0.0
      %1984 = vmatprep.subr.mxu0 0.0
      %1985 = vmatpush2.xpose.msra.mxu0 0.0
      %1986 = vmatprep.subr.mxu0 0.0
      %1987 = vmatpush2.xpose.msra.mxu0 0.0
      %1988 = vmatprep.subr.mxu0 0.0
      %1989 = vmatpush2.xpose.msra.mxu0 0.0
      %1990 = vmatprep.subr.mxu0 0.0
      %1991 = vmatpush2.xpose.msra.mxu0 0.0
      %1992 = vmatprep.subr.mxu0 0.0
      %1993 = vmatpush2.xpose.msra.mxu0 0.0
      %1994 = vmatprep.subr.mxu0 0.0
      %1995 = vmatpush2.xpose.msra.mxu0 0.0
      %1996 = vmatprep.subr.mxu0 0.0
      %1997 = vmatpush2.xpose.msra.mxu0 0.0
      %1998 = vmatprep.subr.mxu0 0.0
      %1999 = vmatpush2.xpose.msra.mxu0 0.0
      %2000 = vmatprep.subr.mxu0 0.0
      %2001 = vmatpush2.xpose.msra.mxu0 0.0
      %2002 = vmatprep.subr.mxu0 0.0
      %2003 = vmatpush2.xpose.msra.mxu0 0.0
      %2004 = vmatprep.subr.mxu0 0.0
      %2005 = vmatpush2.xpose.msra.mxu0 0.0
      %2006 = vmatprep.subr.mxu0 0.0
      %2007 = vmatpush2.xpose.msra.mxu0 0.0
      %2008 = vmatprep.subr.mxu0 0.0
      %2009 = vmatpush2.xpose.msra.mxu0 0.0
      %2010 = vmatprep.subr.mxu0 0.0
      %2011 = vmatpush2.xpose.msra.mxu0 0.0
      %2012 = vmatprep.subr.mxu0 0.0
      %2013 = vmatpush2.xpose.msra.mxu0 0.0
      %2014 = vmatprep.mubr.f32.mxu0 0.0
      %2015 = vmatmul.mubr.f32.gmra.mxu0 %v1933
      %v2016 = vpop.f32.mrf.mxu0
      %v2017 = vadd.f32 0.0, %v2016
      %v2018 = vpop.f32.mrf.mxu0
      %2019 = vmatprep.mubr.f32.mxu0 0.0
      %2020 = vmatmul.mubr.f32.gmra.mxu0 %v1936
      %v2021 = vpop.f32.mrf.mxu0
      %v2022 = vadd.f32 0.0, %v2021
      %v2023 = vpop.f32.mrf.mxu0
      %2024 = vmatprep.mubr.f32.mxu0 0.0
      %2025 = vmatmul.mubr.f32.gmra.mxu0 %v1939
      %v2026 = vpop.f32.mrf.mxu0
      %v2027 = vadd.f32 0.0, %v2026
      %v2028 = vpop.f32.mrf.mxu0
      %2029 = vdwg.mxu0
      %v2030 = vsel %vm836, %v2017, -inf
      %2031 = vmax.xlane.f32.xlu0 %v2030
      %v2032 = vpop.xlane.xlu0 %2031
      %v2033 = vsel %vm836, %v2022, -inf
      %2034 = vmax.xlane.f32.xlu0 %v2033
      %v2035 = vpop.xlane.xlu0 %2034
      %v2036 = vsel %vm843, %v2027, -inf
      %2037 = vmax.xlane.f32.xlu0 %v2036
      %v2038 = vpop.xlane.xlu0 %2037
      %v2039 = vsub.f32 %v2017, %v2032
      %v2040 = vsub.f32 %v2022, %v2035
      %v2041 = vsub.f32 %v2027, %v2038
      %v2042 = vmul.f32 %v2039, 1.442695
      %v2043 = vpow.pop %v2042
      %v2044 = vmul.f32 %v2040, 1.442695
      %v2045 = vpow.pop %v2044
      %v2046 = vmul.f32 %v2041, 1.442695
      %v2047 = vpow.pop %v2046
      %v2048 = vsel %vm836, %v2043, 0.0
      %2049 = vadd.xlane.f32.xlu0 %v2048
      %v2050 = vpop.xlane.xlu0 %2049
      %v2051 = vsel %vm836, %v2045, 0.0
      %2052 = vadd.xlane.f32.xlu0 %v2051
      %v2053 = vpop.xlane.xlu0 %2052
      %v2054 = vsel %vm843, %v2047, 0.0
      %2055 = vadd.xlane.f32.xlu0 %v2054
      %v2056 = vpop.xlane.xlu0 %2055
      %v2057 = vrcp.pop %v2050
      %v2058 = vrcp.pop %v2053
      %v2059 = vrcp.pop %v2056
      %v2060 = vmul.f32 %v2043, %v2057
      %v2061 = vmul.f32 %v2045, %v2058
      %v2062 = vmul.f32 %v2047, %v2059
      %v2064 = vsel %vm836, %v2060, 0
      %v2067 = vsel %vm836, %v2061, 0
      %v2070 = vsel %vm836, %v2062, 0
      %v2073 = vsel %vm880, %v1929, 0
      %2075 = vmatprep.subr.mxu0 0.0
      %2076 = vmatpush1.msra.mxu0 0.0
      %2077 = vmatprep.subr.mxu0 0.0
      %2078 = vmatpush1.msra.mxu0 0.0
      %2079 = vmatprep.subr.mxu0 0.0
      %2080 = vmatpush1.msra.mxu0 0.0
      %2081 = vmatprep.subr.mxu0 0.0
      %2082 = vmatpush1.msra.mxu0 0.0
      %2083 = vmatprep.subr.mxu0 0.0
      %2084 = vmatpush1.msra.mxu0 0.0
      %2085 = vmatprep.subr.mxu0 0.0
      %2086 = vmatpush1.msra.mxu0 0.0
      %2087 = vmatprep.subr.mxu0 0.0
      %2088 = vmatpush1.msra.mxu0 0.0
      %2089 = vmatprep.subr.mxu0 0.0
      %2090 = vmatpush1.msra.mxu0 0.0
      %2091 = vmatprep.subr.mxu0 0.0
      %2092 = vmatpush1.msra.mxu0 0.0
      %2093 = vmatprep.subr.mxu0 0.0
      %2094 = vmatpush1.msra.mxu0 0.0
      %2095 = vmatprep.subr.mxu0 0.0
      %2096 = vmatpush1.msra.mxu0 0.0
      %2097 = vmatprep.subr.mxu0 0.0
      %2098 = vmatpush1.msra.mxu0 0.0
      %2099 = vmatprep.subr.mxu0 0.0
      %2100 = vmatpush1.msra.mxu0 0.0
      %2101 = vmatprep.subr.mxu0 0.0
      %2102 = vmatpush1.msra.mxu0 %v2073
      %2103 = vmatprep.subr.mxu0 0.0
      %2104 = vmatpush1.msra.mxu0 %v1924
      %2105 = vmatprep.subr.mxu0 0.0
      %2106 = vmatpush1.msra.mxu0 %v1919
      %2107 = vmatprep.subr.mxu0 0.0
      %2108 = vmatpush2.msra.mxu0 0.0
      %2109 = vmatprep.subr.mxu0 0.0
      %2110 = vmatpush2.msra.mxu0 0.0
      %2111 = vmatprep.subr.mxu0 0.0
      %2112 = vmatpush2.msra.mxu0 0.0
      %2113 = vmatprep.subr.mxu0 0.0
      %2114 = vmatpush2.msra.mxu0 0.0
      %2115 = vmatprep.subr.mxu0 0.0
      %2116 = vmatpush2.msra.mxu0 0.0
      %2117 = vmatprep.subr.mxu0 0.0
      %2118 = vmatpush2.msra.mxu0 0.0
      %2119 = vmatprep.subr.mxu0 0.0
      %2120 = vmatpush2.msra.mxu0 0.0
      %2121 = vmatprep.subr.mxu0 0.0
      %2122 = vmatpush2.msra.mxu0 0.0
      %2123 = vmatprep.subr.mxu0 0.0
      %2124 = vmatpush2.msra.mxu0 0.0
      %2125 = vmatprep.subr.mxu0 0.0
      %2126 = vmatpush2.msra.mxu0 0.0
      %2127 = vmatprep.subr.mxu0 0.0
      %2128 = vmatpush2.msra.mxu0 0.0
      %2129 = vmatprep.subr.mxu0 0.0
      %2130 = vmatpush2.msra.mxu0 0.0
      %2131 = vmatprep.subr.mxu0 0.0
      %2132 = vmatpush2.msra.mxu0 0.0
      %2133 = vmatprep.subr.mxu0 0.0
      %2134 = vmatpush2.msra.mxu0 0.0
      %2135 = vmatprep.subr.mxu0 0.0
      %2136 = vmatpush2.msra.mxu0 0.0
      %2137 = vmatprep.subr.mxu0 0.0
      %2138 = vmatpush2.msra.mxu0 0.0
      %2139 = vmatprep.mubr.f32.mxu0 0.0
      %2140 = vmatmul.mubr.f32.gmra.mxu0 %v2064
      %v2141 = vpop.f32.mrf.mxu0
      %v2142 = vadd.f32 0.0, %v2141
      %v2143 = vpop.f32.mrf.mxu0
      %2144 = vmatprep.mubr.f32.mxu0 0.0
      %2145 = vmatmul.mubr.f32.gmra.mxu0 %v2067
      %v2146 = vpop.f32.mrf.mxu0
      %v2147 = vadd.f32 0.0, %v2146
      %v2148 = vpop.f32.mrf.mxu0
      %2149 = vmatprep.mubr.f32.mxu0 0.0
      %2150 = vmatmul.mubr.f32.gmra.mxu0 %v2070
      %v2151 = vpop.f32.mrf.mxu0
      %v2152 = vadd.f32 0.0, %v2151
      %v2153 = vpop.f32.mrf.mxu0
      %2154 = vdwg.mxu0
      %s2155 = scalar_lea.vmem %s9, 16
      %v2156 = vld [vmem:[%s2155] sm:$0xff]
      %v2158 = vsel %vm737, %v2142, 0
      %v2161 = vsel %vm737, %v2147, 0
      %v2164 = vsel %vm737, %v2152, 0
      %2166 = vmatprep.subr.mxu0 0.0
      %2167 = vmatpush1.msra.mxu0 0.0
      %2168 = vmatprep.subr.mxu0 0.0
      %2169 = vmatpush1.msra.mxu0 0.0
      %2170 = vmatprep.subr.mxu0 0.0
      %2171 = vmatpush1.msra.mxu0 0.0
      %2172 = vmatprep.subr.mxu0 0.0
      %2173 = vmatpush1.msra.mxu0 0.0
      %2174 = vmatprep.subr.mxu0 0.0
      %2175 = vmatpush1.msra.mxu0 0.0
      %2176 = vmatprep.subr.mxu0 0.0
      %2177 = vmatpush1.msra.mxu0 0.0
      %2178 = vmatprep.subr.mxu0 0.0
      %2179 = vmatpush1.msra.mxu0 0.0
      %2180 = vmatprep.subr.mxu0 0.0
      %2181 = vmatpush1.msra.mxu0 0.0
      %2182 = vmatprep.subr.mxu0 0.0
      %2183 = vmatpush1.msra.mxu0 0.0
      %2184 = vmatprep.subr.mxu0 0.0
      %2185 = vmatpush1.msra.mxu0 0.0
      %2186 = vmatprep.subr.mxu0 0.0
      %2187 = vmatpush1.msra.mxu0 0.0
      %2188 = vmatprep.subr.mxu0 0.0
      %2189 = vmatpush1.msra.mxu0 0.0
      %2190 = vmatprep.subr.mxu0 0.0
      %2191 = vmatpush1.msra.mxu0 0.0
      %2192 = vmatprep.subr.mxu0 0.0
      %2193 = vmatpush1.msra.mxu0 0.0
      %2194 = vmatprep.subr.mxu0 0.0
      %2195 = vmatpush1.msra.mxu0 0.0
      %2196 = vmatprep.subr.mxu0 0.0
      %2197 = vmatpush1.msra.mxu0 %v2156
      %2198 = vmatprep.subr.mxu0 0.0
      %2199 = vmatpush2.msra.mxu0 0.0
      %2200 = vmatprep.subr.mxu0 0.0
      %2201 = vmatpush2.msra.mxu0 0.0
      %2202 = vmatprep.subr.mxu0 0.0
      %2203 = vmatpush2.msra.mxu0 0.0
      %2204 = vmatprep.subr.mxu0 0.0
      %2205 = vmatpush2.msra.mxu0 0.0
      %2206 = vmatprep.subr.mxu0 0.0
      %2207 = vmatpush2.msra.mxu0 0.0
      %2208 = vmatprep.subr.mxu0 0.0
      %2209 = vmatpush2.msra.mxu0 0.0
      %2210 = vmatprep.subr.mxu0 0.0
      %2211 = vmatpush2.msra.mxu0 0.0
      %2212 = vmatprep.subr.mxu0 0.0
      %2213 = vmatpush2.msra.mxu0 0.0
      %2214 = vmatprep.subr.mxu0 0.0
      %2215 = vmatpush2.msra.mxu0 0.0
      %2216 = vmatprep.subr.mxu0 0.0
      %2217 = vmatpush2.msra.mxu0 0.0
      %2218 = vmatprep.subr.mxu0 0.0
      %2219 = vmatpush2.msra.mxu0 0.0
      %2220 = vmatprep.subr.mxu0 0.0
      %2221 = vmatpush2.msra.mxu0 0.0
      %2222 = vmatprep.subr.mxu0 0.0
      %2223 = vmatpush2.msra.mxu0 0.0
      %2224 = vmatprep.subr.mxu0 0.0
      %2225 = vmatpush2.msra.mxu0 0.0
      %2226 = vmatprep.subr.mxu0 0.0
      %2227 = vmatpush2.msra.mxu0 0.0
      %2228 = vmatprep.subr.mxu0 0.0
      %2229 = vmatpush2.msra.mxu0 0.0
      %2230 = vmatprep.mubr.f32.mxu0 0.0
      %2231 = vmatmul.mubr.f32.gmra.mxu0 %v2158
      %v2232 = vpop.f32.mrf.mxu0
      %v2233 = vadd.f32 0.0, %v2232
      %v2234 = vpop.f32.mrf.mxu0
      %2235 = vmatprep.mubr.f32.mxu0 0.0
      %2236 = vmatmul.mubr.f32.gmra.mxu0 %v2161
      %v2237 = vpop.f32.mrf.mxu0
      %v2238 = vadd.f32 0.0, %v2237
      %v2239 = vpop.f32.mrf.mxu0
      %2240 = vmatprep.mubr.f32.mxu0 0.0
      %2241 = vmatmul.mubr.f32.gmra.mxu0 %v2164
      %v2242 = vpop.f32.mrf.mxu0
      %v2243 = vadd.f32 0.0, %v2242
      %v2244 = vpop.f32.mrf.mxu0
      %2245 = vdwg.mxu0
      %v2246 = vadd.f32 %v1637, %v2233
      %v2247 = vadd.f32 %v1642, %v2238
      %v2248 = vadd.f32 %v1647, %v2243
      %s2249 = scalar_lea.vmem %s3, 96
      %v2250 = vld [vmem:[%s2249] sm:$0xff]
      %v2251 = vld [vmem:[%s2249 + $0x8] sm:$0xff]
      %v2252 = vld [vmem:[%s2249 + $0x10] sm:$0xff]
      %v2253 = vld [vmem:[%s2249 + $0x18] sm:$0xff]
      %s2254 = scalar_lea.vmem %s6, 3
      %v2255 = vld [vmem:[%s2254] sm:$0x1]
      %v2257 = vlaneseq
      %v2258 = vshrl.u32 %v2257, 7
      %v2259 = vsub.s32 0, %v2258
      %v2260 = vrot.slane %v2255, %v2259
      %2262 = vmatprep.subr.mxu0 0.0
      %2263 = vmatpush1.msra.mxu0 0.0
      %2264 = vmatprep.subr.mxu0 0.0
      %2265 = vmatpush1.msra.mxu0 0.0
      %2266 = vmatprep.subr.mxu0 0.0
      %2267 = vmatpush1.msra.mxu0 0.0
      %2268 = vmatprep.subr.mxu0 0.0
      %2269 = vmatpush1.msra.mxu0 0.0
      %2270 = vmatprep.subr.mxu0 0.0
      %2271 = vmatpush1.msra.mxu0 0.0
      %2272 = vmatprep.subr.mxu0 0.0
      %2273 = vmatpush1.msra.mxu0 0.0
      %2274 = vmatprep.subr.mxu0 0.0
      %2275 = vmatpush1.msra.mxu0 0.0
      %2276 = vmatprep.subr.mxu0 0.0
      %2277 = vmatpush1.msra.mxu0 0.0
      %2278 = vmatprep.subr.mxu0 0.0
      %2279 = vmatpush1.msra.mxu0 0.0
      %2280 = vmatprep.subr.mxu0 0.0
      %2281 = vmatpush1.msra.mxu0 0.0
      %2282 = vmatprep.subr.mxu0 0.0
      %2283 = vmatpush1.msra.mxu0 0.0
      %2284 = vmatprep.subr.mxu0 0.0
      %2285 = vmatpush1.msra.mxu0 0.0
      %2286 = vmatprep.subr.mxu0 0.0
      %2287 = vmatpush1.msra.mxu0 %v2253
      %2288 = vmatprep.subr.mxu0 0.0
      %2289 = vmatpush1.msra.mxu0 %v2252
      %2290 = vmatprep.subr.mxu0 0.0
      %2291 = vmatpush1.msra.mxu0 %v2251
      %2292 = vmatprep.subr.mxu0 0.0
      %2293 = vmatpush1.msra.mxu0 %v2250
      %2294 = vmatprep.subr.mxu0 0.0
      %2295 = vmatpush2.msra.mxu0 0.0
      %2296 = vmatprep.subr.mxu0 0.0
      %2297 = vmatpush2.msra.mxu0 0.0
      %2298 = vmatprep.subr.mxu0 0.0
      %2299 = vmatpush2.msra.mxu0 0.0
      %2300 = vmatprep.subr.mxu0 0.0
      %2301 = vmatpush2.msra.mxu0 0.0
      %2302 = vmatprep.subr.mxu0 0.0
      %2303 = vmatpush2.msra.mxu0 0.0
      %2304 = vmatprep.subr.mxu0 0.0
      %2305 = vmatpush2.msra.mxu0 0.0
      %2306 = vmatprep.subr.mxu0 0.0
      %2307 = vmatpush2.msra.mxu0 0.0
      %2308 = vmatprep.subr.mxu0 0.0
      %2309 = vmatpush2.msra.mxu0 0.0
      %2310 = vmatprep.subr.mxu0 0.0
      %2311 = vmatpush2.msra.mxu0 0.0
      %2312 = vmatprep.subr.mxu0 0.0
      %2313 = vmatpush2.msra.mxu0 0.0
      %2314 = vmatprep.subr.mxu0 0.0
      %2315 = vmatpush2.msra.mxu0 0.0
      %2316 = vmatprep.subr.mxu0 0.0
      %2317 = vmatpush2.msra.mxu0 0.0
      %2318 = vmatprep.subr.mxu0 0.0
      %2319 = vmatpush2.msra.mxu0 0.0
      %2320 = vmatprep.subr.mxu0 0.0
      %2321 = vmatpush2.msra.mxu0 0.0
      %2322 = vmatprep.subr.mxu0 0.0
      %2323 = vmatpush2.msra.mxu0 0.0
      %2324 = vmatprep.subr.mxu0 0.0
      %2325 = vmatpush2.msra.mxu0 0.0
      %2326 = vmatprep.mubr.f32.mxu0 0.0
      %2327 = vmatmul.mubr.f32.gmra.mxu0 %v464
      %v2328 = vpop.f32.mrf.mxu0
      %v2329 = vadd.f32 %v2260, %v2328
      %v2330 = vpop.f32.mrf.mxu0
      %2331 = vmatprep.mubr.f32.mxu0 0.0
      %2332 = vmatmul.mubr.f32.gmra.mxu0 %v467
      %v2333 = vpop.f32.mrf.mxu0
      %v2334 = vadd.f32 %v2260, %v2333
      %v2335 = vpop.f32.mrf.mxu0
      %2336 = vmatprep.mubr.f32.mxu0 0.0
      %2337 = vmatmul.mubr.f32.gmra.mxu0 %v470
      %v2338 = vpop.f32.mrf.mxu0
      %v2339 = vadd.f32 %v2260, %v2338
      %v2340 = vpop.f32.mrf.mxu0
      %2341 = vdwg.mxu0
      %v2342 = vmul.f32 %v2329, 0.35355338
      %v2343 = vmul.f32 %v2334, 0.35355338
      %v2344 = vmul.f32 %v2339, 0.35355338
      %s2345 = scalar_lea.vmem %s4, 96
      %v2346 = vld [vmem:[%s2345] sm:$0xff]
      %v2347 = vld [vmem:[%s2345 + $0x8] sm:$0xff]
      %v2348 = vld [vmem:[%s2345 + $0x10] sm:$0xff]
      %v2349 = vld [vmem:[%s2345 + $0x18] sm:$0xff]
      %s2350 = scalar_lea.vmem %s7, 3
      %v2351 = vld [vmem:[%s2350] sm:$0x1]
      %v2353 = vlaneseq
      %v2354 = vshrl.u32 %v2353, 7
      %v2355 = vsub.s32 0, %v2354
      %v2356 = vrot.slane %v2351, %v2355
      %2358 = vmatprep.subr.mxu0 0.0
      %2359 = vmatpush1.msra.mxu0 0.0
      %2360 = vmatprep.subr.mxu0 0.0
      %2361 = vmatpush1.msra.mxu0 0.0
      %2362 = vmatprep.subr.mxu0 0.0
      %2363 = vmatpush1.msra.mxu0 0.0
      %2364 = vmatprep.subr.mxu0 0.0
      %2365 = vmatpush1.msra.mxu0 0.0
      %2366 = vmatprep.subr.mxu0 0.0
      %2367 = vmatpush1.msra.mxu0 0.0
      %2368 = vmatprep.subr.mxu0 0.0
      %2369 = vmatpush1.msra.mxu0 0.0
      %2370 = vmatprep.subr.mxu0 0.0
      %2371 = vmatpush1.msra.mxu0 0.0
      %2372 = vmatprep.subr.mxu0 0.0
      %2373 = vmatpush1.msra.mxu0 0.0
      %2374 = vmatprep.subr.mxu0 0.0
      %2375 = vmatpush1.msra.mxu0 0.0
      %2376 = vmatprep.subr.mxu0 0.0
      %2377 = vmatpush1.msra.mxu0 0.0
      %2378 = vmatprep.subr.mxu0 0.0
      %2379 = vmatpush1.msra.mxu0 0.0
      %2380 = vmatprep.subr.mxu0 0.0
      %2381 = vmatpush1.msra.mxu0 0.0
      %2382 = vmatprep.subr.mxu0 0.0
      %2383 = vmatpush1.msra.mxu0 %v2349
      %2384 = vmatprep.subr.mxu0 0.0
      %2385 = vmatpush1.msra.mxu0 %v2348
      %2386 = vmatprep.subr.mxu0 0.0
      %2387 = vmatpush1.msra.mxu0 %v2347
      %2388 = vmatprep.subr.mxu0 0.0
      %2389 = vmatpush1.msra.mxu0 %v2346
      %2390 = vmatprep.subr.mxu0 0.0
      %2391 = vmatpush2.msra.mxu0 0.0
      %2392 = vmatprep.subr.mxu0 0.0
      %2393 = vmatpush2.msra.mxu0 0.0
      %2394 = vmatprep.subr.mxu0 0.0
      %2395 = vmatpush2.msra.mxu0 0.0
      %2396 = vmatprep.subr.mxu0 0.0
      %2397 = vmatpush2.msra.mxu0 0.0
      %2398 = vmatprep.subr.mxu0 0.0
      %2399 = vmatpush2.msra.mxu0 0.0
      %2400 = vmatprep.subr.mxu0 0.0
      %2401 = vmatpush2.msra.mxu0 0.0
      %2402 = vmatprep.subr.mxu0 0.0
      %2403 = vmatpush2.msra.mxu0 0.0
      %2404 = vmatprep.subr.mxu0 0.0
      %2405 = vmatpush2.msra.mxu0 0.0
      %2406 = vmatprep.subr.mxu0 0.0
      %2407 = vmatpush2.msra.mxu0 0.0
      %2408 = vmatprep.subr.mxu0 0.0
      %2409 = vmatpush2.msra.mxu0 0.0
      %2410 = vmatprep.subr.mxu0 0.0
      %2411 = vmatpush2.msra.mxu0 0.0
      %2412 = vmatprep.subr.mxu0 0.0
      %2413 = vmatpush2.msra.mxu0 0.0
      %2414 = vmatprep.subr.mxu0 0.0
      %2415 = vmatpush2.msra.mxu0 0.0
      %2416 = vmatprep.subr.mxu0 0.0
      %2417 = vmatpush2.msra.mxu0 0.0
      %2418 = vmatprep.subr.mxu0 0.0
      %2419 = vmatpush2.msra.mxu0 0.0
      %2420 = vmatprep.subr.mxu0 0.0
      %2421 = vmatpush2.msra.mxu0 0.0
      %2422 = vmatprep.mubr.f32.mxu0 0.0
      %2423 = vmatmul.mubr.f32.gmra.mxu0 %v464
      %v2424 = vpop.f32.mrf.mxu0
      %v2425 = vadd.f32 %v2356, %v2424
      %v2426 = vpop.f32.mrf.mxu0
      %2427 = vmatprep.mubr.f32.mxu0 0.0
      %2428 = vmatmul.mubr.f32.gmra.mxu0 %v467
      %v2429 = vpop.f32.mrf.mxu0
      %v2430 = vadd.f32 %v2356, %v2429
      %v2431 = vpop.f32.mrf.mxu0
      %2432 = vmatprep.mubr.f32.mxu0 0.0
      %2433 = vmatmul.mubr.f32.gmra.mxu0 %v470
      %v2434 = vpop.f32.mrf.mxu0
      %v2435 = vadd.f32 %v2356, %v2434
      %v2436 = vpop.f32.mrf.mxu0
      %2437 = vdwg.mxu0
      %s2438 = scalar_lea.vmem %s5, 96
      %v2439 = vld [vmem:[%s2438] sm:$0xff]
      %v2440 = vld [vmem:[%s2438 + $0x8] sm:$0xff]
      %v2441 = vld [vmem:[%s2438 + $0x10] sm:$0xff]
      %v2442 = vld [vmem:[%s2438 + $0x18] sm:$0xff]
      %s2443 = scalar_lea.vmem %s8, 3
      %v2444 = vld [vmem:[%s2443] sm:$0x1]
      %v2446 = vlaneseq
      %v2447 = vshrl.u32 %v2446, 7
      %v2448 = vsub.s32 0, %v2447
      %v2449 = vrot.slane %v2444, %v2448
      %2451 = vmatprep.subr.mxu0 0.0
      %2452 = vmatpush1.msra.mxu0 0.0
      %2453 = vmatprep.subr.mxu0 0.0
      %2454 = vmatpush1.msra.mxu0 0.0
      %2455 = vmatprep.subr.mxu0 0.0
      %2456 = vmatpush1.msra.mxu0 0.0
      %2457 = vmatprep.subr.mxu0 0.0
      %2458 = vmatpush1.msra.mxu0 0.0
      %2459 = vmatprep.subr.mxu0 0.0
      %2460 = vmatpush1.msra.mxu0 0.0
      %2461 = vmatprep.subr.mxu0 0.0
      %2462 = vmatpush1.msra.mxu0 0.0
      %2463 = vmatprep.subr.mxu0 0.0
      %2464 = vmatpush1.msra.mxu0 0.0
      %2465 = vmatprep.subr.mxu0 0.0
      %2466 = vmatpush1.msra.mxu0 0.0
      %2467 = vmatprep.subr.mxu0 0.0
      %2468 = vmatpush1.msra.mxu0 0.0
      %2469 = vmatprep.subr.mxu0 0.0
      %2470 = vmatpush1.msra.mxu0 0.0
      %2471 = vmatprep.subr.mxu0 0.0
      %2472 = vmatpush1.msra.mxu0 0.0
      %2473 = vmatprep.subr.mxu0 0.0
      %2474 = vmatpush1.msra.mxu0 0.0
      %2475 = vmatprep.subr.mxu0 0.0
      %2476 = vmatpush1.msra.mxu0 %v2442
      %2477 = vmatprep.subr.mxu0 0.0
      %2478 = vmatpush1.msra.mxu0 %v2441
      %2479 = vmatprep.subr.mxu0 0.0
      %2480 = vmatpush1.msra.mxu0 %v2440
      %2481 = vmatprep.subr.mxu0 0.0
      %2482 = vmatpush1.msra.mxu0 %v2439
      %2483 = vmatprep.subr.mxu0 0.0
      %2484 = vmatpush2.msra.mxu0 0.0
      %2485 = vmatprep.subr.mxu0 0.0
      %2486 = vmatpush2.msra.mxu0 0.0
      %2487 = vmatprep.subr.mxu0 0.0
      %2488 = vmatpush2.msra.mxu0 0.0
      %2489 = vmatprep.subr.mxu0 0.0
      %2490 = vmatpush2.msra.mxu0 0.0
      %2491 = vmatprep.subr.mxu0 0.0
      %2492 = vmatpush2.msra.mxu0 0.0
      %2493 = vmatprep.subr.mxu0 0.0
      %2494 = vmatpush2.msra.mxu0 0.0
      %2495 = vmatprep.subr.mxu0 0.0
      %2496 = vmatpush2.msra.mxu0 0.0
      %2497 = vmatprep.subr.mxu0 0.0
      %2498 = vmatpush2.msra.mxu0 0.0
      %2499 = vmatprep.subr.mxu0 0.0
      %2500 = vmatpush2.msra.mxu0 0.0
      %2501 = vmatprep.subr.mxu0 0.0
      %2502 = vmatpush2.msra.mxu0 0.0
      %2503 = vmatprep.subr.mxu0 0.0
      %2504 = vmatpush2.msra.mxu0 0.0
      %2505 = vmatprep.subr.mxu0 0.0
      %2506 = vmatpush2.msra.mxu0 0.0
      %2507 = vmatprep.subr.mxu0 0.0
      %2508 = vmatpush2.msra.mxu0 0.0
      %2509 = vmatprep.subr.mxu0 0.0
      %2510 = vmatpush2.msra.mxu0 0.0
      %2511 = vmatprep.subr.mxu0 0.0
      %2512 = vmatpush2.msra.mxu0 0.0
      %2513 = vmatprep.subr.mxu0 0.0
      %2514 = vmatpush2.msra.mxu0 0.0
      %2515 = vmatprep.mubr.f32.mxu0 0.0
      %2516 = vmatmul.mubr.f32.gmra.mxu0 %v464
      %v2517 = vpop.f32.mrf.mxu0
      %v2518 = vadd.f32 %v2449, %v2517
      %v2519 = vpop.f32.mrf.mxu0
      %2520 = vmatprep.mubr.f32.mxu0 0.0
      %2521 = vmatmul.mubr.f32.gmra.mxu0 %v467
      %v2522 = vpop.f32.mrf.mxu0
      %v2523 = vadd.f32 %v2449, %v2522
      %v2524 = vpop.f32.mrf.mxu0
      %2525 = vmatprep.mubr.f32.mxu0 0.0
      %2526 = vmatmul.mubr.f32.gmra.mxu0 %v470
      %v2527 = vpop.f32.mrf.mxu0
      %v2528 = vadd.f32 %v2449, %v2527
      %v2529 = vpop.f32.mrf.mxu0
      %2530 = vdwg.mxu0
      %v2532 = vsel %vm737, %v2342, 0
      %v2535 = vsel %vm737, %v2343, 0
      %v2538 = vsel %vm737, %v2344, 0
      %v2541 = vsel %vm737, %v2425, 0
      %v2544 = vsel %vm737, %v2430, 0
      %v2547 = vsel %vm737, %v2435, 0
      %2549 = vmatprep.subr.mxu0 0.0
      %2550 = vmatpush1.xpose.msra.mxu0 0.0
      %2551 = vmatprep.subr.mxu0 0.0
      %2552 = vmatpush1.xpose.msra.mxu0 0.0
      %2553 = vmatprep.subr.mxu0 0.0
      %2554 = vmatpush1.xpose.msra.mxu0 0.0
      %2555 = vmatprep.subr.mxu0 0.0
      %2556 = vmatpush1.xpose.msra.mxu0 0.0
      %2557 = vmatprep.subr.mxu0 0.0
      %2558 = vmatpush1.xpose.msra.mxu0 0.0
      %2559 = vmatprep.subr.mxu0 0.0
      %2560 = vmatpush1.xpose.msra.mxu0 0.0
      %2561 = vmatprep.subr.mxu0 0.0
      %2562 = vmatpush1.xpose.msra.mxu0 0.0
      %2563 = vmatprep.subr.mxu0 0.0
      %2564 = vmatpush1.xpose.msra.mxu0 0.0
      %2565 = vmatprep.subr.mxu0 0.0
      %2566 = vmatpush1.xpose.msra.mxu0 0.0
      %2567 = vmatprep.subr.mxu0 0.0
      %2568 = vmatpush1.xpose.msra.mxu0 0.0
      %2569 = vmatprep.subr.mxu0 0.0
      %2570 = vmatpush1.xpose.msra.mxu0 0.0
      %2571 = vmatprep.subr.mxu0 0.0
      %2572 = vmatpush1.xpose.msra.mxu0 0.0
      %2573 = vmatprep.subr.mxu0 0.0
      %2574 = vmatpush1.xpose.msra.mxu0 0.0
      %2575 = vmatprep.subr.mxu0 0.0
      %2576 = vmatpush1.xpose.msra.mxu0 %v2547
      %2577 = vmatprep.subr.mxu0 0.0
      %2578 = vmatpush1.xpose.msra.mxu0 %v2544
      %2579 = vmatprep.subr.mxu0 0.0
      %2580 = vmatpush1.xpose.msra.mxu0 %v2541
      %2581 = vmatprep.subr.mxu0 0.0
      %2582 = vmatpush2.xpose.msra.mxu0 0.0
      %2583 = vmatprep.subr.mxu0 0.0
      %2584 = vmatpush2.xpose.msra.mxu0 0.0
      %2585 = vmatprep.subr.mxu0 0.0
      %2586 = vmatpush2.xpose.msra.mxu0 0.0
      %2587 = vmatprep.subr.mxu0 0.0
      %2588 = vmatpush2.xpose.msra.mxu0 0.0
      %2589 = vmatprep.subr.mxu0 0.0
      %2590 = vmatpush2.xpose.msra.mxu0 0.0
      %2591 = vmatprep.subr.mxu0 0.0
      %2592 = vmatpush2.xpose.msra.mxu0 0.0
      %2593 = vmatprep.subr.mxu0 0.0
      %2594 = vmatpush2.xpose.msra.mxu0 0.0
      %2595 = vmatprep.subr.mxu0 0.0
      %2596 = vmatpush2.xpose.msra.mxu0 0.0
      %2597 = vmatprep.subr.mxu0 0.0
      %2598 = vmatpush2.xpose.msra.mxu0 0.0
      %2599 = vmatprep.subr.mxu0 0.0
      %2600 = vmatpush2.xpose.msra.mxu0 0.0
      %2601 = vmatprep.subr.mxu0 0.0
      %2602 = vmatpush2.xpose.msra.mxu0 0.0
      %2603 = vmatprep.subr.mxu0 0.0
      %2604 = vmatpush2.xpose.msra.mxu0 0.0
      %2605 = vmatprep.subr.mxu0 0.0
      %2606 = vmatpush2.xpose.msra.mxu0 0.0
      %2607 = vmatprep.subr.mxu0 0.0
      %2608 = vmatpush2.xpose.msra.mxu0 0.0
      %2609 = vmatprep.subr.mxu0 0.0
      %2610 = vmatpush2.xpose.msra.mxu0 0.0
      %2611 = vmatprep.subr.mxu0 0.0
      %2612 = vmatpush2.xpose.msra.mxu0 0.0
      %2613 = vmatprep.mubr.f32.mxu0 0.0
      %2614 = vmatmul.mubr.f32.gmra.mxu0 %v2532
      %v2615 = vpop.f32.mrf.mxu0
      %v2616 = vadd.f32 0.0, %v2615
      %v2617 = vpop.f32.mrf.mxu0
      %2618 = vmatprep.mubr.f32.mxu0 0.0
      %2619 = vmatmul.mubr.f32.gmra.mxu0 %v2535
      %v2620 = vpop.f32.mrf.mxu0
      %v2621 = vadd.f32 0.0, %v2620
      %v2622 = vpop.f32.mrf.mxu0
      %2623 = vmatprep.mubr.f32.mxu0 0.0
      %2624 = vmatmul.mubr.f32.gmra.mxu0 %v2538
      %v2625 = vpop.f32.mrf.mxu0
      %v2626 = vadd.f32 0.0, %v2625
      %v2627 = vpop.f32.mrf.mxu0
      %2628 = vdwg.mxu0
      %v2629 = vsel %vm836, %v2616, -inf
      %2630 = vmax.xlane.f32.xlu0 %v2629
      %v2631 = vpop.xlane.xlu0 %2630
      %v2632 = vsel %vm836, %v2621, -inf
      %2633 = vmax.xlane.f32.xlu0 %v2632
      %v2634 = vpop.xlane.xlu0 %2633
      %v2635 = vsel %vm843, %v2626, -inf
      %2636 = vmax.xlane.f32.xlu0 %v2635
      %v2637 = vpop.xlane.xlu0 %2636
      %v2638 = vsub.f32 %v2616, %v2631
      %v2639 = vsub.f32 %v2621, %v2634
      %v2640 = vsub.f32 %v2626, %v2637
      %v2641 = vmul.f32 %v2638, 1.442695
      %v2642 = vpow.pop %v2641
      %v2643 = vmul.f32 %v2639, 1.442695
      %v2644 = vpow.pop %v2643
      %v2645 = vmul.f32 %v2640, 1.442695
      %v2646 = vpow.pop %v2645
      %v2647 = vsel %vm836, %v2642, 0.0
      %2648 = vadd.xlane.f32.xlu0 %v2647
      %v2649 = vpop.xlane.xlu0 %2648
      %v2650 = vsel %vm836, %v2644, 0.0
      %2651 = vadd.xlane.f32.xlu0 %v2650
      %v2652 = vpop.xlane.xlu0 %2651
      %v2653 = vsel %vm843, %v2646, 0.0
      %2654 = vadd.xlane.f32.xlu0 %v2653
      %v2655 = vpop.xlane.xlu0 %2654
      %v2656 = vrcp.pop %v2649
      %v2657 = vrcp.pop %v2652
      %v2658 = vrcp.pop %v2655
      %v2659 = vmul.f32 %v2642, %v2656
      %v2660 = vmul.f32 %v2644, %v2657
      %v2661 = vmul.f32 %v2646, %v2658
      %v2663 = vsel %vm836, %v2659, 0
      %v2666 = vsel %vm836, %v2660, 0
      %v2669 = vsel %vm836, %v2661, 0
      %v2672 = vsel %vm880, %v2528, 0
      %2674 = vmatprep.subr.mxu0 0.0
      %2675 = vmatpush1.msra.mxu0 0.0
      %2676 = vmatprep.subr.mxu0 0.0
      %2677 = vmatpush1.msra.mxu0 0.0
      %2678 = vmatprep.subr.mxu0 0.0
      %2679 = vmatpush1.msra.mxu0 0.0
      %2680 = vmatprep.subr.mxu0 0.0
      %2681 = vmatpush1.msra.mxu0 0.0
      %2682 = vmatprep.subr.mxu0 0.0
      %2683 = vmatpush1.msra.mxu0 0.0
      %2684 = vmatprep.subr.mxu0 0.0
      %2685 = vmatpush1.msra.mxu0 0.0
      %2686 = vmatprep.subr.mxu0 0.0
      %2687 = vmatpush1.msra.mxu0 0.0
      %2688 = vmatprep.subr.mxu0 0.0
      %2689 = vmatpush1.msra.mxu0 0.0
      %2690 = vmatprep.subr.mxu0 0.0
      %2691 = vmatpush1.msra.mxu0 0.0
      %2692 = vmatprep.subr.mxu0 0.0
      %2693 = vmatpush1.msra.mxu0 0.0
      %2694 = vmatprep.subr.mxu0 0.0
      %2695 = vmatpush1.msra.mxu0 0.0
      %2696 = vmatprep.subr.mxu0 0.0
      %2697 = vmatpush1.msra.mxu0 0.0
      %2698 = vmatprep.subr.mxu0 0.0
      %2699 = vmatpush1.msra.mxu0 0.0
      %2700 = vmatprep.subr.mxu0 0.0
      %2701 = vmatpush1.msra.mxu0 %v2672
      %2702 = vmatprep.subr.mxu0 0.0
      %2703 = vmatpush1.msra.mxu0 %v2523
      %2704 = vmatprep.subr.mxu0 0.0
      %2705 = vmatpush1.msra.mxu0 %v2518
      %2706 = vmatprep.subr.mxu0 0.0
      %2707 = vmatpush2.msra.mxu0 0.0
      %2708 = vmatprep.subr.mxu0 0.0
      %2709 = vmatpush2.msra.mxu0 0.0
      %2710 = vmatprep.subr.mxu0 0.0
      %2711 = vmatpush2.msra.mxu0 0.0
      %2712 = vmatprep.subr.mxu0 0.0
      %2713 = vmatpush2.msra.mxu0 0.0
      %2714 = vmatprep.subr.mxu0 0.0
      %2715 = vmatpush2.msra.mxu0 0.0
      %2716 = vmatprep.subr.mxu0 0.0
      %2717 = vmatpush2.msra.mxu0 0.0
      %2718 = vmatprep.subr.mxu0 0.0
      %2719 = vmatpush2.msra.mxu0 0.0
      %2720 = vmatprep.subr.mxu0 0.0
      %2721 = vmatpush2.msra.mxu0 0.0
      %2722 = vmatprep.subr.mxu0 0.0
      %2723 = vmatpush2.msra.mxu0 0.0
      %2724 = vmatprep.subr.mxu0 0.0
      %2725 = vmatpush2.msra.mxu0 0.0
      %2726 = vmatprep.subr.mxu0 0.0
      %2727 = vmatpush2.msra.mxu0 0.0
      %2728 = vmatprep.subr.mxu0 0.0
      %2729 = vmatpush2.msra.mxu0 0.0
      %2730 = vmatprep.subr.mxu0 0.0
      %2731 = vmatpush2.msra.mxu0 0.0
      %2732 = vmatprep.subr.mxu0 0.0
      %2733 = vmatpush2.msra.mxu0 0.0
      %2734 = vmatprep.subr.mxu0 0.0
      %2735 = vmatpush2.msra.mxu0 0.0
      %2736 = vmatprep.subr.mxu0 0.0
      %2737 = vmatpush2.msra.mxu0 0.0
      %2738 = vmatprep.mubr.f32.mxu0 0.0
      %2739 = vmatmul.mubr.f32.gmra.mxu0 %v2663
      %v2740 = vpop.f32.mrf.mxu0
      %v2741 = vadd.f32 0.0, %v2740
      %v2742 = vpop.f32.mrf.mxu0
      %2743 = vmatprep.mubr.f32.mxu0 0.0
      %2744 = vmatmul.mubr.f32.gmra.mxu0 %v2666
      %v2745 = vpop.f32.mrf.mxu0
      %v2746 = vadd.f32 0.0, %v2745
      %v2747 = vpop.f32.mrf.mxu0
      %2748 = vmatprep.mubr.f32.mxu0 0.0
      %2749 = vmatmul.mubr.f32.gmra.mxu0 %v2669
      %v2750 = vpop.f32.mrf.mxu0
      %v2751 = vadd.f32 0.0, %v2750
      %v2752 = vpop.f32.mrf.mxu0
      %2753 = vdwg.mxu0
      %s2754 = scalar_lea.vmem %s9, 24
      %v2755 = vld [vmem:[%s2754] sm:$0xff]
      %v2757 = vsel %vm737, %v2741, 0
      %v2760 = vsel %vm737, %v2746, 0
      %v2763 = vsel %vm737, %v2751, 0
      %2765 = vmatprep.subr.mxu0 0.0
      %2766 = vmatpush1.msra.mxu0 0.0
      %2767 = vmatprep.subr.mxu0 0.0
      %2768 = vmatpush1.msra.mxu0 0.0
      %2769 = vmatprep.subr.mxu0 0.0
      %2770 = vmatpush1.msra.mxu0 0.0
      %2771 = vmatprep.subr.mxu0 0.0
      %2772 = vmatpush1.msra.mxu0 0.0
      %2773 = vmatprep.subr.mxu0 0.0
      %2774 = vmatpush1.msra.mxu0 0.0
      %2775 = vmatprep.subr.mxu0 0.0
      %2776 = vmatpush1.msra.mxu0 0.0
      %2777 = vmatprep.subr.mxu0 0.0
      %2778 = vmatpush1.msra.mxu0 0.0
      %2779 = vmatprep.subr.mxu0 0.0
      %2780 = vmatpush1.msra.mxu0 0.0
      %2781 = vmatprep.subr.mxu0 0.0
      %2782 = vmatpush1.msra.mxu0 0.0
      %2783 = vmatprep.subr.mxu0 0.0
      %2784 = vmatpush1.msra.mxu0 0.0
      %2785 = vmatprep.subr.mxu0 0.0
      %2786 = vmatpush1.msra.mxu0 0.0
      %2787 = vmatprep.subr.mxu0 0.0
      %2788 = vmatpush1.msra.mxu0 0.0
      %2789 = vmatprep.subr.mxu0 0.0
      %2790 = vmatpush1.msra.mxu0 0.0
      %2791 = vmatprep.subr.mxu0 0.0
      %2792 = vmatpush1.msra.mxu0 0.0
      %2793 = vmatprep.subr.mxu0 0.0
      %2794 = vmatpush1.msra.mxu0 0.0
      %2795 = vmatprep.subr.mxu0 0.0
      %2796 = vmatpush1.msra.mxu0 %v2755
      %2797 = vmatprep.subr.mxu0 0.0
      %2798 = vmatpush2.msra.mxu0 0.0
      %2799 = vmatprep.subr.mxu0 0.0
      %2800 = vmatpush2.msra.mxu0 0.0
      %2801 = vmatprep.subr.mxu0 0.0
      %2802 = vmatpush2.msra.mxu0 0.0
      %2803 = vmatprep.subr.mxu0 0.0
      %2804 = vmatpush2.msra.mxu0 0.0
      %2805 = vmatprep.subr.mxu0 0.0
      %2806 = vmatpush2.msra.mxu0 0.0
      %2807 = vmatprep.subr.mxu0 0.0
      %2808 = vmatpush2.msra.mxu0 0.0
      %2809 = vmatprep.subr.mxu0 0.0
      %2810 = vmatpush2.msra.mxu0 0.0
      %2811 = vmatprep.subr.mxu0 0.0
      %2812 = vmatpush2.msra.mxu0 0.0
      %2813 = vmatprep.subr.mxu0 0.0
      %2814 = vmatpush2.msra.mxu0 0.0
      %2815 = vmatprep.subr.mxu0 0.0
      %2816 = vmatpush2.msra.mxu0 0.0
      %2817 = vmatprep.subr.mxu0 0.0
      %2818 = vmatpush2.msra.mxu0 0.0
      %2819 = vmatprep.subr.mxu0 0.0
      %2820 = vmatpush2.msra.mxu0 0.0
      %2821 = vmatprep.subr.mxu0 0.0
      %2822 = vmatpush2.msra.mxu0 0.0
      %2823 = vmatprep.subr.mxu0 0.0
      %2824 = vmatpush2.msra.mxu0 0.0
      %2825 = vmatprep.subr.mxu0 0.0
      %2826 = vmatpush2.msra.mxu0 0.0
      %2827 = vmatprep.subr.mxu0 0.0
      %2828 = vmatpush2.msra.mxu0 0.0
      %2829 = vmatprep.mubr.f32.mxu0 0.0
      %2830 = vmatmul.mubr.f32.gmra.mxu0 %v2757
      %v2831 = vpop.f32.mrf.mxu0
      %v2832 = vadd.f32 0.0, %v2831
      %v2833 = vpop.f32.mrf.mxu0
      %2834 = vmatprep.mubr.f32.mxu0 0.0
      %2835 = vmatmul.mubr.f32.gmra.mxu0 %v2760
      %v2836 = vpop.f32.mrf.mxu0
      %v2837 = vadd.f32 0.0, %v2836
      %v2838 = vpop.f32.mrf.mxu0
      %2839 = vmatprep.mubr.f32.mxu0 0.0
      %2840 = vmatmul.mubr.f32.gmra.mxu0 %v2763
      %v2841 = vpop.f32.mrf.mxu0
      %v2842 = vadd.f32 0.0, %v2841
      %v2843 = vpop.f32.mrf.mxu0
      %2844 = vdwg.mxu0
      %v2845 = vadd.f32 %v2246, %v2832
      %v2846 = vadd.f32 %v2247, %v2837
      %v2847 = vadd.f32 %v2248, %v2842
      %v2848 = vadd.f32 %v387, %v2845
      %v2849 = vadd.f32 %v388, %v2846
      %v2850 = vadd.f32 %v389, %v2847
      %v2851 = vld [vmem:[%s10] sm:$0x1]
      %v2853 = vlaneseq
      %v2854 = vshrl.u32 %v2853, 7
      %v2855 = vsub.s32 0, %v2854
      %v2856 = vrot.slane %v2851, %v2855
      %v2858 = vadd.f32 %v2848, %v2856
      %v2859 = vadd.f32 %v2849, %v2856
      %v2860 = vadd.f32 %v2850, %v2856
      %2861 = vst.msk [vmem:[%s386] sm:$0xff] %vm392, %v2858
      %2862 = vst.msk [vmem:[%s386 + $0x8] sm:$0xff] %vm392, %v2859
      %2863 = vst.msk [vmem:[%s386 + $0x10] sm:$0x1] %vm399, %v2860
      %p2864 = scmp.lt.s32.totalorder %s22, 1
      %s2865 = scalar_select %p2864, %s22, 1
      %s2866 = smul.addr %s2865, 3
      %s2867 = smul.addr %s2866, 8
      %s2868 = scalar_lea.vmem %s11, %s2867
      // Predicated region
      $region65: #{visual_transformer_forward.9} parent=63 // pred_check
        %p2869 = pneg %p276
      $region66: #{visual_transformer_forward.9} parent=63 // pred_check_branch
        %2871 = sbr.rel (%p2869) target = $region68
      $region67: #{visual_transformer_forward.9} parent=63 // pred_region
        _
      $region68: #{visual_transformer_forward.9} parent=63 // pred_fallthru
        _
    $region64: #{visual_transformer_forward.9} parent=5 // pred_fallthru
      _
    %p2872 = scmp.le.s32.totalorder 2, %s17
    // Predicated region
    $region69: #{visual_transformer_forward.9} parent=5 // pred_check
      %p2873 = pneg %p2872
    $region70: #{visual_transformer_forward.9} parent=5 // pred_check_branch
      %2875 = sbr.rel (%p2873) target = $region72
    $region71: #{visual_transformer_forward.9} parent=5 // pred_region
      %s2876 = ssub.s32 %s17, 2
      // Predicated region
      $region73: #{visual_transformer_forward.9} parent=71 // pred_check
        %p2877 = pneg %p282
      $region74: #{visual_transformer_forward.9} parent=71 // pred_check_branch
        %2879 = sbr.rel (%p2877) target = $region76
      $region75: #{visual_transformer_forward.9} parent=71 // pred_region
        %p2880 = scmp.lt.s32.totalorder %s23, 1
        %s2881 = scalar_select %p2880, %s23, 1
        %s2882 = smul.addr %s2881, 3
        %s2883 = smul.addr %s2882, 8
        %s2884 = scalar_lea.vmem %s11, %s2883
      $region76: #{visual_transformer_forward.9} parent=71 // pred_fallthru
        _
    $region72: #{visual_transformer_forward.9} parent=5 // pred_fallthru
      _
  $region6: #{visual_transformer_forward.9} parent=0 // loop_footer
    %s21 = sadd.s32 1, %s17
  $region7: #{visual_transformer_forward.9} parent=0 // loop_footer_branch
    %16 = sbr.rel target = $region3
  $region8: #{visual_transformer_forward.9} parent=0 // loop_exit
    _

</llo_original>
